<compile_context>
chip_gen: v6e
topology: v6e:2x2x1
jax: 0.10.0
libtpu: 0.0.40
codegen_flags: <defaults>
</compile_context>

<pallas_src>
import functools
import math

import jax
import jax.numpy as jnp
from jax.experimental import pallas as pl
from jax.experimental.pallas import tpu as pltpu

# ----------------------------- small BERT config -----------------------------
VOCAB_SIZE = 100
HIDDEN = 32              # real hidden size
NUM_HEADS = 2
HEAD_DIM = HIDDEN // NUM_HEADS
INTERMEDIATE = 64        # real FFN size
NUM_LAYERS = 2
MAX_POS = 16
TYPE_VOCAB = 2
NUM_LABELS = 5
LN_EPS = 1e-12

LANE = 128               # TPU lane width
HP = 128                 # lane-dense padded hidden   (real data in first HIDDEN lanes)
DHP = 128                # lane-dense padded head slot (real data in first HEAD_DIM lanes)

# ---- vector-parameter slab row layout (one [V_ROWS, 128] f32 slab) ----------
EMB_G, EMB_B, CLS_B = 0, 1, 2
VB0 = 3                              # first per-layer row
VPL = 3 * NUM_HEADS + 7              # rows per layer:
#   0 .. 3*nh-1 : q/k/v bias, slot = grp*nh + head
#   3*nh + 0    : attention output bias
#   3*nh + 1,2  : attention LayerNorm gamma, beta
#   3*nh + 3    : intermediate (FFN1) bias
#   3*nh + 4    : FFN2 bias
#   3*nh + 5,6  : output LayerNorm gamma, beta
V_ROWS = ((VB0 + NUM_LAYERS * VPL + 7) // 8) * 8

# ---- matrix slab chunk layout (per layer): [attn_out head 0..nh-1, ffn1, ffn2]
M_CHUNKS = NUM_HEADS + 2


# ------------------------------ in-kernel math --------------------------------
def _gelu_tanh(x):
    # tanh GELU: the tanh lowers to the EUP (free slot); ~1e-3 max deviation
    # from the exact erf GELU.  gelu(0) == 0, so padded lanes stay zero.
    c = math.sqrt(2.0 / math.pi)
    return 0.5 * x * (1.0 + jnp.tanh(c * (x + 0.044715 * x * x * x)))


def _layernorm(x, g, b, n_real, eps):
    # x is lane-dense [rows, 128] with real features in the first n_real lanes
    # and exact zeros elsewhere; sums over all 128 lanes therefore equal sums
    # over the real features.  gamma/beta are zero-padded, so padded output
    # lanes remain exactly zero.
    inv_n = 1.0 / n_real
    mean = jnp.sum(x, axis=-1, keepdims=True) * inv_n
    var = jnp.maximum(jnp.sum(x * x, axis=-1, keepdims=True) * inv_n - mean * mean, 0.0)
    inv = jax.lax.rsqrt(var + eps)
    return (x - mean) * inv * g + b


# ------------------------------ fused encoder kernel --------------------------
def _encoder_kernel(x_ref, km_ref, qkvw_ref, mw_ref, vp_ref, clsw_ref, out_ref,
                    *, num_layers, num_heads, head_dim, hidden, eps):
    scale = 1.0 / math.sqrt(head_dim)
    seq = x_ref.shape[1]
    nb = 3 * num_heads                       # per-layer row offset of the attn-out bias

    # embedding LayerNorm (hidden dropout = identity at inference)
    h = _layernorm(x_ref[0], vp_ref[EMB_G:EMB_G + 1, :], vp_ref[EMB_B:EMB_B + 1, :],
                   hidden, eps)

    # additive key mask for this batch element, broadcast ONCE (hoisted out of
    # the layer/head loops): 0 for valid keys, -10000 for padded keys.
    km = jnp.broadcast_to(km_ref[0], (seq, seq))

    for layer in range(num_layers):          # static unroll (NUM_LAYERS=2)
        vb = VB0 + layer * VPL

        # fused QKV projection: one MXU pass; every (q|k|v, head) output lives
        # in its own 128-aligned lane slot (no 16-wide unaligned slices).
        qkv = jnp.dot(h, qkvw_ref[layer], preferred_element_type=jnp.float32)

        attn = None
        for hd in range(num_heads):          # static unroll, 128-aligned slices
            sq, sk, sv = hd, num_heads + hd, 2 * num_heads + hd
            q = qkv[:, sq * DHP:(sq + 1) * DHP] + vp_ref[vb + sq:vb + sq + 1, :]
            k = qkv[:, sk * DHP:(sk + 1) * DHP] + vp_ref[vb + sk:vb + sk + 1, :]
            v = qkv[:, sv * DHP:(sv + 1) * DHP] + vp_ref[vb + sv:vb + sv + 1, :]

            s = jax.lax.dot_general(q, k, (((1,), (1,)), ((), ())),
                                    preferred_element_type=jnp.float32) * scale
            s = s + km                                    # key padding mask
            s = s - jnp.max(s, axis=-1, keepdims=True)    # stable softmax
            p = jnp.exp(s)
            p = p * pl.reciprocal(jnp.sum(p, axis=-1, keepdims=True), approx=True)

            ctx = jnp.dot(p, v, preferred_element_type=jnp.float32)       # [seq, DHP]
            part = jnp.dot(ctx, mw_ref[layer, hd],
                           preferred_element_type=jnp.float32)            # [seq, HP]
            attn = part if attn is None else attn + part   # no concatenate

        attn = attn + vp_ref[vb + nb:vb + nb + 1, :]
        h = _layernorm(attn + h, vp_ref[vb + nb + 1:vb + nb + 2, :],
                       vp_ref[vb + nb + 2:vb + nb + 3, :], hidden, eps)

        inter = (jnp.dot(h, mw_ref[layer, num_heads],
                         preferred_element_type=jnp.float32)
                 + vp_ref[vb + nb + 3:vb + nb + 4, :])
        inter = _gelu_tanh(inter)
        ff = (jnp.dot(inter, mw_ref[layer, num_heads + 1],
                      preferred_element_type=jnp.float32)
              + vp_ref[vb + nb + 4:vb + nb + 5, :])
        h = _layernorm(ff + h, vp_ref[vb + nb + 5:vb + nb + 6, :],
                       vp_ref[vb + nb + 6:vb + nb + 7, :], hidden, eps)

    # classification head: lane-dense, unmasked [seq, 128] store
    logits = (jnp.dot(h, clsw_ref[...], preferred_element_type=jnp.float32)
              + vp_ref[CLS_B:CLS_B + 1, :])
    out_ref[0] = logits.astype(out_ref.dtype)


def encoder_forward(x_pad, key_mask, p):
    """x_pad: [B, S, HP] pre-LN embedding sum (zero-padded lanes);
    key_mask: [B, 1, S] additive key mask (0 / -10000)."""
    B, S, _ = x_pad.shape
    kernel = functools.partial(
        _encoder_kernel, num_layers=NUM_LAYERS, num_heads=NUM_HEADS,
        head_dim=HEAD_DIM, hidden=HIDDEN, eps=LN_EPS)
    qkv_w, m_slab, v_slab, cls_w = p["qkv_w"], p["m_slab"], p["v_slab"], p["cls_w"]
    return pl.pallas_call(
        kernel,
        out_shape=jax.ShapeDtypeStruct((B, S, LANE), jnp.float32),
        grid=(B,),
        in_specs=[
            pl.BlockSpec((1, S, HP), lambda b: (b, 0, 0)),          # activations
            pl.BlockSpec((1, 1, S), lambda b: (b, 0, 0)),           # key mask (O(M))
            pl.BlockSpec(qkv_w.shape, lambda b: (0, 0, 0)),         # fused QKV weights
            pl.BlockSpec(m_slab.shape, lambda b: (0, 0, 0, 0)),     # attn-out / FFN slab
            pl.BlockSpec(v_slab.shape, lambda b: (0, 0)),           # all vector params
            pl.BlockSpec(cls_w.shape, lambda b: (0, 0)),            # classifier weight
        ],
        out_specs=pl.BlockSpec((1, S, LANE), lambda b: (b, 0, 0)),
        compiler_params=pltpu.CompilerParams(dimension_semantics=("parallel",)),
    )(x_pad, key_mask, qkv_w, m_slab, v_slab, cls_w)


# --------------------------- parameters / forward -----------------------------
def init_params(key):
    keys = iter(jax.random.split(key, 64))

    def w(shape):
        return jax.random.normal(next(keys), shape, jnp.float32) * 0.02

    word_emb = w((VOCAB_SIZE, HIDDEN))
    pos_emb = w((MAX_POS, HIDDEN))
    type_emb = w((TYPE_VOCAB, HIDDEN))

    # fused, head-slot-aligned QKV weight: [L, HP, 3*nh*DHP]
    qkv_w = jnp.zeros((NUM_LAYERS, HP, 3 * NUM_HEADS * DHP), jnp.float32)
    # matrix slab: [L, nh+2, 128, 128] = [attn_out per head, ffn1, ffn2]
    m_slab = jnp.zeros((NUM_LAYERS, M_CHUNKS, HP, HP), jnp.float32)
    # vector slab: all LayerNorm gammas/betas and biases, one row each
    v_slab = jnp.zeros((V_ROWS, LANE), jnp.float32)
    v_slab = v_slab.at[EMB_G, :HIDDEN].set(1.0)          # embedding LN gamma

    for l in range(NUM_LAYERS):
        wq, wk, wv = w((HIDDEN, HIDDEN)), w((HIDDEN, HIDDEN)), w((HIDDEN, HIDDEN))
        wo = w((HIDDEN, HIDDEN))
        w1 = w((HIDDEN, INTERMEDIATE))
        w2 = w((INTERMEDIATE, HIDDEN))
        for hd in range(NUM_HEADS):
            cs = hd * HEAD_DIM
            for grp, wm in enumerate((wq, wk, wv)):
                off = (grp * NUM_HEADS + hd) * DHP
                qkv_w = qkv_w.at[l, :HIDDEN, off:off + HEAD_DIM].set(
                    wm[:, cs:cs + HEAD_DIM])
            m_slab = m_slab.at[l, hd, :HEAD_DIM, :HIDDEN].set(wo[cs:cs + HEAD_DIM, :])
        m_slab = m_slab.at[l, NUM_HEADS, :HIDDEN, :INTERMEDIATE].set(w1)
        m_slab = m_slab.at[l, NUM_HEADS + 1, :INTERMEDIATE, :HIDDEN].set(w2)
        vb = VB0 + l * VPL
        v_slab = v_slab.at[vb + 3 * NUM_HEADS + 1, :HIDDEN].set(1.0)   # attn LN gamma
        v_slab = v_slab.at[vb + 3 * NUM_HEADS + 5, :HIDDEN].set(1.0)   # out  LN gamma
        # biases / LN betas stay zero (synthetic init), matching the previous version

    cls_w = jnp.zeros((HP, LANE), jnp.float32).at[:HIDDEN, :NUM_LABELS].set(
        w((HIDDEN, NUM_LABELS)))

    return {"word_emb": word_emb, "pos_emb": pos_emb, "type_emb": type_emb,
            "qkv_w": qkv_w, "m_slab": m_slab, "v_slab": v_slab, "cls_w": cls_w}


def ner_forward(params, input_ids, attention_mask):
    B, S = input_ids.shape
    if S > MAX_POS:
        raise ValueError(f"sequence length {S} exceeds MAX_POS={MAX_POS}")

    # embeddings (data-dependent gather stays in plain JAX glue)
    positions = jnp.arange(S)
    x = (params["word_emb"][input_ids]
         + params["pos_emb"][positions][None, :, :]
         + params["type_emb"][0][None, None, :])                  # token_type_ids = 0
    x_pad = jnp.zeros((B, S, HP), jnp.float32).at[:, :, :HIDDEN].set(x)

    # O(B*S) additive key mask (0 valid / -10000 padded); broadcast in-kernel.
    key_mask = jnp.where(attention_mask.astype(jnp.bool_), 0.0, -10000.0)
    key_mask = key_mask.astype(jnp.float32).reshape(B, 1, S)

    logits_padded = encoder_forward(x_pad, key_mask, params)      # [B, S, 128]
    return logits_padded[:, :, :NUM_LABELS]


if __name__ == "__main__":
    key = jax.random.PRNGKey(0)
    pkey, ikey = jax.random.split(key)
    params = init_params(pkey)

    B, S = 2, 8
    input_ids = jax.random.randint(ikey, (B, S), 0, VOCAB_SIZE, dtype=jnp.int32)
    attention_mask = jnp.ones((B, S), dtype=jnp.int32).at[:, -2:].set(0)  # last 2 = padding

    logits = jax.jit(ner_forward)(params, input_ids, attention_mask)
    jax.block_until_ready(logits)

    assert logits.shape == (B, S, NUM_LABELS)
    assert jnp.all(jnp.isfinite(logits))
    print("KERNEL_OK")
</pallas_src>

<mosaic_0001>
module attributes {stable_mosaic.version = 11 : i64} {
  func.func @_encoder_kernel(%arg0: i32, %arg1: memref<1x8x128xf32, #tpu.memory_space<vmem>>, %arg2: memref<1x1x8xf32, #tpu.memory_space<vmem>>, %arg3: memref<2x128x768xf32, #tpu.memory_space<vmem>>, %arg4: memref<2x4x128x128xf32, #tpu.memory_space<vmem>>, %arg5: memref<32x128xf32, #tpu.memory_space<vmem>>, %arg6: memref<128x128xf32, #tpu.memory_space<vmem>>, %arg7: memref<1x8x128xf32, #tpu.memory_space<vmem>>) attributes {dimension_semantics = [#tpu.dimension_semantics<parallel>], iteration_bounds = array<i64: 2>, scalar_prefetch = 0 : i64, scratch_operands = 0 : i64, tpu.core_type = #tpu.core_type<tc>, window_params = [{transform_indices = @transform_0, window_bounds = array<i64: 1, 8, 128>}, {transform_indices = @transform_1, window_bounds = array<i64: 1, 1, 8>}, {pipeline_mode = #tpu.pipeline_mode<synchronous>, transform_indices = @transform_2, window_bounds = array<i64: 2, 128, 768>}, {pipeline_mode = #tpu.pipeline_mode<synchronous>, transform_indices = @transform_3, window_bounds = array<i64: 2, 4, 128, 128>}, {pipeline_mode = #tpu.pipeline_mode<synchronous>, transform_indices = @transform_4, window_bounds = array<i64: 32, 128>}, {pipeline_mode = #tpu.pipeline_mode<synchronous>, transform_indices = @transform_5, window_bounds = array<i64: 128, 128>}, {transform_indices = @transform_6, window_bounds = array<i64: 1, 8, 128>}]} {
    %c0 = arith.constant 0 : index
    %c0_0 = arith.constant 0 : index
    %c0_1 = arith.constant 0 : index
    %0 = vector.load %arg1[%c0, %c0_0, %c0_1] : memref<1x8x128xf32, #tpu.memory_space<vmem>>, vector<1x8x128xf32>
    %1 = vector.shape_cast %0 : vector<1x8x128xf32> to vector<8x128xf32>
    %c0_2 = arith.constant 0 : index
    %c0_3 = arith.constant 0 : index
    %2 = vector.load %arg5[%c0_2, %c0_3] : memref<32x128xf32, #tpu.memory_space<vmem>>, vector<1x128xf32>
    %c1 = arith.constant 1 : index
    %c0_4 = arith.constant 0 : index
    %3 = vector.load %arg5[%c1, %c0_4] : memref<32x128xf32, #tpu.memory_space<vmem>>, vector<1x128xf32>
    %cst = arith.constant dense<0.000000e+00> : vector<8xf32>
    %4 = vector.multi_reduction <add>, %1, %cst [1] : vector<8x128xf32> to vector<8xf32>
    %5 = vector.shape_cast %4 : vector<8xf32> to vector<8x1xf32>
    %cst_5 = arith.constant 3.125000e-02 : f32
    %6 = vector.broadcast %cst_5 : f32 to vector<8x1xf32>
    %7 = arith.mulf %5, %6 : vector<8x1xf32>
    %8 = arith.mulf %1, %1 : vector<8x128xf32>
    %cst_6 = arith.constant dense<0.000000e+00> : vector<8xf32>
    %9 = vector.multi_reduction <add>, %8, %cst_6 [1] : vector<8x128xf32> to vector<8xf32>
    %10 = vector.shape_cast %9 : vector<8xf32> to vector<8x1xf32>
    %cst_7 = arith.constant 3.125000e-02 : f32
    %11 = vector.broadcast %cst_7 : f32 to vector<8x1xf32>
    %12 = arith.mulf %10, %11 : vector<8x1xf32>
    %13 = arith.mulf %7, %7 : vector<8x1xf32>
    %14 = arith.subf %12, %13 : vector<8x1xf32>
    %cst_8 = arith.constant 0.000000e+00 : f32
    %15 = vector.broadcast %cst_8 : f32 to vector<8x1xf32>
    %16 = arith.maximumf %14, %15 : vector<8x1xf32>
    %cst_9 = arith.constant 9.99999996E-13 : f32
    %17 = vector.broadcast %cst_9 : f32 to vector<8x1xf32>
    %18 = arith.addf %16, %17 : vector<8x1xf32>
    %19 = math.rsqrt %18 : vector<8x1xf32>
    %20 = vector.broadcast %7 : vector<8x1xf32> to vector<8x128xf32>
    %21 = arith.subf %1, %20 : vector<8x128xf32>
    %22 = vector.broadcast %19 : vector<8x1xf32> to vector<8x128xf32>
    %23 = arith.mulf %21, %22 : vector<8x128xf32>
    %24 = vector.broadcast %2 : vector<1x128xf32> to vector<8x128xf32>
    %25 = arith.mulf %23, %24 : vector<8x128xf32>
    %26 = vector.broadcast %3 : vector<1x128xf32> to vector<8x128xf32>
    %27 = arith.addf %25, %26 : vector<8x128xf32>
    %c0_10 = arith.constant 0 : index
    %c0_11 = arith.constant 0 : index
    %c0_12 = arith.constant 0 : index
    %28 = vector.load %arg2[%c0_10, %c0_11, %c0_12] : memref<1x1x8xf32, #tpu.memory_space<vmem>>, vector<1x1x8xf32>
    %29 = vector.shape_cast %28 : vector<1x1x8xf32> to vector<1x8xf32>
    %30 = vector.shape_cast %29 : vector<1x8xf32> to vector<1x8xf32>
    %31 = vector.broadcast %30 : vector<1x8xf32> to vector<8x8xf32>
    %c0_13 = arith.constant 0 : index
    %c0_14 = arith.constant 0 : index
    %c0_15 = arith.constant 0 : index
    %32 = vector.load %arg3[%c0_13, %c0_14, %c0_15] : memref<2x128x768xf32, #tpu.memory_space<vmem>>, vector<1x128x768xf32>
    %33 = vector.shape_cast %32 : vector<1x128x768xf32> to vector<128x768xf32>
    %cst_16 = arith.constant dense<0.000000e+00> : vector<8x768xf32>
    %34 = tpu.matmul %27, %33, %cst_16 {dimension_numbers = #tpu.dot_dimension_numbers<[1], [0], [0], [1], [0, 0, 1, 1], [], []>} : vector<8x128xf32>, vector<128x768xf32>, vector<8x768xf32> -> vector<8x768xf32>
    %35 = vector.extract_strided_slice %34 {offsets = [0, 0], sizes = [8, 128], strides = [1, 1]} : vector<8x768xf32> to vector<8x128xf32>
    %c3 = arith.constant 3 : index
    %c0_17 = arith.constant 0 : index
    %36 = vector.load %arg5[%c3, %c0_17] : memref<32x128xf32, #tpu.memory_space<vmem>>, vector<1x128xf32>
    %37 = vector.broadcast %36 : vector<1x128xf32> to vector<8x128xf32>
    %38 = arith.addf %35, %37 : vector<8x128xf32>
    %39 = vector.extract_strided_slice %34 {offsets = [0, 256], sizes = [8, 128], strides = [1, 1]} : vector<8x768xf32> to vector<8x128xf32>
    %c5 = arith.constant 5 : index
    %c0_18 = arith.constant 0 : index
    %40 = vector.load %arg5[%c5, %c0_18] : memref<32x128xf32, #tpu.memory_space<vmem>>, vector<1x128xf32>
    %41 = vector.broadcast %40 : vector<1x128xf32> to vector<8x128xf32>
    %42 = arith.addf %39, %41 : vector<8x128xf32>
    %43 = vector.extract_strided_slice %34 {offsets = [0, 512], sizes = [8, 128], strides = [1, 1]} : vector<8x768xf32> to vector<8x128xf32>
    %c7 = arith.constant 7 : index
    %c0_19 = arith.constant 0 : index
    %44 = vector.load %arg5[%c7, %c0_19] : memref<32x128xf32, #tpu.memory_space<vmem>>, vector<1x128xf32>
    %45 = vector.broadcast %44 : vector<1x128xf32> to vector<8x128xf32>
    %46 = arith.addf %43, %45 : vector<8x128xf32>
    %cst_20 = arith.constant dense<0.000000e+00> : vector<8x8xf32>
    %47 = tpu.matmul %38, %42, %cst_20 {dimension_numbers = #tpu.dot_dimension_numbers<[1], [1], [0], [0], [0, 0, 1, 0], [], []>} : vector<8x128xf32>, vector<8x128xf32>, vector<8x8xf32> -> vector<8x8xf32>
    %cst_21 = arith.constant 2.500000e-01 : f32
    %48 = vector.broadcast %cst_21 : f32 to vector<8x8xf32>
    %49 = arith.mulf %47, %48 : vector<8x8xf32>
    %50 = arith.addf %49, %31 : vector<8x8xf32>
    %cst_22 = arith.constant dense<0xFF800000> : vector<8xf32>
    %51 = vector.multi_reduction <maximumf>, %50, %cst_22 [1] : vector<8x8xf32> to vector<8xf32>
    %52 = vector.shape_cast %51 : vector<8xf32> to vector<8x1xf32>
    %53 = vector.broadcast %52 : vector<8x1xf32> to vector<8x8xf32>
    %54 = arith.subf %50, %53 : vector<8x8xf32>
    %55 = math.exp %54 : vector<8x8xf32>
    %cst_23 = arith.constant dense<0.000000e+00> : vector<8xf32>
    %56 = vector.multi_reduction <add>, %55, %cst_23 [1] : vector<8x8xf32> to vector<8xf32>
    %57 = vector.shape_cast %56 : vector<8xf32> to vector<8x1xf32>
    %58 = tpu.reciprocal %57 {approx = true} : vector<8x1xf32> -> vector<8x1xf32>
    %59 = vector.broadcast %58 : vector<8x1xf32> to vector<8x8xf32>
    %60 = arith.mulf %55, %59 : vector<8x8xf32>
    %cst_24 = arith.constant dense<0.000000e+00> : vector<8x128xf32>
    %61 = tpu.matmul %60, %46, %cst_24 {dimension_numbers = #tpu.dot_dimension_numbers<[1], [0], [0], [1], [0, 0, 1, 1], [], []>} : vector<8x8xf32>, vector<8x128xf32>, vector<8x128xf32> -> vector<8x128xf32>
    %c0_25 = arith.constant 0 : index
    %c0_26 = arith.constant 0 : index
    %c0_27 = arith.constant 0 : index
    %c0_28 = arith.constant 0 : index
    %62 = vector.load %arg4[%c0_25, %c0_26, %c0_27, %c0_28] : memref<2x4x128x128xf32, #tpu.memory_space<vmem>>, vector<1x1x128x128xf32>
    %63 = vector.shape_cast %62 : vector<1x1x128x128xf32> to vector<128x128xf32>
    %cst_29 = arith.constant dense<0.000000e+00> : vector<8x128xf32>
    %64 = tpu.matmul %61, %63, %cst_29 {dimension_numbers = #tpu.dot_dimension_numbers<[1], [0], [0], [1], [0, 0, 1, 1], [], []>} : vector<8x128xf32>, vector<128x128xf32>, vector<8x128xf32> -> vector<8x128xf32>
    %65 = vector.extract_strided_slice %34 {offsets = [0, 128], sizes = [8, 128], strides = [1, 1]} : vector<8x768xf32> to vector<8x128xf32>
    %c4 = arith.constant 4 : index
    %c0_30 = arith.constant 0 : index
    %66 = vector.load %arg5[%c4, %c0_30] : memref<32x128xf32, #tpu.memory_space<vmem>>, vector<1x128xf32>
    %67 = vector.broadcast %66 : vector<1x128xf32> to vector<8x128xf32>
    %68 = arith.addf %65, %67 : vector<8x128xf32>
    %69 = vector.extract_strided_slice %34 {offsets = [0, 384], sizes = [8, 128], strides = [1, 1]} : vector<8x768xf32> to vector<8x128xf32>
    %c6 = arith.constant 6 : index
    %c0_31 = arith.constant 0 : index
    %70 = vector.load %arg5[%c6, %c0_31] : memref<32x128xf32, #tpu.memory_space<vmem>>, vector<1x128xf32>
    %71 = vector.broadcast %70 : vector<1x128xf32> to vector<8x128xf32>
    %72 = arith.addf %69, %71 : vector<8x128xf32>
    %73 = vector.extract_strided_slice %34 {offsets = [0, 640], sizes = [8, 128], strides = [1, 1]} : vector<8x768xf32> to vector<8x128xf32>
    %c8 = arith.constant 8 : index
    %c0_32 = arith.constant 0 : index
    %74 = vector.load %arg5[%c8, %c0_32] : memref<32x128xf32, #tpu.memory_space<vmem>>, vector<1x128xf32>
    %75 = vector.broadcast %74 : vector<1x128xf32> to vector<8x128xf32>
    %76 = arith.addf %73, %75 : vector<8x128xf32>
    %cst_33 = arith.constant dense<0.000000e+00> : vector<8x8xf32>
    %77 = tpu.matmul %68, %72, %cst_33 {dimension_numbers = #tpu.dot_dimension_numbers<[1], [1], [0], [0], [0, 0, 1, 0], [], []>} : vector<8x128xf32>, vector<8x128xf32>, vector<8x8xf32> -> vector<8x8xf32>
    %cst_34 = arith.constant 2.500000e-01 : f32
    %78 = vector.broadcast %cst_34 : f32 to vector<8x8xf32>
    %79 = arith.mulf %77, %78 : vector<8x8xf32>
    %80 = arith.addf %79, %31 : vector<8x8xf32>
    %cst_35 = arith.constant dense<0xFF800000> : vector<8xf32>
    %81 = vector.multi_reduction <maximumf>, %80, %cst_35 [1] : vector<8x8xf32> to vector<8xf32>
    %82 = vector.shape_cast %81 : vector<8xf32> to vector<8x1xf32>
    %83 = vector.broadcast %82 : vector<8x1xf32> to vector<8x8xf32>
    %84 = arith.subf %80, %83 : vector<8x8xf32>
    %85 = math.exp %84 : vector<8x8xf32>
    %cst_36 = arith.constant dense<0.000000e+00> : vector<8xf32>
    %86 = vector.multi_reduction <add>, %85, %cst_36 [1] : vector<8x8xf32> to vector<8xf32>
    %87 = vector.shape_cast %86 : vector<8xf32> to vector<8x1xf32>
    %88 = tpu.reciprocal %87 {approx = true} : vector<8x1xf32> -> vector<8x1xf32>
    %89 = vector.broadcast %88 : vector<8x1xf32> to vector<8x8xf32>
    %90 = arith.mulf %85, %89 : vector<8x8xf32>
    %cst_37 = arith.constant dense<0.000000e+00> : vector<8x128xf32>
    %91 = tpu.matmul %90, %76, %cst_37 {dimension_numbers = #tpu.dot_dimension_numbers<[1], [0], [0], [1], [0, 0, 1, 1], [], []>} : vector<8x8xf32>, vector<8x128xf32>, vector<8x128xf32> -> vector<8x128xf32>
    %c0_38 = arith.constant 0 : index
    %c1_39 = arith.constant 1 : index
    %c0_40 = arith.constant 0 : index
    %c0_41 = arith.constant 0 : index
    %92 = vector.load %arg4[%c0_38, %c1_39, %c0_40, %c0_41] : memref<2x4x128x128xf32, #tpu.memory_space<vmem>>, vector<1x1x128x128xf32>
    %93 = vector.shape_cast %92 : vector<1x1x128x128xf32> to vector<128x128xf32>
    %cst_42 = arith.constant dense<0.000000e+00> : vector<8x128xf32>
    %94 = tpu.matmul %91, %93, %cst_42 {dimension_numbers = #tpu.dot_dimension_numbers<[1], [0], [0], [1], [0, 0, 1, 1], [], []>} : vector<8x128xf32>, vector<128x128xf32>, vector<8x128xf32> -> vector<8x128xf32>
    %95 = arith.addf %64, %94 : vector<8x128xf32>
    %c9 = arith.constant 9 : index
    %c0_43 = arith.constant 0 : index
    %96 = vector.load %arg5[%c9, %c0_43] : memref<32x128xf32, #tpu.memory_space<vmem>>, vector<1x128xf32>
    %97 = vector.broadcast %96 : vector<1x128xf32> to vector<8x128xf32>
    %98 = arith.addf %95, %97 : vector<8x128xf32>
    %99 = arith.addf %98, %27 : vector<8x128xf32>
    %c10 = arith.constant 10 : index
    %c0_44 = arith.constant 0 : index
    %100 = vector.load %arg5[%c10, %c0_44] : memref<32x128xf32, #tpu.memory_space<vmem>>, vector<1x128xf32>
    %c11 = arith.constant 11 : index
    %c0_45 = arith.constant 0 : index
    %101 = vector.load %arg5[%c11, %c0_45] : memref<32x128xf32, #tpu.memory_space<vmem>>, vector<1x128xf32>
    %cst_46 = arith.constant dense<0.000000e+00> : vector<8xf32>
    %102 = vector.multi_reduction <add>, %99, %cst_46 [1] : vector<8x128xf32> to vector<8xf32>
    %103 = vector.shape_cast %102 : vector<8xf32> to vector<8x1xf32>
    %cst_47 = arith.constant 3.125000e-02 : f32
    %104 = vector.broadcast %cst_47 : f32 to vector<8x1xf32>
    %105 = arith.mulf %103, %104 : vector<8x1xf32>
    %106 = arith.mulf %99, %99 : vector<8x128xf32>
    %cst_48 = arith.constant dense<0.000000e+00> : vector<8xf32>
    %107 = vector.multi_reduction <add>, %106, %cst_48 [1] : vector<8x128xf32> to vector<8xf32>
    %108 = vector.shape_cast %107 : vector<8xf32> to vector<8x1xf32>
    %cst_49 = arith.constant 3.125000e-02 : f32
    %109 = vector.broadcast %cst_49 : f32 to vector<8x1xf32>
    %110 = arith.mulf %108, %109 : vector<8x1xf32>
    %111 = arith.mulf %105, %105 : vector<8x1xf32>
    %112 = arith.subf %110, %111 : vector<8x1xf32>
    %cst_50 = arith.constant 0.000000e+00 : f32
    %113 = vector.broadcast %cst_50 : f32 to vector<8x1xf32>
    %114 = arith.maximumf %112, %113 : vector<8x1xf32>
    %cst_51 = arith.constant 9.99999996E-13 : f32
    %115 = vector.broadcast %cst_51 : f32 to vector<8x1xf32>
    %116 = arith.addf %114, %115 : vector<8x1xf32>
    %117 = math.rsqrt %116 : vector<8x1xf32>
    %118 = vector.broadcast %105 : vector<8x1xf32> to vector<8x128xf32>
    %119 = arith.subf %99, %118 : vector<8x128xf32>
    %120 = vector.broadcast %117 : vector<8x1xf32> to vector<8x128xf32>
    %121 = arith.mulf %119, %120 : vector<8x128xf32>
    %122 = vector.broadcast %100 : vector<1x128xf32> to vector<8x128xf32>
    %123 = arith.mulf %121, %122 : vector<8x128xf32>
    %124 = vector.broadcast %101 : vector<1x128xf32> to vector<8x128xf32>
    %125 = arith.addf %123, %124 : vector<8x128xf32>
    %c0_52 = arith.constant 0 : index
    %c2 = arith.constant 2 : index
    %c0_53 = arith.constant 0 : index
    %c0_54 = arith.constant 0 : index
    %126 = vector.load %arg4[%c0_52, %c2, %c0_53, %c0_54] : memref<2x4x128x128xf32, #tpu.memory_space<vmem>>, vector<1x1x128x128xf32>
    %127 = vector.shape_cast %126 : vector<1x1x128x128xf32> to vector<128x128xf32>
    %cst_55 = arith.constant dense<0.000000e+00> : vector<8x128xf32>
    %128 = tpu.matmul %125, %127, %cst_55 {dimension_numbers = #tpu.dot_dimension_numbers<[1], [0], [0], [1], [0, 0, 1, 1], [], []>} : vector<8x128xf32>, vector<128x128xf32>, vector<8x128xf32> -> vector<8x128xf32>
    %c12 = arith.constant 12 : index
    %c0_56 = arith.constant 0 : index
    %129 = vector.load %arg5[%c12, %c0_56] : memref<32x128xf32, #tpu.memory_space<vmem>>, vector<1x128xf32>
    %130 = vector.broadcast %129 : vector<1x128xf32> to vector<8x128xf32>
    %131 = arith.addf %128, %130 : vector<8x128xf32>
    %cst_57 = arith.constant 5.000000e-01 : f32
    %132 = vector.broadcast %cst_57 : f32 to vector<8x128xf32>
    %133 = arith.mulf %132, %131 : vector<8x128xf32>
    %cst_58 = arith.constant 4.471500e-02 : f32
    %134 = vector.broadcast %cst_58 : f32 to vector<8x128xf32>
    %135 = arith.mulf %134, %131 : vector<8x128xf32>
    %136 = arith.mulf %135, %131 : vector<8x128xf32>
    %137 = arith.mulf %136, %131 : vector<8x128xf32>
    %138 = arith.addf %131, %137 : vector<8x128xf32>
    %cst_59 = arith.constant 0.797884583 : f32
    %139 = vector.broadcast %cst_59 : f32 to vector<8x128xf32>
    %140 = arith.mulf %139, %138 : vector<8x128xf32>
    %141 = math.tanh %140 : vector<8x128xf32>
    %cst_60 = arith.constant 1.000000e+00 : f32
    %142 = vector.broadcast %cst_60 : f32 to vector<8x128xf32>
    %143 = arith.addf %142, %141 : vector<8x128xf32>
    %144 = arith.mulf %133, %143 : vector<8x128xf32>
    %c0_61 = arith.constant 0 : index
    %c3_62 = arith.constant 3 : index
    %c0_63 = arith.constant 0 : index
    %c0_64 = arith.constant 0 : index
    %145 = vector.load %arg4[%c0_61, %c3_62, %c0_63, %c0_64] : memref<2x4x128x128xf32, #tpu.memory_space<vmem>>, vector<1x1x128x128xf32>
    %146 = vector.shape_cast %145 : vector<1x1x128x128xf32> to vector<128x128xf32>
    %cst_65 = arith.constant dense<0.000000e+00> : vector<8x128xf32>
    %147 = tpu.matmul %144, %146, %cst_65 {dimension_numbers = #tpu.dot_dimension_numbers<[1], [0], [0], [1], [0, 0, 1, 1], [], []>} : vector<8x128xf32>, vector<128x128xf32>, vector<8x128xf32> -> vector<8x128xf32>
    %c13 = arith.constant 13 : index
    %c0_66 = arith.constant 0 : index
    %148 = vector.load %arg5[%c13, %c0_66] : memref<32x128xf32, #tpu.memory_space<vmem>>, vector<1x128xf32>
    %149 = vector.broadcast %148 : vector<1x128xf32> to vector<8x128xf32>
    %150 = arith.addf %147, %149 : vector<8x128xf32>
    %151 = arith.addf %150, %125 : vector<8x128xf32>
    %c14 = arith.constant 14 : index
    %c0_67 = arith.constant 0 : index
    %152 = vector.load %arg5[%c14, %c0_67] : memref<32x128xf32, #tpu.memory_space<vmem>>, vector<1x128xf32>
    %c15 = arith.constant 15 : index
    %c0_68 = arith.constant 0 : index
    %153 = vector.load %arg5[%c15, %c0_68] : memref<32x128xf32, #tpu.memory_space<vmem>>, vector<1x128xf32>
    %cst_69 = arith.constant dense<0.000000e+00> : vector<8xf32>
    %154 = vector.multi_reduction <add>, %151, %cst_69 [1] : vector<8x128xf32> to vector<8xf32>
    %155 = vector.shape_cast %154 : vector<8xf32> to vector<8x1xf32>
    %cst_70 = arith.constant 3.125000e-02 : f32
    %156 = vector.broadcast %cst_70 : f32 to vector<8x1xf32>
    %157 = arith.mulf %155, %156 : vector<8x1xf32>
    %158 = arith.mulf %151, %151 : vector<8x128xf32>
    %cst_71 = arith.constant dense<0.000000e+00> : vector<8xf32>
    %159 = vector.multi_reduction <add>, %158, %cst_71 [1] : vector<8x128xf32> to vector<8xf32>
    %160 = vector.shape_cast %159 : vector<8xf32> to vector<8x1xf32>
    %cst_72 = arith.constant 3.125000e-02 : f32
    %161 = vector.broadcast %cst_72 : f32 to vector<8x1xf32>
    %162 = arith.mulf %160, %161 : vector<8x1xf32>
    %163 = arith.mulf %157, %157 : vector<8x1xf32>
    %164 = arith.subf %162, %163 : vector<8x1xf32>
    %cst_73 = arith.constant 0.000000e+00 : f32
    %165 = vector.broadcast %cst_73 : f32 to vector<8x1xf32>
    %166 = arith.maximumf %164, %165 : vector<8x1xf32>
    %cst_74 = arith.constant 9.99999996E-13 : f32
    %167 = vector.broadcast %cst_74 : f32 to vector<8x1xf32>
    %168 = arith.addf %166, %167 : vector<8x1xf32>
    %169 = math.rsqrt %168 : vector<8x1xf32>
    %170 = vector.broadcast %157 : vector<8x1xf32> to vector<8x128xf32>
    %171 = arith.subf %151, %170 : vector<8x128xf32>
    %172 = vector.broadcast %169 : vector<8x1xf32> to vector<8x128xf32>
    %173 = arith.mulf %171, %172 : vector<8x128xf32>
    %174 = vector.broadcast %152 : vector<1x128xf32> to vector<8x128xf32>
    %175 = arith.mulf %173, %174 : vector<8x128xf32>
    %176 = vector.broadcast %153 : vector<1x128xf32> to vector<8x128xf32>
    %177 = arith.addf %175, %176 : vector<8x128xf32>
    %c1_75 = arith.constant 1 : index
    %c0_76 = arith.constant 0 : index
    %c0_77 = arith.constant 0 : index
    %178 = vector.load %arg3[%c1_75, %c0_76, %c0_77] : memref<2x128x768xf32, #tpu.memory_space<vmem>>, vector<1x128x768xf32>
    %179 = vector.shape_cast %178 : vector<1x128x768xf32> to vector<128x768xf32>
    %cst_78 = arith.constant dense<0.000000e+00> : vector<8x768xf32>
    %180 = tpu.matmul %177, %179, %cst_78 {dimension_numbers = #tpu.dot_dimension_numbers<[1], [0], [0], [1], [0, 0, 1, 1], [], []>} : vector<8x128xf32>, vector<128x768xf32>, vector<8x768xf32> -> vector<8x768xf32>
    %181 = vector.extract_strided_slice %180 {offsets = [0, 0], sizes = [8, 128], strides = [1, 1]} : vector<8x768xf32> to vector<8x128xf32>
    %c16 = arith.constant 16 : index
    %c0_79 = arith.constant 0 : index
    %182 = vector.load %arg5[%c16, %c0_79] : memref<32x128xf32, #tpu.memory_space<vmem>>, vector<1x128xf32>
    %183 = vector.broadcast %182 : vector<1x128xf32> to vector<8x128xf32>
    %184 = arith.addf %181, %183 : vector<8x128xf32>
    %185 = vector.extract_strided_slice %180 {offsets = [0, 256], sizes = [8, 128], strides = [1, 1]} : vector<8x768xf32> to vector<8x128xf32>
    %c18 = arith.constant 18 : index
    %c0_80 = arith.constant 0 : index
    %186 = vector.load %arg5[%c18, %c0_80] : memref<32x128xf32, #tpu.memory_space<vmem>>, vector<1x128xf32>
    %187 = vector.broadcast %186 : vector<1x128xf32> to vector<8x128xf32>
    %188 = arith.addf %185, %187 : vector<8x128xf32>
    %189 = vector.extract_strided_slice %180 {offsets = [0, 512], sizes = [8, 128], strides = [1, 1]} : vector<8x768xf32> to vector<8x128xf32>
    %c20 = arith.constant 20 : index
    %c0_81 = arith.constant 0 : index
    %190 = vector.load %arg5[%c20, %c0_81] : memref<32x128xf32, #tpu.memory_space<vmem>>, vector<1x128xf32>
    %191 = vector.broadcast %190 : vector<1x128xf32> to vector<8x128xf32>
    %192 = arith.addf %189, %191 : vector<8x128xf32>
    %cst_82 = arith.constant dense<0.000000e+00> : vector<8x8xf32>
    %193 = tpu.matmul %184, %188, %cst_82 {dimension_numbers = #tpu.dot_dimension_numbers<[1], [1], [0], [0], [0, 0, 1, 0], [], []>} : vector<8x128xf32>, vector<8x128xf32>, vector<8x8xf32> -> vector<8x8xf32>
    %cst_83 = arith.constant 2.500000e-01 : f32
    %194 = vector.broadcast %cst_83 : f32 to vector<8x8xf32>
    %195 = arith.mulf %193, %194 : vector<8x8xf32>
    %196 = arith.addf %195, %31 : vector<8x8xf32>
    %cst_84 = arith.constant dense<0xFF800000> : vector<8xf32>
    %197 = vector.multi_reduction <maximumf>, %196, %cst_84 [1] : vector<8x8xf32> to vector<8xf32>
    %198 = vector.shape_cast %197 : vector<8xf32> to vector<8x1xf32>
    %199 = vector.broadcast %198 : vector<8x1xf32> to vector<8x8xf32>
    %200 = arith.subf %196, %199 : vector<8x8xf32>
    %201 = math.exp %200 : vector<8x8xf32>
    %cst_85 = arith.constant dense<0.000000e+00> : vector<8xf32>
    %202 = vector.multi_reduction <add>, %201, %cst_85 [1] : vector<8x8xf32> to vector<8xf32>
    %203 = vector.shape_cast %202 : vector<8xf32> to vector<8x1xf32>
    %204 = tpu.reciprocal %203 {approx = true} : vector<8x1xf32> -> vector<8x1xf32>
    %205 = vector.broadcast %204 : vector<8x1xf32> to vector<8x8xf32>
    %206 = arith.mulf %201, %205 : vector<8x8xf32>
    %cst_86 = arith.constant dense<0.000000e+00> : vector<8x128xf32>
    %207 = tpu.matmul %206, %192, %cst_86 {dimension_numbers = #tpu.dot_dimension_numbers<[1], [0], [0], [1], [0, 0, 1, 1], [], []>} : vector<8x8xf32>, vector<8x128xf32>, vector<8x128xf32> -> vector<8x128xf32>
    %c1_87 = arith.constant 1 : index
    %c0_88 = arith.constant 0 : index
    %c0_89 = arith.constant 0 : index
    %c0_90 = arith.constant 0 : index
    %208 = vector.load %arg4[%c1_87, %c0_88, %c0_89, %c0_90] : memref<2x4x128x128xf32, #tpu.memory_space<vmem>>, vector<1x1x128x128xf32>
    %209 = vector.shape_cast %208 : vector<1x1x128x128xf32> to vector<128x128xf32>
    %cst_91 = arith.constant dense<0.000000e+00> : vector<8x128xf32>
    %210 = tpu.matmul %207, %209, %cst_91 {dimension_numbers = #tpu.dot_dimension_numbers<[1], [0], [0], [1], [0, 0, 1, 1], [], []>} : vector<8x128xf32>, vector<128x128xf32>, vector<8x128xf32> -> vector<8x128xf32>
    %211 = vector.extract_strided_slice %180 {offsets = [0, 128], sizes = [8, 128], strides = [1, 1]} : vector<8x768xf32> to vector<8x128xf32>
    %c17 = arith.constant 17 : index
    %c0_92 = arith.constant 0 : index
    %212 = vector.load %arg5[%c17, %c0_92] : memref<32x128xf32, #tpu.memory_space<vmem>>, vector<1x128xf32>
    %213 = vector.broadcast %212 : vector<1x128xf32> to vector<8x128xf32>
    %214 = arith.addf %211, %213 : vector<8x128xf32>
    %215 = vector.extract_strided_slice %180 {offsets = [0, 384], sizes = [8, 128], strides = [1, 1]} : vector<8x768xf32> to vector<8x128xf32>
    %c19 = arith.constant 19 : index
    %c0_93 = arith.constant 0 : index
    %216 = vector.load %arg5[%c19, %c0_93] : memref<32x128xf32, #tpu.memory_space<vmem>>, vector<1x128xf32>
    %217 = vector.broadcast %216 : vector<1x128xf32> to vector<8x128xf32>
    %218 = arith.addf %215, %217 : vector<8x128xf32>
    %219 = vector.extract_strided_slice %180 {offsets = [0, 640], sizes = [8, 128], strides = [1, 1]} : vector<8x768xf32> to vector<8x128xf32>
    %c21 = arith.constant 21 : index
    %c0_94 = arith.constant 0 : index
    %220 = vector.load %arg5[%c21, %c0_94] : memref<32x128xf32, #tpu.memory_space<vmem>>, vector<1x128xf32>
    %221 = vector.broadcast %220 : vector<1x128xf32> to vector<8x128xf32>
    %222 = arith.addf %219, %221 : vector<8x128xf32>
    %cst_95 = arith.constant dense<0.000000e+00> : vector<8x8xf32>
    %223 = tpu.matmul %214, %218, %cst_95 {dimension_numbers = #tpu.dot_dimension_numbers<[1], [1], [0], [0], [0, 0, 1, 0], [], []>} : vector<8x128xf32>, vector<8x128xf32>, vector<8x8xf32> -> vector<8x8xf32>
    %cst_96 = arith.constant 2.500000e-01 : f32
    %224 = vector.broadcast %cst_96 : f32 to vector<8x8xf32>
    %225 = arith.mulf %223, %224 : vector<8x8xf32>
    %226 = arith.addf %225, %31 : vector<8x8xf32>
    %cst_97 = arith.constant dense<0xFF800000> : vector<8xf32>
    %227 = vector.multi_reduction <maximumf>, %226, %cst_97 [1] : vector<8x8xf32> to vector<8xf32>
    %228 = vector.shape_cast %227 : vector<8xf32> to vector<8x1xf32>
    %229 = vector.broadcast %228 : vector<8x1xf32> to vector<8x8xf32>
    %230 = arith.subf %226, %229 : vector<8x8xf32>
    %231 = math.exp %230 : vector<8x8xf32>
    %cst_98 = arith.constant dense<0.000000e+00> : vector<8xf32>
    %232 = vector.multi_reduction <add>, %231, %cst_98 [1] : vector<8x8xf32> to vector<8xf32>
    %233 = vector.shape_cast %232 : vector<8xf32> to vector<8x1xf32>
    %234 = tpu.reciprocal %233 {approx = true} : vector<8x1xf32> -> vector<8x1xf32>
    %235 = vector.broadcast %234 : vector<8x1xf32> to vector<8x8xf32>
    %236 = arith.mulf %231, %235 : vector<8x8xf32>
    %cst_99 = arith.constant dense<0.000000e+00> : vector<8x128xf32>
    %237 = tpu.matmul %236, %222, %cst_99 {dimension_numbers = #tpu.dot_dimension_numbers<[1], [0], [0], [1], [0, 0, 1, 1], [], []>} : vector<8x8xf32>, vector<8x128xf32>, vector<8x128xf32> -> vector<8x128xf32>
    %c1_100 = arith.constant 1 : index
    %c1_101 = arith.constant 1 : index
    %c0_102 = arith.constant 0 : index
    %c0_103 = arith.constant 0 : index
    %238 = vector.load %arg4[%c1_100, %c1_101, %c0_102, %c0_103] : memref<2x4x128x128xf32, #tpu.memory_space<vmem>>, vector<1x1x128x128xf32>
    %239 = vector.shape_cast %238 : vector<1x1x128x128xf32> to vector<128x128xf32>
    %cst_104 = arith.constant dense<0.000000e+00> : vector<8x128xf32>
    %240 = tpu.matmul %237, %239, %cst_104 {dimension_numbers = #tpu.dot_dimension_numbers<[1], [0], [0], [1], [0, 0, 1, 1], [], []>} : vector<8x128xf32>, vector<128x128xf32>, vector<8x128xf32> -> vector<8x128xf32>
    %241 = arith.addf %210, %240 : vector<8x128xf32>
    %c22 = arith.constant 22 : index
    %c0_105 = arith.constant 0 : index
    %242 = vector.load %arg5[%c22, %c0_105] : memref<32x128xf32, #tpu.memory_space<vmem>>, vector<1x128xf32>
    %243 = vector.broadcast %242 : vector<1x128xf32> to vector<8x128xf32>
    %244 = arith.addf %241, %243 : vector<8x128xf32>
    %245 = arith.addf %244, %177 : vector<8x128xf32>
    %c23 = arith.constant 23 : index
    %c0_106 = arith.constant 0 : index
    %246 = vector.load %arg5[%c23, %c0_106] : memref<32x128xf32, #tpu.memory_space<vmem>>, vector<1x128xf32>
    %c24 = arith.constant 24 : index
    %c0_107 = arith.constant 0 : index
    %247 = vector.load %arg5[%c24, %c0_107] : memref<32x128xf32, #tpu.memory_space<vmem>>, vector<1x128xf32>
    %cst_108 = arith.constant dense<0.000000e+00> : vector<8xf32>
    %248 = vector.multi_reduction <add>, %245, %cst_108 [1] : vector<8x128xf32> to vector<8xf32>
    %249 = vector.shape_cast %248 : vector<8xf32> to vector<8x1xf32>
    %cst_109 = arith.constant 3.125000e-02 : f32
    %250 = vector.broadcast %cst_109 : f32 to vector<8x1xf32>
    %251 = arith.mulf %249, %250 : vector<8x1xf32>
    %252 = arith.mulf %245, %245 : vector<8x128xf32>
    %cst_110 = arith.constant dense<0.000000e+00> : vector<8xf32>
    %253 = vector.multi_reduction <add>, %252, %cst_110 [1] : vector<8x128xf32> to vector<8xf32>
    %254 = vector.shape_cast %253 : vector<8xf32> to vector<8x1xf32>
    %cst_111 = arith.constant 3.125000e-02 : f32
    %255 = vector.broadcast %cst_111 : f32 to vector<8x1xf32>
    %256 = arith.mulf %254, %255 : vector<8x1xf32>
    %257 = arith.mulf %251, %251 : vector<8x1xf32>
    %258 = arith.subf %256, %257 : vector<8x1xf32>
    %cst_112 = arith.constant 0.000000e+00 : f32
    %259 = vector.broadcast %cst_112 : f32 to vector<8x1xf32>
    %260 = arith.maximumf %258, %259 : vector<8x1xf32>
    %cst_113 = arith.constant 9.99999996E-13 : f32
    %261 = vector.broadcast %cst_113 : f32 to vector<8x1xf32>
    %262 = arith.addf %260, %261 : vector<8x1xf32>
    %263 = math.rsqrt %262 : vector<8x1xf32>
    %264 = vector.broadcast %251 : vector<8x1xf32> to vector<8x128xf32>
    %265 = arith.subf %245, %264 : vector<8x128xf32>
    %266 = vector.broadcast %263 : vector<8x1xf32> to vector<8x128xf32>
    %267 = arith.mulf %265, %266 : vector<8x128xf32>
    %268 = vector.broadcast %246 : vector<1x128xf32> to vector<8x128xf32>
    %269 = arith.mulf %267, %268 : vector<8x128xf32>
    %270 = vector.broadcast %247 : vector<1x128xf32> to vector<8x128xf32>
    %271 = arith.addf %269, %270 : vector<8x128xf32>
    %c1_114 = arith.constant 1 : index
    %c2_115 = arith.constant 2 : index
    %c0_116 = arith.constant 0 : index
    %c0_117 = arith.constant 0 : index
    %272 = vector.load %arg4[%c1_114, %c2_115, %c0_116, %c0_117] : memref<2x4x128x128xf32, #tpu.memory_space<vmem>>, vector<1x1x128x128xf32>
    %273 = vector.shape_cast %272 : vector<1x1x128x128xf32> to vector<128x128xf32>
    %cst_118 = arith.constant dense<0.000000e+00> : vector<8x128xf32>
    %274 = tpu.matmul %271, %273, %cst_118 {dimension_numbers = #tpu.dot_dimension_numbers<[1], [0], [0], [1], [0, 0, 1, 1], [], []>} : vector<8x128xf32>, vector<128x128xf32>, vector<8x128xf32> -> vector<8x128xf32>
    %c25 = arith.constant 25 : index
    %c0_119 = arith.constant 0 : index
    %275 = vector.load %arg5[%c25, %c0_119] : memref<32x128xf32, #tpu.memory_space<vmem>>, vector<1x128xf32>
    %276 = vector.broadcast %275 : vector<1x128xf32> to vector<8x128xf32>
    %277 = arith.addf %274, %276 : vector<8x128xf32>
    %cst_120 = arith.constant 5.000000e-01 : f32
    %278 = vector.broadcast %cst_120 : f32 to vector<8x128xf32>
    %279 = arith.mulf %278, %277 : vector<8x128xf32>
    %cst_121 = arith.constant 4.471500e-02 : f32
    %280 = vector.broadcast %cst_121 : f32 to vector<8x128xf32>
    %281 = arith.mulf %280, %277 : vector<8x128xf32>
    %282 = arith.mulf %281, %277 : vector<8x128xf32>
    %283 = arith.mulf %282, %277 : vector<8x128xf32>
    %284 = arith.addf %277, %283 : vector<8x128xf32>
    %cst_122 = arith.constant 0.797884583 : f32
    %285 = vector.broadcast %cst_122 : f32 to vector<8x128xf32>
    %286 = arith.mulf %285, %284 : vector<8x128xf32>
    %287 = math.tanh %286 : vector<8x128xf32>
    %cst_123 = arith.constant 1.000000e+00 : f32
    %288 = vector.broadcast %cst_123 : f32 to vector<8x128xf32>
    %289 = arith.addf %288, %287 : vector<8x128xf32>
    %290 = arith.mulf %279, %289 : vector<8x128xf32>
    %c1_124 = arith.constant 1 : index
    %c3_125 = arith.constant 3 : index
    %c0_126 = arith.constant 0 : index
    %c0_127 = arith.constant 0 : index
    %291 = vector.load %arg4[%c1_124, %c3_125, %c0_126, %c0_127] : memref<2x4x128x128xf32, #tpu.memory_space<vmem>>, vector<1x1x128x128xf32>
    %292 = vector.shape_cast %291 : vector<1x1x128x128xf32> to vector<128x128xf32>
    %cst_128 = arith.constant dense<0.000000e+00> : vector<8x128xf32>
    %293 = tpu.matmul %290, %292, %cst_128 {dimension_numbers = #tpu.dot_dimension_numbers<[1], [0], [0], [1], [0, 0, 1, 1], [], []>} : vector<8x128xf32>, vector<128x128xf32>, vector<8x128xf32> -> vector<8x128xf32>
    %c26 = arith.constant 26 : index
    %c0_129 = arith.constant 0 : index
    %294 = vector.load %arg5[%c26, %c0_129] : memref<32x128xf32, #tpu.memory_space<vmem>>, vector<1x128xf32>
    %295 = vector.broadcast %294 : vector<1x128xf32> to vector<8x128xf32>
    %296 = arith.addf %293, %295 : vector<8x128xf32>
    %297 = arith.addf %296, %271 : vector<8x128xf32>
    %c27 = arith.constant 27 : index
    %c0_130 = arith.constant 0 : index
    %298 = vector.load %arg5[%c27, %c0_130] : memref<32x128xf32, #tpu.memory_space<vmem>>, vector<1x128xf32>
    %c28 = arith.constant 28 : index
    %c0_131 = arith.constant 0 : index
    %299 = vector.load %arg5[%c28, %c0_131] : memref<32x128xf32, #tpu.memory_space<vmem>>, vector<1x128xf32>
    %cst_132 = arith.constant dense<0.000000e+00> : vector<8xf32>
    %300 = vector.multi_reduction <add>, %297, %cst_132 [1] : vector<8x128xf32> to vector<8xf32>
    %301 = vector.shape_cast %300 : vector<8xf32> to vector<8x1xf32>
    %cst_133 = arith.constant 3.125000e-02 : f32
    %302 = vector.broadcast %cst_133 : f32 to vector<8x1xf32>
    %303 = arith.mulf %301, %302 : vector<8x1xf32>
    %304 = arith.mulf %297, %297 : vector<8x128xf32>
    %cst_134 = arith.constant dense<0.000000e+00> : vector<8xf32>
    %305 = vector.multi_reduction <add>, %304, %cst_134 [1] : vector<8x128xf32> to vector<8xf32>
    %306 = vector.shape_cast %305 : vector<8xf32> to vector<8x1xf32>
    %cst_135 = arith.constant 3.125000e-02 : f32
    %307 = vector.broadcast %cst_135 : f32 to vector<8x1xf32>
    %308 = arith.mulf %306, %307 : vector<8x1xf32>
    %309 = arith.mulf %303, %303 : vector<8x1xf32>
    %310 = arith.subf %308, %309 : vector<8x1xf32>
    %cst_136 = arith.constant 0.000000e+00 : f32
    %311 = vector.broadcast %cst_136 : f32 to vector<8x1xf32>
    %312 = arith.maximumf %310, %311 : vector<8x1xf32>
    %cst_137 = arith.constant 9.99999996E-13 : f32
    %313 = vector.broadcast %cst_137 : f32 to vector<8x1xf32>
    %314 = arith.addf %312, %313 : vector<8x1xf32>
    %315 = math.rsqrt %314 : vector<8x1xf32>
    %316 = vector.broadcast %303 : vector<8x1xf32> to vector<8x128xf32>
    %317 = arith.subf %297, %316 : vector<8x128xf32>
    %318 = vector.broadcast %315 : vector<8x1xf32> to vector<8x128xf32>
    %319 = arith.mulf %317, %318 : vector<8x128xf32>
    %320 = vector.broadcast %298 : vector<1x128xf32> to vector<8x128xf32>
    %321 = arith.mulf %319, %320 : vector<8x128xf32>
    %322 = vector.broadcast %299 : vector<1x128xf32> to vector<8x128xf32>
    %323 = arith.addf %321, %322 : vector<8x128xf32>
    %c0_138 = arith.constant 0 : index
    %c0_139 = arith.constant 0 : index
    %324 = vector.load %arg6[%c0_138, %c0_139] : memref<128x128xf32, #tpu.memory_space<vmem>>, vector<128x128xf32>
    %cst_140 = arith.constant dense<0.000000e+00> : vector<8x128xf32>
    %325 = tpu.matmul %323, %324, %cst_140 {dimension_numbers = #tpu.dot_dimension_numbers<[1], [0], [0], [1], [0, 0, 1, 1], [], []>} : vector<8x128xf32>, vector<128x128xf32>, vector<8x128xf32> -> vector<8x128xf32>
    %c2_141 = arith.constant 2 : index
    %c0_142 = arith.constant 0 : index
    %326 = vector.load %arg5[%c2_141, %c0_142] : memref<32x128xf32, #tpu.memory_space<vmem>>, vector<1x128xf32>
    %327 = vector.broadcast %326 : vector<1x128xf32> to vector<8x128xf32>
    %328 = arith.addf %325, %327 : vector<8x128xf32>
    %c0_143 = arith.constant 0 : index
    %c0_144 = arith.constant 0 : index
    %c0_145 = arith.constant 0 : index
    %329 = vector.load %arg7[%c0_143, %c0_144, %c0_145] : memref<1x8x128xf32, #tpu.memory_space<vmem>>, vector<1x8x128xf32>
    %330 = vector.shape_cast %329 : vector<1x8x128xf32> to vector<8x128xf32>
    %331 = vector.shape_cast %328 : vector<8x128xf32> to vector<1x8x128xf32>
    tpu.vector_store %arg7[%c0_143, %c0_144, %c0_145], %331 {strides = array<i32>} : memref<1x8x128xf32, #tpu.memory_space<vmem>>, vector<1x8x128xf32>,
    return
  }
  func.func @transform_0(%arg0: i32) -> (i32, i32, i32) {
    %c0_i32 = arith.constant 0 : i32
    %c0_i32_0 = arith.constant 0 : i32
    %c0_i32_1 = arith.constant 0 : i32
    return %arg0, %c0_i32, %c0_i32_0 : i32, i32, i32
  }
  func.func @transform_1(%arg0: i32) -> (i32, i32, i32) {
    %c0_i32 = arith.constant 0 : i32
    %c0_i32_0 = arith.constant 0 : i32
    %c0_i32_1 = arith.constant 0 : i32
    return %arg0, %c0_i32, %c0_i32_0 : i32, i32, i32
  }
  func.func @transform_2(%arg0: i32) -> (i32, i32, i32) {
    %c0_i32 = arith.constant 0 : i32
    %c0_i32_0 = arith.constant 0 : i32
    %c0_i32_1 = arith.constant 0 : i32
    %c0_i32_2 = arith.constant 0 : i32
    return %c0_i32, %c0_i32_0, %c0_i32_1 : i32, i32, i32
  }
  func.func @transform_3(%arg0: i32) -> (i32, i32, i32, i32) {
    %c0_i32 = arith.constant 0 : i32
    %c0_i32_0 = arith.constant 0 : i32
    %c0_i32_1 = arith.constant 0 : i32
    %c0_i32_2 = arith.constant 0 : i32
    %c0_i32_3 = arith.constant 0 : i32
    return %c0_i32, %c0_i32_0, %c0_i32_1, %c0_i32_2 : i32, i32, i32, i32
  }
  func.func @transform_4(%arg0: i32) -> (i32, i32) {
    %c0_i32 = arith.constant 0 : i32
    %c0_i32_0 = arith.constant 0 : i32
    %c0_i32_1 = arith.constant 0 : i32
    return %c0_i32, %c0_i32_0 : i32, i32
  }
  func.func @transform_5(%arg0: i32) -> (i32, i32) {
    %c0_i32 = arith.constant 0 : i32
    %c0_i32_0 = arith.constant 0 : i32
    %c0_i32_1 = arith.constant 0 : i32
    return %c0_i32, %c0_i32_0 : i32, i32
  }
  func.func @transform_6(%arg0: i32) -> (i32, i32, i32) {
    %c0_i32 = arith.constant 0 : i32
    %c0_i32_0 = arith.constant 0 : i32
    %c0_i32_1 = arith.constant 0 : i32
    return %arg0, %c0_i32, %c0_i32_0 : i32, i32, i32
  }
}

</mosaic_0001>

<llo_original>
// kernel: ner_forward.1
$region0: #{ner_forward.1}
  #allocation0 [shape = 'u32[]', space=smem, size = 0x4, offset = 0x4, fixed_abs, tag = 'smem constant byte address 0x4 - core index']
  #allocation1 [shape = 'u32[144,128]{1,0:T(1,128)}', space=vmem, size = 0x12000, scoped, tag = 'internal scratch']
  %s0 = inlined_call_operand.vmem [shape: f32[2,8,128], index: 0, kind: input, shape index: {}]
  %s1 = inlined_call_operand.vmem [shape: f32[2,1,8], index: 1, kind: input, shape index: {}]
  %s2 = inlined_call_operand.hbm [shape: f32[2,128,768], index: 2, kind: input, shape index: {}]
  %s3 = inlined_call_operand.hbm [shape: f32[2,4,128,128], index: 3, kind: input, shape index: {}]
  %s4 = inlined_call_operand.vmem [shape: f32[32,128], index: 4, kind: input, shape index: {}]
  %s5 = inlined_call_operand.vmem [shape: f32[128,128], index: 5, kind: input, shape index: {}]
  %s6 = inlined_call_operand.vmem [shape: f32[2,8,128], index: 6, kind: output, shape index: {}]
  %s7 = sld [smem:[#allocation0]]
  $region65: #{ner_forward.1} parent=0
    _
  %s9 = ssub.s32 1, %s7
  %s10 = scalar_select 0, %s9, %s7
  $region1: #{ner_forward.1} parent=0
    #allocation2 [shape = 'u8[786432]{0}', space=vmem, size = 0xc0000, scoped, tag = 'input window, operand 2, single buffered']
    #allocation3 [shape = 's32[2]{0}', space=sflag, size = 0x8, scoped, tag = 'scoped memory for ner_forward.1']
    #allocation4 [shape = 'u8[524288]{0}', space=vmem, size = 0x80000, scoped, tag = 'input window, operand 3, single buffered']
    #allocation5 [shape = 's32[1]{0}', space=sflag, size = 0x4, scoped, tag = 'scoped memory for ner_forward.1']
    %11 = vsyncpa [#allocation3], 0
    %12 = vsyncpa [#allocation5], 0
    loop: start=0, step=1, limit=4
    $region2: #{ner_forward.1} parent=1 // loop_pre_header
      _
    $region3: #{ner_forward.1} parent=1 // loop_header
      %s14 = sphi 0, %s18
      %p15 = scmp.ge.s32.totalorder %s14, 4
      %s24 = sphi 0, %s26
      %s27 = sphi 0, %s24
      %s28 = sphi 0, %s27
      %s44 = sphi 0, %s28
      %s50 = sphi 0, %s52
      %s53 = sphi 0, %s50
      %s54 = sphi 0, %s53
      %s70 = sphi 0, %s54
      %s74 = sphi 0, %s74
      %s76 = sphi 0, %s74
      %s77 = sphi 0, %s76
      %s91 = sphi 0, %s77
      %s95 = sphi 0, %s95
      %s97 = sphi 0, %s95
      %s98 = sphi 0, %s97
      %s112 = sphi 0, %s98
      %s116 = sphi 0, %s116
      %s118 = sphi 0, %s116
      %s119 = sphi 0, %s118
      %s133 = sphi 0, %s119
      %s137 = sphi 0, %s137
      %s139 = sphi 0, %s137
      %s140 = sphi 0, %s139
      %s154 = sphi 0, %s140
      %s160 = sphi 0, %s162
      %s163 = sphi 0, %s160
      %s164 = sphi 0, %s163
      %s180 = sphi 0, %s164
    $region4: #{ner_forward.1} parent=1 // loop_header_branch
      %17 = sbr.rel (%p15) target = $region8
    $region5: #{ner_forward.1} parent=1 // loop_body
      %s19 = ssub.s32 %s14, 1
      %s20 = ssub.s32 %s14, 2
      %s21 = sadd.s32 %s14, 1
      %s22 = ssub.s32 %s14, %s21
      %p23 = scmp.eq.s32.totalorder %s22, 0
      %s25 = sadd.s32 %s24, 1
      %s26 = scalar_select %p23, %s24, %s25
      %p29 = pneg %p23
      %p30 = scmp.eq.s32.totalorder %s14, 1
      %p31 = por %p29, %p30
      %p32 = scmp.ne.s32.totalorder %s24, %s27
      %p33 = scmp.eq.s32.totalorder %s14, 0
      %p34 = por %p32, %p33
      %p35 = scmp.ne.s32.totalorder %s24, %s27
      %p36 = scmp.eq.s32.totalorder %s19, 1
      %p37 = por %p35, %p36
      %p38 = scmp.ne.s32.totalorder %s27, %s28
      %p39 = scmp.eq.s32.totalorder %s19, 0
      %p40 = por %p38, %p39
      %p41 = scmp.ne.s32.totalorder %s27, %s28
      %p42 = scmp.eq.s32.totalorder %s20, 1
      %p43 = por %p41, %p42
      %p45 = scmp.ne.s32.totalorder %s28, %s44
      %p46 = scmp.eq.s32.totalorder %s20, 0
      %p47 = por %p45, %p46
      %s48 = ssub.s32 %s14, %s21
      %p49 = scmp.eq.s32.totalorder %s48, 0
      %s51 = sadd.s32 %s50, 1
      %s52 = scalar_select %p49, %s50, %s51
      %p55 = pneg %p49
      %p56 = scmp.eq.s32.totalorder %s14, 1
      %p57 = por %p55, %p56
      %p58 = scmp.ne.s32.totalorder %s50, %s53
      %p59 = scmp.eq.s32.totalorder %s14, 0
      %p60 = por %p58, %p59
      %p61 = scmp.ne.s32.totalorder %s50, %s53
      %p62 = scmp.eq.s32.totalorder %s19, 1
      %p63 = por %p61, %p62
      %p64 = scmp.ne.s32.totalorder %s53, %s54
      %p65 = scmp.eq.s32.totalorder %s19, 0
      %p66 = por %p64, %p65
      %p67 = scmp.ne.s32.totalorder %s53, %s54
      %p68 = scmp.eq.s32.totalorder %s20, 1
      %p69 = por %p67, %p68
      %p71 = scmp.ne.s32.totalorder %s54, %s70
      %p72 = scmp.eq.s32.totalorder %s20, 0
      %p73 = por %p71, %p72
      %s75 = sadd.s32 %s74, 1
      %p78 = scmp.eq.s32.totalorder %s14, 1
      %p79 = scmp.ne.s32.totalorder %s74, %s76
      %p80 = scmp.eq.s32.totalorder %s14, 0
      %p81 = por %p79, %p80
      %p82 = scmp.ne.s32.totalorder %s74, %s76
      %p83 = scmp.eq.s32.totalorder %s19, 1
      %p84 = por %p82, %p83
      %p85 = scmp.ne.s32.totalorder %s76, %s77
      %p86 = scmp.eq.s32.totalorder %s19, 0
      %p87 = por %p85, %p86
      %p88 = scmp.ne.s32.totalorder %s76, %s77
      %p89 = scmp.eq.s32.totalorder %s20, 1
      %p90 = por %p88, %p89
      %p92 = scmp.ne.s32.totalorder %s77, %s91
      %p93 = scmp.eq.s32.totalorder %s20, 0
      %p94 = por %p92, %p93
      %s96 = sadd.s32 %s95, 1
      %p99 = scmp.eq.s32.totalorder %s14, 1
      %p100 = scmp.ne.s32.totalorder %s95, %s97
      %p101 = scmp.eq.s32.totalorder %s14, 0
      %p102 = por %p100, %p101
      %p103 = scmp.ne.s32.totalorder %s95, %s97
      %p104 = scmp.eq.s32.totalorder %s19, 1
      %p105 = por %p103, %p104
      %p106 = scmp.ne.s32.totalorder %s97, %s98
      %p107 = scmp.eq.s32.totalorder %s19, 0
      %p108 = por %p106, %p107
      %p109 = scmp.ne.s32.totalorder %s97, %s98
      %p110 = scmp.eq.s32.totalorder %s20, 1
      %p111 = por %p109, %p110
      %p113 = scmp.ne.s32.totalorder %s98, %s112
      %p114 = scmp.eq.s32.totalorder %s20, 0
      %p115 = por %p113, %p114
      %s117 = sadd.s32 %s116, 1
      %p120 = scmp.eq.s32.totalorder %s14, 1
      %p121 = scmp.ne.s32.totalorder %s116, %s118
      %p122 = scmp.eq.s32.totalorder %s14, 0
      %p123 = por %p121, %p122
      %p124 = scmp.ne.s32.totalorder %s116, %s118
      %p125 = scmp.eq.s32.totalorder %s19, 1
      %p126 = por %p124, %p125
      %p127 = scmp.ne.s32.totalorder %s118, %s119
      %p128 = scmp.eq.s32.totalorder %s19, 0
      %p129 = por %p127, %p128
      %p130 = scmp.ne.s32.totalorder %s118, %s119
      %p131 = scmp.eq.s32.totalorder %s20, 1
      %p132 = por %p130, %p131
      %p134 = scmp.ne.s32.totalorder %s119, %s133
      %p135 = scmp.eq.s32.totalorder %s20, 0
      %p136 = por %p134, %p135
      %s138 = sadd.s32 %s137, 1
      %p141 = scmp.eq.s32.totalorder %s14, 1
      %p142 = scmp.ne.s32.totalorder %s137, %s139
      %p143 = scmp.eq.s32.totalorder %s14, 0
      %p144 = por %p142, %p143
      %p145 = scmp.ne.s32.totalorder %s137, %s139
      %p146 = scmp.eq.s32.totalorder %s19, 1
      %p147 = por %p145, %p146
      %p148 = scmp.ne.s32.totalorder %s139, %s140
      %p149 = scmp.eq.s32.totalorder %s19, 0
      %p150 = por %p148, %p149
      %p151 = scmp.ne.s32.totalorder %s139, %s140
      %p152 = scmp.eq.s32.totalorder %s20, 1
      %p153 = por %p151, %p152
      %p155 = scmp.ne.s32.totalorder %s140, %s154
      %p156 = scmp.eq.s32.totalorder %s20, 0
      %p157 = por %p155, %p156
      %s158 = ssub.s32 %s14, %s21
      %p159 = scmp.eq.s32.totalorder %s158, 0
      %s161 = sadd.s32 %s160, 1
      %s162 = scalar_select %p159, %s160, %s161
      %p165 = pneg %p159
      %p166 = scmp.eq.s32.totalorder %s14, 1
      %p167 = por %p165, %p166
      %p168 = scmp.ne.s32.totalorder %s160, %s163
      %p169 = scmp.eq.s32.totalorder %s14, 0
      %p170 = por %p168, %p169
      %p171 = scmp.ne.s32.totalorder %s160, %s163
      %p172 = scmp.eq.s32.totalorder %s19, 1
      %p173 = por %p171, %p172
      %p174 = scmp.ne.s32.totalorder %s163, %s164
      %p175 = scmp.eq.s32.totalorder %s19, 0
      %p176 = por %p174, %p175
      %p177 = scmp.ne.s32.totalorder %s163, %s164
      %p178 = scmp.eq.s32.totalorder %s20, 1
      %p179 = por %p177, %p178
      %p181 = scmp.ne.s32.totalorder %s164, %s180
      %p182 = scmp.eq.s32.totalorder %s20, 0
      %p183 = por %p181, %p182
      %p184 = scmp.le.s32.totalorder 1, %s14
      %p185 = scmp.lt.s32.totalorder %s14, 3
      %p186 = pnand %p184, %p185
      %p187 = pneg %p186
      // Predicated region
      $region9: #{ner_forward.1} parent=5 // pred_check
        _
      $region10: #{ner_forward.1} parent=5 // pred_check_branch
        %189 = sbr.rel (%p186) target = $region12
      $region11: #{ner_forward.1} parent=5 // pred_region
        %s190 = ssub.s32 %s14, 1
        // Predicated region
        $region13: #{ner_forward.1} parent=11 // pred_check
          %p191 = pneg %p87
        $region14: #{ner_forward.1} parent=11 // pred_check_branch
          %193 = sbr.rel (%p191) target = $region16
        $region15: #{ner_forward.1} parent=11 // pred_region
          %s195 = ssub.s32 24576, 24576
          %196 = vsyncadd [#allocation3], %s195
          %s197 = sshll.u32 [#allocation2], 4
          %s198 = int_to_ptr.vmem [resolvable:$true] %s197
          %203 = dma.hbm_to_vmem [thread:$0]  %s2, 24576, %s198, [#allocation3], 768, 768, 48
        $region16: #{ner_forward.1} parent=11 // pred_fallthru
          _
        // Predicated region
        $region17: #{ner_forward.1} parent=11 // pred_check
          %p204 = pneg %p108
        $region18: #{ner_forward.1} parent=11 // pred_check_branch
          %206 = sbr.rel (%p204) target = $region20
        $region19: #{ner_forward.1} parent=11 // pred_region
          %s208 = ssub.s32 16384, 16384
          %209 = vsyncadd [#allocation5], %s208
          %s210 = sshll.u32 [#allocation4], 4
          %s211 = int_to_ptr.vmem [resolvable:$true] %s210
          %216 = dma.hbm_to_vmem [thread:$0]  %s3, 16384, %s211, [#allocation5], 128, 128, 8
        $region20: #{ner_forward.1} parent=11 // pred_fallthru
          _
        // Predicated region
        $region21: #{ner_forward.1} parent=11 // pred_check
          %p217 = pneg %p129
        $region22: #{ner_forward.1} parent=11 // pred_check_branch
          %219 = sbr.rel (%p217) target = $region24
        $region23: #{ner_forward.1} parent=11 // pred_region
          _
        $region24: #{ner_forward.1} parent=11 // pred_fallthru
          _
        // Predicated region
        $region25: #{ner_forward.1} parent=11 // pred_check
          %p220 = pneg %p150
        $region26: #{ner_forward.1} parent=11 // pred_check_branch
          %222 = sbr.rel (%p220) target = $region28
        $region27: #{ner_forward.1} parent=11 // pred_region
          _
        $region28: #{ner_forward.1} parent=11 // pred_fallthru
          _
      $region12: #{ner_forward.1} parent=5 // pred_fallthru
        _
      %p223 = scmp.lt.s32.totalorder %s14, 2
      // Predicated region
      $region29: #{ner_forward.1} parent=5 // pred_check
        %p224 = pneg %p223
      $region30: #{ner_forward.1} parent=5 // pred_check_branch
        %226 = sbr.rel (%p224) target = $region32
      $region31: #{ner_forward.1} parent=5 // pred_region
        // Predicated region
        $region33: #{ner_forward.1} parent=31 // pred_check
          %p227 = pneg %p34
        $region34: #{ner_forward.1} parent=31 // pred_check_branch
          %229 = sbr.rel (%p227) target = $region36
        $region35: #{ner_forward.1} parent=31 // pred_region
          %p230 = scmp.lt.s32.totalorder %s14, 1
          %s231 = scalar_select %p230, %s14, 1
          %s232 = smul.addr %s231, 8
          %s233 = scalar_lea.vmem %s0, %s232
        $region36: #{ner_forward.1} parent=31 // pred_fallthru
          _
        // Predicated region
        $region37: #{ner_forward.1} parent=31 // pred_check
          %p234 = pneg %p60
        $region38: #{ner_forward.1} parent=31 // pred_check_branch
          %236 = sbr.rel (%p234) target = $region40
        $region39: #{ner_forward.1} parent=31 // pred_region
          %p237 = scmp.lt.s32.totalorder %s14, 1
          %s238 = scalar_select %p237, %s14, 1
          %s239 = scalar_lea.vmem %s1, %s238
        $region40: #{ner_forward.1} parent=31 // pred_fallthru
          _
      $region32: #{ner_forward.1} parent=5 // pred_fallthru
        _
      %p240 = scmp.le.s32.totalorder 1, %s14
      %p241 = scmp.lt.s32.totalorder %s14, 3
      %p242 = pnand %p240, %p241
      %p243 = pneg %p242
      // Predicated region
      $region41: #{ner_forward.1} parent=5 // pred_check
        _
      $region42: #{ner_forward.1} parent=5 // pred_check_branch
        %245 = sbr.rel (%p242) target = $region44
      $region43: #{ner_forward.1} parent=5 // pred_region
        %s246 = ssub.s32 %s14, 1
        // Predicated region
        $region45: #{ner_forward.1} parent=43 // pred_check
          %p247 = pneg %p87
        $region46: #{ner_forward.1} parent=43 // pred_check_branch
          %249 = sbr.rel (%p247) target = $region48
        $region47: #{ner_forward.1} parent=43 // pred_region
          %250 = dma.done [#allocation3], 24576
        $region48: #{ner_forward.1} parent=43 // pred_fallthru
          _
        // Predicated region
        $region49: #{ner_forward.1} parent=43 // pred_check
          %p251 = pneg %p108
        $region50: #{ner_forward.1} parent=43 // pred_check_branch
          %253 = sbr.rel (%p251) target = $region52
        $region51: #{ner_forward.1} parent=43 // pred_region
          %254 = dma.done [#allocation5], 16384
        $region52: #{ner_forward.1} parent=43 // pred_fallthru
          _
        %p255 = scmp.lt.s32.totalorder %s19, 1
        %s256 = scalar_select %p255, %s19, 1
        %s257 = smul.addr %s256, 8
        %s258 = scalar_lea.vmem %s0, %s257
        %p259 = pneg %p40
        %p260 = pneg %p37
        %p261 = scmp.lt.s32.totalorder %s19, 1
        %s262 = scalar_select %p261, %s19, 1
        %s263 = scalar_lea.vmem %s1, %s262
        %p264 = pneg %p66
        %p265 = pneg %p63
        %p266 = pneg %p87
        %p267 = pneg %p84
        %p268 = pneg %p108
        %p269 = pneg %p105
        %p270 = pneg %p129
        %p271 = pneg %p126
        %p272 = pneg %p150
        %p273 = pneg %p147
        %p274 = pneg %p176
        %p275 = pneg %p173
        %p276 = scmp.lt.s32.totalorder %s19, 1
        %s277 = scalar_select %p276, %s19, 1
        %s278 = smul.addr %s277, 8
        %s279 = scalar_lea.vmem %s6, %s278
        %p280 = scmp.lt.s32.totalorder %s19, 1
        %s281 = scalar_select %p280, %s19, 1
        %s282 = smul.addr %s281, 8
        %s283 = scalar_lea.vmem %s0, %s282
        %p284 = scmp.lt.s32.totalorder %s19, 1
        %s285 = scalar_select %p284, %s19, 1
        %s286 = scalar_lea.vmem %s1, %s285
        %p287 = scmp.lt.s32.totalorder %s19, 1
        %s288 = scalar_select %p287, %s19, 1
        %s289 = smul.addr %s288, 8
        %s290 = scalar_lea.vmem %s6, %s289
        %v291 = vld [vmem:[%s283] sm:$0xff]
        %v292 = vld [vmem:[%s4] sm:$0x1]
        %v293 = vld [vmem:[%s4 + $0x1] sm:$0x1]
        %294 = vadd.xlane.f32.xlu0 %v291
        %v295 = vpop.xlane.xlu0 %294
        %v296 = vmul.f32 %v295, 0.03125
        %v297 = vmul.f32 %v291, %v291
        %298 = vadd.xlane.f32.xlu0 %v297
        %v299 = vpop.xlane.xlu0 %298
        %v300 = vmul.f32 %v299, 0.03125
        %v301 = vmul.f32 %v296, %v296
        %v302 = vsub.f32 %v300, %v301
        %v303 = vmax.f32 %v302, 0.0
        %v304 = vadd.f32 %v303, 1e-12
        %v305 = vrsqrt.pop %v304
        %v306 = vsub.f32 %v291, %v296
        %v307 = vmul.f32 %v306, %v305
        %v308 = vlaneseq
        %v309 = vshrl.u32 %v308, 7
        %v310 = vsub.s32 0, %v309
        %v311 = vrot.slane %v292, %v310
        %v312 = vmul.f32 %v307, %v311
        %v313 = vlaneseq
        %v314 = vshrl.u32 %v313, 7
        %v315 = vsub.s32 0, %v314
        %v316 = vrot.slane %v293, %v315
        %v317 = vadd.f32 %v312, %v316
        %v318 = vld [vmem:[%s286] sm:$0x1]
        %v320 = vlaneseq
        %v321 = vshrl.u32 %v320, 7
        %v322 = vsub.s32 0, %v321
        %v323 = vrot.slane %v318, %v322
        %v325 = vld [vmem:[#allocation2] sm:$0xff]
        %v326 = vld [vmem:[#allocation2 + $0x8] sm:$0xff]
        %v327 = vld [vmem:[#allocation2 + $0x10] sm:$0xff]
        %v328 = vld [vmem:[#allocation2 + $0x18] sm:$0xff]
        %v329 = vld [vmem:[#allocation2 + $0x20] sm:$0xff]
        %v330 = vld [vmem:[#allocation2 + $0x28] sm:$0xff]
        %v331 = vld [vmem:[#allocation2 + $0x30] sm:$0xff]
        %v332 = vld [vmem:[#allocation2 + $0x38] sm:$0xff]
        %v333 = vld [vmem:[#allocation2 + $0x40] sm:$0xff]
        %v334 = vld [vmem:[#allocation2 + $0x48] sm:$0xff]
        %v335 = vld [vmem:[#allocation2 + $0x50] sm:$0xff]
        %v336 = vld [vmem:[#allocation2 + $0x58] sm:$0xff]
        %v337 = vld [vmem:[#allocation2 + $0x60] sm:$0xff]
        %v338 = vld [vmem:[#allocation2 + $0x68] sm:$0xff]
        %v339 = vld [vmem:[#allocation2 + $0x70] sm:$0xff]
        %v340 = vld [vmem:[#allocation2 + $0x78] sm:$0xff]
        %v341 = vld [vmem:[#allocation2 + $0x80] sm:$0xff]
        %v342 = vld [vmem:[#allocation2 + $0x88] sm:$0xff]
        %v343 = vld [vmem:[#allocation2 + $0x90] sm:$0xff]
        %v344 = vld [vmem:[#allocation2 + $0x98] sm:$0xff]
        %v345 = vld [vmem:[#allocation2 + $0xa0] sm:$0xff]
        %v346 = vld [vmem:[#allocation2 + $0xa8] sm:$0xff]
        %v347 = vld [vmem:[#allocation2 + $0xb0] sm:$0xff]
        %v348 = vld [vmem:[#allocation2 + $0xb8] sm:$0xff]
        %v349 = vld [vmem:[#allocation2 + $0xc0] sm:$0xff]
        %v350 = vld [vmem:[#allocation2 + $0xc8] sm:$0xff]
        %v351 = vld [vmem:[#allocation2 + $0xd0] sm:$0xff]
        %v352 = vld [vmem:[#allocation2 + $0xd8] sm:$0xff]
        %v353 = vld [vmem:[#allocation2 + $0xe0] sm:$0xff]
        %v354 = vld [vmem:[#allocation2 + $0xe8] sm:$0xff]
        %v355 = vld [vmem:[#allocation2 + $0xf0] sm:$0xff]
        %v356 = vld [vmem:[#allocation2 + $0xf8] sm:$0xff]
        %v357 = vld [vmem:[#allocation2 + $0x100] sm:$0xff]
        %v358 = vld [vmem:[#allocation2 + $0x108] sm:$0xff]
        %v359 = vld [vmem:[#allocation2 + $0x110] sm:$0xff]
        %v360 = vld [vmem:[#allocation2 + $0x118] sm:$0xff]
        %v361 = vld [vmem:[#allocation2 + $0x120] sm:$0xff]
        %v362 = vld [vmem:[#allocation2 + $0x128] sm:$0xff]
        %v363 = vld [vmem:[#allocation2 + $0x130] sm:$0xff]
        %v364 = vld [vmem:[#allocation2 + $0x138] sm:$0xff]
        %v365 = vld [vmem:[#allocation2 + $0x140] sm:$0xff]
        %v366 = vld [vmem:[#allocation2 + $0x148] sm:$0xff]
        %v367 = vld [vmem:[#allocation2 + $0x150] sm:$0xff]
        %v368 = vld [vmem:[#allocation2 + $0x158] sm:$0xff]
        %v369 = vld [vmem:[#allocation2 + $0x160] sm:$0xff]
        %v370 = vld [vmem:[#allocation2 + $0x168] sm:$0xff]
        %v371 = vld [vmem:[#allocation2 + $0x170] sm:$0xff]
        %v372 = vld [vmem:[#allocation2 + $0x178] sm:$0xff]
        %v373 = vld [vmem:[#allocation2 + $0x180] sm:$0xff]
        %v374 = vld [vmem:[#allocation2 + $0x188] sm:$0xff]
        %v375 = vld [vmem:[#allocation2 + $0x190] sm:$0xff]
        %v376 = vld [vmem:[#allocation2 + $0x198] sm:$0xff]
        %v377 = vld [vmem:[#allocation2 + $0x1a0] sm:$0xff]
        %v378 = vld [vmem:[#allocation2 + $0x1a8] sm:$0xff]
        %v379 = vld [vmem:[#allocation2 + $0x1b0] sm:$0xff]
        %v380 = vld [vmem:[#allocation2 + $0x1b8] sm:$0xff]
        %v381 = vld [vmem:[#allocation2 + $0x1c0] sm:$0xff]
        %v382 = vld [vmem:[#allocation2 + $0x1c8] sm:$0xff]
        %v383 = vld [vmem:[#allocation2 + $0x1d0] sm:$0xff]
        %v384 = vld [vmem:[#allocation2 + $0x1d8] sm:$0xff]
        %v385 = vld [vmem:[#allocation2 + $0x1e0] sm:$0xff]
        %v386 = vld [vmem:[#allocation2 + $0x1e8] sm:$0xff]
        %v387 = vld [vmem:[#allocation2 + $0x1f0] sm:$0xff]
        %v388 = vld [vmem:[#allocation2 + $0x1f8] sm:$0xff]
        %v389 = vld [vmem:[#allocation2 + $0x200] sm:$0xff]
        %v390 = vld [vmem:[#allocation2 + $0x208] sm:$0xff]
        %v391 = vld [vmem:[#allocation2 + $0x210] sm:$0xff]
        %v392 = vld [vmem:[#allocation2 + $0x218] sm:$0xff]
        %v393 = vld [vmem:[#allocation2 + $0x220] sm:$0xff]
        %v394 = vld [vmem:[#allocation2 + $0x228] sm:$0xff]
        %v395 = vld [vmem:[#allocation2 + $0x230] sm:$0xff]
        %v396 = vld [vmem:[#allocation2 + $0x238] sm:$0xff]
        %v397 = vld [vmem:[#allocation2 + $0x240] sm:$0xff]
        %v398 = vld [vmem:[#allocation2 + $0x248] sm:$0xff]
        %v399 = vld [vmem:[#allocation2 + $0x250] sm:$0xff]
        %v400 = vld [vmem:[#allocation2 + $0x258] sm:$0xff]
        %v401 = vld [vmem:[#allocation2 + $0x260] sm:$0xff]
        %v402 = vld [vmem:[#allocation2 + $0x268] sm:$0xff]
        %v403 = vld [vmem:[#allocation2 + $0x270] sm:$0xff]
        %v404 = vld [vmem:[#allocation2 + $0x278] sm:$0xff]
        %v405 = vld [vmem:[#allocation2 + $0x280] sm:$0xff]
        %v406 = vld [vmem:[#allocation2 + $0x288] sm:$0xff]
        %v407 = vld [vmem:[#allocation2 + $0x290] sm:$0xff]
        %v408 = vld [vmem:[#allocation2 + $0x298] sm:$0xff]
        %v409 = vld [vmem:[#allocation2 + $0x2a0] sm:$0xff]
        %v410 = vld [vmem:[#allocation2 + $0x2a8] sm:$0xff]
        %v411 = vld [vmem:[#allocation2 + $0x2b0] sm:$0xff]
        %v412 = vld [vmem:[#allocation2 + $0x2b8] sm:$0xff]
        %v413 = vld [vmem:[#allocation2 + $0x2c0] sm:$0xff]
        %v414 = vld [vmem:[#allocation2 + $0x2c8] sm:$0xff]
        %v415 = vld [vmem:[#allocation2 + $0x2d0] sm:$0xff]
        %v416 = vld [vmem:[#allocation2 + $0x2d8] sm:$0xff]
        %v417 = vld [vmem:[#allocation2 + $0x2e0] sm:$0xff]
        %v418 = vld [vmem:[#allocation2 + $0x2e8] sm:$0xff]
        %v419 = vld [vmem:[#allocation2 + $0x2f0] sm:$0xff]
        %v420 = vld [vmem:[#allocation2 + $0x2f8] sm:$0xff]
        %421 = vmatprep.subr.mxu0 %v416
        %422 = vmatpush1.msra.mxu0 %v415
        %423 = vmatprep.subr.mxu0 %v410
        %424 = vmatpush1.msra.mxu0 %v409
        %425 = vmatprep.subr.mxu0 %v404
        %426 = vmatpush1.msra.mxu0 %v403
        %427 = vmatprep.subr.mxu0 %v398
        %428 = vmatpush1.msra.mxu0 %v397
        %429 = vmatprep.subr.mxu0 %v392
        %430 = vmatpush1.msra.mxu0 %v391
        %431 = vmatprep.subr.mxu0 %v386
        %432 = vmatpush1.msra.mxu0 %v385
        %433 = vmatprep.subr.mxu0 %v380
        %434 = vmatpush1.msra.mxu0 %v379
        %435 = vmatprep.subr.mxu0 %v374
        %436 = vmatpush1.msra.mxu0 %v373
        %437 = vmatprep.subr.mxu0 %v368
        %438 = vmatpush1.msra.mxu0 %v367
        %439 = vmatprep.subr.mxu0 %v362
        %440 = vmatpush1.msra.mxu0 %v361
        %441 = vmatprep.subr.mxu0 %v356
        %442 = vmatpush1.msra.mxu0 %v355
        %443 = vmatprep.subr.mxu0 %v350
        %444 = vmatpush1.msra.mxu0 %v349
        %445 = vmatprep.subr.mxu0 %v344
        %446 = vmatpush1.msra.mxu0 %v343
        %447 = vmatprep.subr.mxu0 %v338
        %448 = vmatpush1.msra.mxu0 %v337
        %449 = vmatprep.subr.mxu0 %v332
        %450 = vmatpush1.msra.mxu0 %v331
        %451 = vmatprep.subr.mxu0 %v326
        %452 = vmatpush1.msra.mxu0 %v325
        %453 = vmatprep.subr.mxu0 0.0
        %454 = vmatpush2.msra.mxu0 0.0
        %455 = vmatprep.subr.mxu0 0.0
        %456 = vmatpush2.msra.mxu0 0.0
        %457 = vmatprep.subr.mxu0 0.0
        %458 = vmatpush2.msra.mxu0 0.0
        %459 = vmatprep.subr.mxu0 0.0
        %460 = vmatpush2.msra.mxu0 0.0
        %461 = vmatprep.subr.mxu0 0.0
        %462 = vmatpush2.msra.mxu0 0.0
        %463 = vmatprep.subr.mxu0 0.0
        %464 = vmatpush2.msra.mxu0 0.0
        %465 = vmatprep.subr.mxu0 0.0
        %466 = vmatpush2.msra.mxu0 0.0
        %467 = vmatprep.subr.mxu0 0.0
        %468 = vmatpush2.msra.mxu0 0.0
        %469 = vmatprep.subr.mxu0 0.0
        %470 = vmatpush2.msra.mxu0 0.0
        %471 = vmatprep.subr.mxu0 0.0
        %472 = vmatpush2.msra.mxu0 0.0
        %473 = vmatprep.subr.mxu0 0.0
        %474 = vmatpush2.msra.mxu0 0.0
        %475 = vmatprep.subr.mxu0 0.0
        %476 = vmatpush2.msra.mxu0 0.0
        %477 = vmatprep.subr.mxu0 0.0
        %478 = vmatpush2.msra.mxu0 0.0
        %479 = vmatprep.subr.mxu0 0.0
        %480 = vmatpush2.msra.mxu0 0.0
        %481 = vmatprep.subr.mxu0 0.0
        %482 = vmatpush2.msra.mxu0 0.0
        %483 = vmatprep.subr.mxu0 0.0
        %484 = vmatpush2.msra.mxu0 0.0
        %485 = vmatprep.mubr.f32.mxu0 0.0
        %486 = vmatmul.mubr.f32.gmra.mxu0 %v317
        %v487 = vpop.f32.mrf.mxu0
        %v488 = vadd.f32 0.0, %v487
        %v489 = vpop.f32.mrf.mxu0
        %v490 = vadd.f32 0.0, %v489
        %491 = vdwg.mxu0
        %492 = vmatprep.subr.mxu0 %v418
        %493 = vmatpush1.msra.mxu0 %v417
        %494 = vmatprep.subr.mxu0 %v412
        %495 = vmatpush1.msra.mxu0 %v411
        %496 = vmatprep.subr.mxu0 %v406
        %497 = vmatpush1.msra.mxu0 %v405
        %498 = vmatprep.subr.mxu0 %v400
        %499 = vmatpush1.msra.mxu0 %v399
        %500 = vmatprep.subr.mxu0 %v394
        %501 = vmatpush1.msra.mxu0 %v393
        %502 = vmatprep.subr.mxu0 %v388
        %503 = vmatpush1.msra.mxu0 %v387
        %504 = vmatprep.subr.mxu0 %v382
        %505 = vmatpush1.msra.mxu0 %v381
        %506 = vmatprep.subr.mxu0 %v376
        %507 = vmatpush1.msra.mxu0 %v375
        %508 = vmatprep.subr.mxu0 %v370
        %509 = vmatpush1.msra.mxu0 %v369
        %510 = vmatprep.subr.mxu0 %v364
        %511 = vmatpush1.msra.mxu0 %v363
        %512 = vmatprep.subr.mxu0 %v358
        %513 = vmatpush1.msra.mxu0 %v357
        %514 = vmatprep.subr.mxu0 %v352
        %515 = vmatpush1.msra.mxu0 %v351
        %516 = vmatprep.subr.mxu0 %v346
        %517 = vmatpush1.msra.mxu0 %v345
        %518 = vmatprep.subr.mxu0 %v340
        %519 = vmatpush1.msra.mxu0 %v339
        %520 = vmatprep.subr.mxu0 %v334
        %521 = vmatpush1.msra.mxu0 %v333
        %522 = vmatprep.subr.mxu0 %v328
        %523 = vmatpush1.msra.mxu0 %v327
        %524 = vmatprep.subr.mxu0 0.0
        %525 = vmatpush2.msra.mxu0 0.0
        %526 = vmatprep.subr.mxu0 0.0
        %527 = vmatpush2.msra.mxu0 0.0
        %528 = vmatprep.subr.mxu0 0.0
        %529 = vmatpush2.msra.mxu0 0.0
        %530 = vmatprep.subr.mxu0 0.0
        %531 = vmatpush2.msra.mxu0 0.0
        %532 = vmatprep.subr.mxu0 0.0
        %533 = vmatpush2.msra.mxu0 0.0
        %534 = vmatprep.subr.mxu0 0.0
        %535 = vmatpush2.msra.mxu0 0.0
        %536 = vmatprep.subr.mxu0 0.0
        %537 = vmatpush2.msra.mxu0 0.0
        %538 = vmatprep.subr.mxu0 0.0
        %539 = vmatpush2.msra.mxu0 0.0
        %540 = vmatprep.subr.mxu0 0.0
        %541 = vmatpush2.msra.mxu0 0.0
        %542 = vmatprep.subr.mxu0 0.0
        %543 = vmatpush2.msra.mxu0 0.0
        %544 = vmatprep.subr.mxu0 0.0
        %545 = vmatpush2.msra.mxu0 0.0
        %546 = vmatprep.subr.mxu0 0.0
        %547 = vmatpush2.msra.mxu0 0.0
        %548 = vmatprep.subr.mxu0 0.0
        %549 = vmatpush2.msra.mxu0 0.0
        %550 = vmatprep.subr.mxu0 0.0
        %551 = vmatpush2.msra.mxu0 0.0
        %552 = vmatprep.subr.mxu0 0.0
        %553 = vmatpush2.msra.mxu0 0.0
        %554 = vmatprep.subr.mxu0 0.0
        %555 = vmatpush2.msra.mxu0 0.0
        %556 = vmatprep.mubr.f32.mxu0 0.0
        %557 = vmatmul.mubr.f32.gmra.mxu0 %v317
        %v558 = vpop.f32.mrf.mxu0
        %v559 = vadd.f32 0.0, %v558
        %v560 = vpop.f32.mrf.mxu0
        %v561 = vadd.f32 0.0, %v560
        %562 = vdwg.mxu0
        %563 = vmatprep.subr.mxu0 %v420
        %564 = vmatpush1.msra.mxu0 %v419
        %565 = vmatprep.subr.mxu0 %v414
        %566 = vmatpush1.msra.mxu0 %v413
        %567 = vmatprep.subr.mxu0 %v408
        %568 = vmatpush1.msra.mxu0 %v407
        %569 = vmatprep.subr.mxu0 %v402
        %570 = vmatpush1.msra.mxu0 %v401
        %571 = vmatprep.subr.mxu0 %v396
        %572 = vmatpush1.msra.mxu0 %v395
        %573 = vmatprep.subr.mxu0 %v390
        %574 = vmatpush1.msra.mxu0 %v389
        %575 = vmatprep.subr.mxu0 %v384
        %576 = vmatpush1.msra.mxu0 %v383
        %577 = vmatprep.subr.mxu0 %v378
        %578 = vmatpush1.msra.mxu0 %v377
        %579 = vmatprep.subr.mxu0 %v372
        %580 = vmatpush1.msra.mxu0 %v371
        %581 = vmatprep.subr.mxu0 %v366
        %582 = vmatpush1.msra.mxu0 %v365
        %583 = vmatprep.subr.mxu0 %v360
        %584 = vmatpush1.msra.mxu0 %v359
        %585 = vmatprep.subr.mxu0 %v354
        %586 = vmatpush1.msra.mxu0 %v353
        %587 = vmatprep.subr.mxu0 %v348
        %588 = vmatpush1.msra.mxu0 %v347
        %589 = vmatprep.subr.mxu0 %v342
        %590 = vmatpush1.msra.mxu0 %v341
        %591 = vmatprep.subr.mxu0 %v336
        %592 = vmatpush1.msra.mxu0 %v335
        %593 = vmatprep.subr.mxu0 %v330
        %594 = vmatpush1.msra.mxu0 %v329
        %595 = vmatprep.subr.mxu0 0.0
        %596 = vmatpush2.msra.mxu0 0.0
        %597 = vmatprep.subr.mxu0 0.0
        %598 = vmatpush2.msra.mxu0 0.0
        %599 = vmatprep.subr.mxu0 0.0
        %600 = vmatpush2.msra.mxu0 0.0
        %601 = vmatprep.subr.mxu0 0.0
        %602 = vmatpush2.msra.mxu0 0.0
        %603 = vmatprep.subr.mxu0 0.0
        %604 = vmatpush2.msra.mxu0 0.0
        %605 = vmatprep.subr.mxu0 0.0
        %606 = vmatpush2.msra.mxu0 0.0
        %607 = vmatprep.subr.mxu0 0.0
        %608 = vmatpush2.msra.mxu0 0.0
        %609 = vmatprep.subr.mxu0 0.0
        %610 = vmatpush2.msra.mxu0 0.0
        %611 = vmatprep.subr.mxu0 0.0
        %612 = vmatpush2.msra.mxu0 0.0
        %613 = vmatprep.subr.mxu0 0.0
        %614 = vmatpush2.msra.mxu0 0.0
        %615 = vmatprep.subr.mxu0 0.0
        %616 = vmatpush2.msra.mxu0 0.0
        %617 = vmatprep.subr.mxu0 0.0
        %618 = vmatpush2.msra.mxu0 0.0
        %619 = vmatprep.subr.mxu0 0.0
        %620 = vmatpush2.msra.mxu0 0.0
        %621 = vmatprep.subr.mxu0 0.0
        %622 = vmatpush2.msra.mxu0 0.0
        %623 = vmatprep.subr.mxu0 0.0
        %624 = vmatpush2.msra.mxu0 0.0
        %625 = vmatprep.subr.mxu0 0.0
        %626 = vmatpush2.msra.mxu0 0.0
        %627 = vmatprep.mubr.f32.mxu0 0.0
        %628 = vmatmul.mubr.f32.gmra.mxu0 %v317
        %v629 = vpop.f32.mrf.mxu0
        %v630 = vadd.f32 0.0, %v629
        %v631 = vpop.f32.mrf.mxu0
        %v632 = vadd.f32 0.0, %v631
        %633 = vdwg.mxu0
        %v634 = vld [vmem:[%s4 + $0x3] sm:$0x1]
        %v635 = vlaneseq
        %v636 = vshrl.u32 %v635, 7
        %v637 = vsub.s32 0, %v636
        %v638 = vrot.slane %v634, %v637
        %v639 = vadd.f32 %v488, %v638
        %v640 = vld [vmem:[%s4 + $0x5] sm:$0x1]
        %v641 = vlaneseq
        %v642 = vshrl.u32 %v641, 7
        %v643 = vsub.s32 0, %v642
        %v644 = vrot.slane %v640, %v643
        %v645 = vadd.f32 %v559, %v644
        %v646 = vld [vmem:[%s4 + $0x7] sm:$0x1]
        %v647 = vlaneseq
        %v648 = vshrl.u32 %v647, 7
        %v649 = vsub.s32 0, %v648
        %v650 = vrot.slane %v646, %v649
        %v651 = vadd.f32 %v630, %v650
        %652 = vmatprep.subr.mxu0 0.0
        %653 = vmatpush1.xpose.msra.mxu0 0.0
        %654 = vmatprep.subr.mxu0 0.0
        %655 = vmatpush1.xpose.msra.mxu0 0.0
        %656 = vmatprep.subr.mxu0 0.0
        %657 = vmatpush1.xpose.msra.mxu0 0.0
        %658 = vmatprep.subr.mxu0 0.0
        %659 = vmatpush1.xpose.msra.mxu0 0.0
        %660 = vmatprep.subr.mxu0 0.0
        %661 = vmatpush1.xpose.msra.mxu0 0.0
        %662 = vmatprep.subr.mxu0 0.0
        %663 = vmatpush1.xpose.msra.mxu0 0.0
        %664 = vmatprep.subr.mxu0 0.0
        %665 = vmatpush1.xpose.msra.mxu0 0.0
        %666 = vmatprep.subr.mxu0 0.0
        %667 = vmatpush1.xpose.msra.mxu0 0.0
        %668 = vmatprep.subr.mxu0 0.0
        %669 = vmatpush1.xpose.msra.mxu0 0.0
        %670 = vmatprep.subr.mxu0 0.0
        %671 = vmatpush1.xpose.msra.mxu0 0.0
        %672 = vmatprep.subr.mxu0 0.0
        %673 = vmatpush1.xpose.msra.mxu0 0.0
        %674 = vmatprep.subr.mxu0 0.0
        %675 = vmatpush1.xpose.msra.mxu0 0.0
        %676 = vmatprep.subr.mxu0 0.0
        %677 = vmatpush1.xpose.msra.mxu0 0.0
        %678 = vmatprep.subr.mxu0 0.0
        %679 = vmatpush1.xpose.msra.mxu0 0.0
        %680 = vmatprep.subr.mxu0 0.0
        %681 = vmatpush1.xpose.msra.mxu0 0.0
        %682 = vmatprep.subr.mxu0 0.0
        %683 = vmatpush1.xpose.msra.mxu0 %v645
        %684 = vmatprep.subr.mxu0 0.0
        %685 = vmatpush2.xpose.msra.mxu0 0.0
        %686 = vmatprep.subr.mxu0 0.0
        %687 = vmatpush2.xpose.msra.mxu0 0.0
        %688 = vmatprep.subr.mxu0 0.0
        %689 = vmatpush2.xpose.msra.mxu0 0.0
        %690 = vmatprep.subr.mxu0 0.0
        %691 = vmatpush2.xpose.msra.mxu0 0.0
        %692 = vmatprep.subr.mxu0 0.0
        %693 = vmatpush2.xpose.msra.mxu0 0.0
        %694 = vmatprep.subr.mxu0 0.0
        %695 = vmatpush2.xpose.msra.mxu0 0.0
        %696 = vmatprep.subr.mxu0 0.0
        %697 = vmatpush2.xpose.msra.mxu0 0.0
        %698 = vmatprep.subr.mxu0 0.0
        %699 = vmatpush2.xpose.msra.mxu0 0.0
        %700 = vmatprep.subr.mxu0 0.0
        %701 = vmatpush2.xpose.msra.mxu0 0.0
        %702 = vmatprep.subr.mxu0 0.0
        %703 = vmatpush2.xpose.msra.mxu0 0.0
        %704 = vmatprep.subr.mxu0 0.0
        %705 = vmatpush2.xpose.msra.mxu0 0.0
        %706 = vmatprep.subr.mxu0 0.0
        %707 = vmatpush2.xpose.msra.mxu0 0.0
        %708 = vmatprep.subr.mxu0 0.0
        %709 = vmatpush2.xpose.msra.mxu0 0.0
        %710 = vmatprep.subr.mxu0 0.0
        %711 = vmatpush2.xpose.msra.mxu0 0.0
        %712 = vmatprep.subr.mxu0 0.0
        %713 = vmatpush2.xpose.msra.mxu0 0.0
        %714 = vmatprep.subr.mxu0 0.0
        %715 = vmatpush2.xpose.msra.mxu0 0.0
        %716 = vmatprep.mubr.f32.mxu0 0.0
        %717 = vmatmul.mubr.f32.gmra.mxu0 %v639
        %v718 = vpop.f32.mrf.mxu0
        %v719 = vadd.f32 0.0, %v718
        %v720 = vpop.f32.mrf.mxu0
        %721 = vdwg.mxu0
        %v722 = vmul.f32 %v719, 0.25
        %v723 = vadd.f32 %v722, %v323
        %vm724 = vcmask 64512
        %v725 = vsel %vm724, %v723, -inf
        %726 = vmax.xlane.f32.xlu0 %v725
        %v727 = vpop.xlane.xlu0 %726
        %v728 = vsub.f32 %v723, %v727
        %v729 = vmul.f32 %v728, 1.442695
        %v730 = vpow.pop %v729
        %v731 = vsel %vm724, %v730, 0.0
        %732 = vadd.xlane.f32.xlu0 %v731
        %v733 = vpop.xlane.xlu0 %732
        %v734 = vrcp.pop %v733
        %v735 = vmul.f32 %v730, %v734
        %v737 = vsel %vm724, %v735, 0
        %739 = vmatprep.subr.mxu0 0.0
        %740 = vmatpush1.msra.mxu0 0.0
        %741 = vmatprep.subr.mxu0 0.0
        %742 = vmatpush1.msra.mxu0 0.0
        %743 = vmatprep.subr.mxu0 0.0
        %744 = vmatpush1.msra.mxu0 0.0
        %745 = vmatprep.subr.mxu0 0.0
        %746 = vmatpush1.msra.mxu0 0.0
        %747 = vmatprep.subr.mxu0 0.0
        %748 = vmatpush1.msra.mxu0 0.0
        %749 = vmatprep.subr.mxu0 0.0
        %750 = vmatpush1.msra.mxu0 0.0
        %751 = vmatprep.subr.mxu0 0.0
        %752 = vmatpush1.msra.mxu0 0.0
        %753 = vmatprep.subr.mxu0 0.0
        %754 = vmatpush1.msra.mxu0 0.0
        %755 = vmatprep.subr.mxu0 0.0
        %756 = vmatpush1.msra.mxu0 0.0
        %757 = vmatprep.subr.mxu0 0.0
        %758 = vmatpush1.msra.mxu0 0.0
        %759 = vmatprep.subr.mxu0 0.0
        %760 = vmatpush1.msra.mxu0 0.0
        %761 = vmatprep.subr.mxu0 0.0
        %762 = vmatpush1.msra.mxu0 0.0
        %763 = vmatprep.subr.mxu0 0.0
        %764 = vmatpush1.msra.mxu0 0.0
        %765 = vmatprep.subr.mxu0 0.0
        %766 = vmatpush1.msra.mxu0 0.0
        %767 = vmatprep.subr.mxu0 0.0
        %768 = vmatpush1.msra.mxu0 0.0
        %769 = vmatprep.subr.mxu0 0.0
        %770 = vmatpush1.msra.mxu0 %v651
        %771 = vmatprep.subr.mxu0 0.0
        %772 = vmatpush2.msra.mxu0 0.0
        %773 = vmatprep.subr.mxu0 0.0
        %774 = vmatpush2.msra.mxu0 0.0
        %775 = vmatprep.subr.mxu0 0.0
        %776 = vmatpush2.msra.mxu0 0.0
        %777 = vmatprep.subr.mxu0 0.0
        %778 = vmatpush2.msra.mxu0 0.0
        %779 = vmatprep.subr.mxu0 0.0
        %780 = vmatpush2.msra.mxu0 0.0
        %781 = vmatprep.subr.mxu0 0.0
        %782 = vmatpush2.msra.mxu0 0.0
        %783 = vmatprep.subr.mxu0 0.0
        %784 = vmatpush2.msra.mxu0 0.0
        %785 = vmatprep.subr.mxu0 0.0
        %786 = vmatpush2.msra.mxu0 0.0
        %787 = vmatprep.subr.mxu0 0.0
        %788 = vmatpush2.msra.mxu0 0.0
        %789 = vmatprep.subr.mxu0 0.0
        %790 = vmatpush2.msra.mxu0 0.0
        %791 = vmatprep.subr.mxu0 0.0
        %792 = vmatpush2.msra.mxu0 0.0
        %793 = vmatprep.subr.mxu0 0.0
        %794 = vmatpush2.msra.mxu0 0.0
        %795 = vmatprep.subr.mxu0 0.0
        %796 = vmatpush2.msra.mxu0 0.0
        %797 = vmatprep.subr.mxu0 0.0
        %798 = vmatpush2.msra.mxu0 0.0
        %799 = vmatprep.subr.mxu0 0.0
        %800 = vmatpush2.msra.mxu0 0.0
        %801 = vmatprep.subr.mxu0 0.0
        %802 = vmatpush2.msra.mxu0 0.0
        %803 = vmatprep.mubr.f32.mxu0 0.0
        %804 = vmatmul.mubr.f32.gmra.mxu0 %v737
        %v805 = vpop.f32.mrf.mxu0
        %v806 = vadd.f32 0.0, %v805
        %v807 = vpop.f32.mrf.mxu0
        %808 = vdwg.mxu0
        %v809 = vld [vmem:[#allocation4] sm:$0xff]
        %v810 = vld [vmem:[#allocation4 + $0x8] sm:$0xff]
        %v811 = vld [vmem:[#allocation4 + $0x10] sm:$0xff]
        %v812 = vld [vmem:[#allocation4 + $0x18] sm:$0xff]
        %v813 = vld [vmem:[#allocation4 + $0x20] sm:$0xff]
        %v814 = vld [vmem:[#allocation4 + $0x28] sm:$0xff]
        %v815 = vld [vmem:[#allocation4 + $0x30] sm:$0xff]
        %v816 = vld [vmem:[#allocation4 + $0x38] sm:$0xff]
        %v817 = vld [vmem:[#allocation4 + $0x40] sm:$0xff]
        %v818 = vld [vmem:[#allocation4 + $0x48] sm:$0xff]
        %v819 = vld [vmem:[#allocation4 + $0x50] sm:$0xff]
        %v820 = vld [vmem:[#allocation4 + $0x58] sm:$0xff]
        %v821 = vld [vmem:[#allocation4 + $0x60] sm:$0xff]
        %v822 = vld [vmem:[#allocation4 + $0x68] sm:$0xff]
        %v823 = vld [vmem:[#allocation4 + $0x70] sm:$0xff]
        %v824 = vld [vmem:[#allocation4 + $0x78] sm:$0xff]
        %v825 = vld [vmem:[%s4 + $0x4] sm:$0x1]
        %v826 = vlaneseq
        %v827 = vshrl.u32 %v826, 7
        %v828 = vsub.s32 0, %v827
        %v829 = vrot.slane %v825, %v828
        %v830 = vadd.f32 %v490, %v829
        %v831 = vld [vmem:[%s4 + $0x6] sm:$0x1]
        %v832 = vlaneseq
        %v833 = vshrl.u32 %v832, 7
        %v834 = vsub.s32 0, %v833
        %v835 = vrot.slane %v831, %v834
        %v836 = vadd.f32 %v561, %v835
        %v837 = vld [vmem:[%s4 + $0x8] sm:$0x1]
        %v838 = vlaneseq
        %v839 = vshrl.u32 %v838, 7
        %v840 = vsub.s32 0, %v839
        %v841 = vrot.slane %v837, %v840
        %v842 = vadd.f32 %v632, %v841
        %843 = vmatprep.subr.mxu0 0.0
        %844 = vmatpush1.xpose.msra.mxu0 0.0
        %845 = vmatprep.subr.mxu0 0.0
        %846 = vmatpush1.xpose.msra.mxu0 0.0
        %847 = vmatprep.subr.mxu0 0.0
        %848 = vmatpush1.xpose.msra.mxu0 0.0
        %849 = vmatprep.subr.mxu0 0.0
        %850 = vmatpush1.xpose.msra.mxu0 0.0
        %851 = vmatprep.subr.mxu0 0.0
        %852 = vmatpush1.xpose.msra.mxu0 0.0
        %853 = vmatprep.subr.mxu0 0.0
        %854 = vmatpush1.xpose.msra.mxu0 0.0
        %855 = vmatprep.subr.mxu0 0.0
        %856 = vmatpush1.xpose.msra.mxu0 0.0
        %857 = vmatprep.subr.mxu0 0.0
        %858 = vmatpush1.xpose.msra.mxu0 0.0
        %859 = vmatprep.subr.mxu0 0.0
        %860 = vmatpush1.xpose.msra.mxu0 0.0
        %861 = vmatprep.subr.mxu0 0.0
        %862 = vmatpush1.xpose.msra.mxu0 0.0
        %863 = vmatprep.subr.mxu0 0.0
        %864 = vmatpush1.xpose.msra.mxu0 0.0
        %865 = vmatprep.subr.mxu0 0.0
        %866 = vmatpush1.xpose.msra.mxu0 0.0
        %867 = vmatprep.subr.mxu0 0.0
        %868 = vmatpush1.xpose.msra.mxu0 0.0
        %869 = vmatprep.subr.mxu0 0.0
        %870 = vmatpush1.xpose.msra.mxu0 0.0
        %871 = vmatprep.subr.mxu0 0.0
        %872 = vmatpush1.xpose.msra.mxu0 0.0
        %873 = vmatprep.subr.mxu0 0.0
        %874 = vmatpush1.xpose.msra.mxu0 %v836
        %875 = vmatprep.subr.mxu0 0.0
        %876 = vmatpush2.xpose.msra.mxu0 0.0
        %877 = vmatprep.subr.mxu0 0.0
        %878 = vmatpush2.xpose.msra.mxu0 0.0
        %879 = vmatprep.subr.mxu0 0.0
        %880 = vmatpush2.xpose.msra.mxu0 0.0
        %881 = vmatprep.subr.mxu0 0.0
        %882 = vmatpush2.xpose.msra.mxu0 0.0
        %883 = vmatprep.subr.mxu0 0.0
        %884 = vmatpush2.xpose.msra.mxu0 0.0
        %885 = vmatprep.subr.mxu0 0.0
        %886 = vmatpush2.xpose.msra.mxu0 0.0
        %887 = vmatprep.subr.mxu0 0.0
        %888 = vmatpush2.xpose.msra.mxu0 0.0
        %889 = vmatprep.subr.mxu0 0.0
        %890 = vmatpush2.xpose.msra.mxu0 0.0
        %891 = vmatprep.subr.mxu0 0.0
        %892 = vmatpush2.xpose.msra.mxu0 0.0
        %893 = vmatprep.subr.mxu0 0.0
        %894 = vmatpush2.xpose.msra.mxu0 0.0
        %895 = vmatprep.subr.mxu0 0.0
        %896 = vmatpush2.xpose.msra.mxu0 0.0
        %897 = vmatprep.subr.mxu0 0.0
        %898 = vmatpush2.xpose.msra.mxu0 0.0
        %899 = vmatprep.subr.mxu0 0.0
        %900 = vmatpush2.xpose.msra.mxu0 0.0
        %901 = vmatprep.subr.mxu0 0.0
        %902 = vmatpush2.xpose.msra.mxu0 0.0
        %903 = vmatprep.subr.mxu0 0.0
        %904 = vmatpush2.xpose.msra.mxu0 0.0
        %905 = vmatprep.subr.mxu0 0.0
        %906 = vmatpush2.xpose.msra.mxu0 0.0
        %907 = vmatprep.mubr.f32.mxu0 0.0
        %908 = vmatmul.mubr.f32.gmra.mxu0 %v830
        %v909 = vpop.f32.mrf.mxu0
        %v910 = vadd.f32 0.0, %v909
        %v911 = vpop.f32.mrf.mxu0
        %912 = vdwg.mxu0
        %v913 = vmul.f32 %v910, 0.25
        %v914 = vadd.f32 %v913, %v323
        %v915 = vsel %vm724, %v914, -inf
        %916 = vmax.xlane.f32.xlu0 %v915
        %v917 = vpop.xlane.xlu0 %916
        %v918 = vsub.f32 %v914, %v917
        %v919 = vmul.f32 %v918, 1.442695
        %v920 = vpow.pop %v919
        %v921 = vsel %vm724, %v920, 0.0
        %922 = vadd.xlane.f32.xlu0 %v921
        %v923 = vpop.xlane.xlu0 %922
        %v924 = vrcp.pop %v923
        %v925 = vmul.f32 %v920, %v924
        %v927 = vsel %vm724, %v925, 0
        %929 = vmatprep.subr.mxu0 0.0
        %930 = vmatpush1.msra.mxu0 0.0
        %931 = vmatprep.subr.mxu0 0.0
        %932 = vmatpush1.msra.mxu0 0.0
        %933 = vmatprep.subr.mxu0 0.0
        %934 = vmatpush1.msra.mxu0 0.0
        %935 = vmatprep.subr.mxu0 0.0
        %936 = vmatpush1.msra.mxu0 0.0
        %937 = vmatprep.subr.mxu0 0.0
        %938 = vmatpush1.msra.mxu0 0.0
        %939 = vmatprep.subr.mxu0 0.0
        %940 = vmatpush1.msra.mxu0 0.0
        %941 = vmatprep.subr.mxu0 0.0
        %942 = vmatpush1.msra.mxu0 0.0
        %943 = vmatprep.subr.mxu0 0.0
        %944 = vmatpush1.msra.mxu0 0.0
        %945 = vmatprep.subr.mxu0 0.0
        %946 = vmatpush1.msra.mxu0 0.0
        %947 = vmatprep.subr.mxu0 0.0
        %948 = vmatpush1.msra.mxu0 0.0
        %949 = vmatprep.subr.mxu0 0.0
        %950 = vmatpush1.msra.mxu0 0.0
        %951 = vmatprep.subr.mxu0 0.0
        %952 = vmatpush1.msra.mxu0 0.0
        %953 = vmatprep.subr.mxu0 0.0
        %954 = vmatpush1.msra.mxu0 0.0
        %955 = vmatprep.subr.mxu0 0.0
        %956 = vmatpush1.msra.mxu0 0.0
        %957 = vmatprep.subr.mxu0 0.0
        %958 = vmatpush1.msra.mxu0 0.0
        %959 = vmatprep.subr.mxu0 0.0
        %960 = vmatpush1.msra.mxu0 %v842
        %961 = vmatprep.subr.mxu0 0.0
        %962 = vmatpush2.msra.mxu0 0.0
        %963 = vmatprep.subr.mxu0 0.0
        %964 = vmatpush2.msra.mxu0 0.0
        %965 = vmatprep.subr.mxu0 0.0
        %966 = vmatpush2.msra.mxu0 0.0
        %967 = vmatprep.subr.mxu0 0.0
        %968 = vmatpush2.msra.mxu0 0.0
        %969 = vmatprep.subr.mxu0 0.0
        %970 = vmatpush2.msra.mxu0 0.0
        %971 = vmatprep.subr.mxu0 0.0
        %972 = vmatpush2.msra.mxu0 0.0
        %973 = vmatprep.subr.mxu0 0.0
        %974 = vmatpush2.msra.mxu0 0.0
        %975 = vmatprep.subr.mxu0 0.0
        %976 = vmatpush2.msra.mxu0 0.0
        %977 = vmatprep.subr.mxu0 0.0
        %978 = vmatpush2.msra.mxu0 0.0
        %979 = vmatprep.subr.mxu0 0.0
        %980 = vmatpush2.msra.mxu0 0.0
        %981 = vmatprep.subr.mxu0 0.0
        %982 = vmatpush2.msra.mxu0 0.0
        %983 = vmatprep.subr.mxu0 0.0
        %984 = vmatpush2.msra.mxu0 0.0
        %985 = vmatprep.subr.mxu0 0.0
        %986 = vmatpush2.msra.mxu0 0.0
        %987 = vmatprep.subr.mxu0 0.0
        %988 = vmatpush2.msra.mxu0 0.0
        %989 = vmatprep.subr.mxu0 0.0
        %990 = vmatpush2.msra.mxu0 0.0
        %991 = vmatprep.subr.mxu0 0.0
        %992 = vmatpush2.msra.mxu0 0.0
        %993 = vmatprep.mubr.f32.mxu0 0.0
        %994 = vmatmul.mubr.f32.gmra.mxu0 %v927
        %v995 = vpop.f32.mrf.mxu0
        %v996 = vadd.f32 0.0, %v995
        %v997 = vpop.f32.mrf.mxu0
        %998 = vdwg.mxu0
        %s999 = scalar_lea.vmem [#allocation4], 128
        %v1000 = vld [vmem:[%s999] sm:$0xff]
        %v1001 = vld [vmem:[%s999 + $0x8] sm:$0xff]
        %v1002 = vld [vmem:[%s999 + $0x10] sm:$0xff]
        %v1003 = vld [vmem:[%s999 + $0x18] sm:$0xff]
        %v1004 = vld [vmem:[%s999 + $0x20] sm:$0xff]
        %v1005 = vld [vmem:[%s999 + $0x28] sm:$0xff]
        %v1006 = vld [vmem:[%s999 + $0x30] sm:$0xff]
        %v1007 = vld [vmem:[%s999 + $0x38] sm:$0xff]
        %v1008 = vld [vmem:[%s999 + $0x40] sm:$0xff]
        %v1009 = vld [vmem:[%s999 + $0x48] sm:$0xff]
        %v1010 = vld [vmem:[%s999 + $0x50] sm:$0xff]
        %v1011 = vld [vmem:[%s999 + $0x58] sm:$0xff]
        %v1012 = vld [vmem:[%s999 + $0x60] sm:$0xff]
        %v1013 = vld [vmem:[%s999 + $0x68] sm:$0xff]
        %v1014 = vld [vmem:[%s999 + $0x70] sm:$0xff]
        %v1015 = vld [vmem:[%s999 + $0x78] sm:$0xff]
        %1016 = vmatprep.subr.mxu0 0.0
        %1017 = vmatpush1.msra.mxu0 %v1015
        %1018 = vmatprep.subr.mxu0 0.0
        %1019 = vmatpush1.msra.mxu0 %v1014
        %1020 = vmatprep.subr.mxu0 0.0
        %1021 = vmatpush1.msra.mxu0 %v1013
        %1022 = vmatprep.subr.mxu0 0.0
        %1023 = vmatpush1.msra.mxu0 %v1012
        %1024 = vmatprep.subr.mxu0 0.0
        %1025 = vmatpush1.msra.mxu0 %v1011
        %1026 = vmatprep.subr.mxu0 0.0
        %1027 = vmatpush1.msra.mxu0 %v1010
        %1028 = vmatprep.subr.mxu0 0.0
        %1029 = vmatpush1.msra.mxu0 %v1009
        %1030 = vmatprep.subr.mxu0 0.0
        %1031 = vmatpush1.msra.mxu0 %v1008
        %1032 = vmatprep.subr.mxu0 0.0
        %1033 = vmatpush1.msra.mxu0 %v1007
        %1034 = vmatprep.subr.mxu0 0.0
        %1035 = vmatpush1.msra.mxu0 %v1006
        %1036 = vmatprep.subr.mxu0 0.0
        %1037 = vmatpush1.msra.mxu0 %v1005
        %1038 = vmatprep.subr.mxu0 0.0
        %1039 = vmatpush1.msra.mxu0 %v1004
        %1040 = vmatprep.subr.mxu0 0.0
        %1041 = vmatpush1.msra.mxu0 %v1003
        %1042 = vmatprep.subr.mxu0 0.0
        %1043 = vmatpush1.msra.mxu0 %v1002
        %1044 = vmatprep.subr.mxu0 0.0
        %1045 = vmatpush1.msra.mxu0 %v1001
        %1046 = vmatprep.subr.mxu0 0.0
        %1047 = vmatpush1.msra.mxu0 %v1000
        %1048 = vmatprep.subr.mxu0 0.0
        %1049 = vmatpush2.msra.mxu0 0.0
        %1050 = vmatprep.subr.mxu0 0.0
        %1051 = vmatpush2.msra.mxu0 0.0
        %1052 = vmatprep.subr.mxu0 0.0
        %1053 = vmatpush2.msra.mxu0 0.0
        %1054 = vmatprep.subr.mxu0 0.0
        %1055 = vmatpush2.msra.mxu0 0.0
        %1056 = vmatprep.subr.mxu0 0.0
        %1057 = vmatpush2.msra.mxu0 0.0
        %1058 = vmatprep.subr.mxu0 0.0
        %1059 = vmatpush2.msra.mxu0 0.0
        %1060 = vmatprep.subr.mxu0 0.0
        %1061 = vmatpush2.msra.mxu0 0.0
        %1062 = vmatprep.subr.mxu0 0.0
        %1063 = vmatpush2.msra.mxu0 0.0
        %1064 = vmatprep.subr.mxu0 0.0
        %1065 = vmatpush2.msra.mxu0 0.0
        %1066 = vmatprep.subr.mxu0 0.0
        %1067 = vmatpush2.msra.mxu0 0.0
        %1068 = vmatprep.subr.mxu0 0.0
        %1069 = vmatpush2.msra.mxu0 0.0
        %1070 = vmatprep.subr.mxu0 0.0
        %1071 = vmatpush2.msra.mxu0 0.0
        %1072 = vmatprep.subr.mxu0 0.0
        %1073 = vmatpush2.msra.mxu0 0.0
        %1074 = vmatprep.subr.mxu0 0.0
        %1075 = vmatpush2.msra.mxu0 0.0
        %1076 = vmatprep.subr.mxu0 0.0
        %1077 = vmatpush2.msra.mxu0 0.0
        %1078 = vmatprep.subr.mxu0 0.0
        %1079 = vmatpush2.msra.mxu0 0.0
        %1080 = vmatprep.mubr.f32.mxu0 0.0
        %1081 = vmatmul.mubr.f32.gmra.mxu0 %v996
        %v1082 = vpop.f32.mrf.mxu0
        %v1083 = vadd.f32 0.0, %v1082
        %v1084 = vpop.f32.mrf.mxu0
        %1085 = vdwg.mxu0
        %1086 = vmatprep.subr.mxu0 0.0
        %1087 = vmatpush1.msra.mxu0 %v824
        %1088 = vmatprep.subr.mxu0 0.0
        %1089 = vmatpush1.msra.mxu0 %v823
        %1090 = vmatprep.subr.mxu0 0.0
        %1091 = vmatpush1.msra.mxu0 %v822
        %1092 = vmatprep.subr.mxu0 0.0
        %1093 = vmatpush1.msra.mxu0 %v821
        %1094 = vmatprep.subr.mxu0 0.0
        %1095 = vmatpush1.msra.mxu0 %v820
        %1096 = vmatprep.subr.mxu0 0.0
        %1097 = vmatpush1.msra.mxu0 %v819
        %1098 = vmatprep.subr.mxu0 0.0
        %1099 = vmatpush1.msra.mxu0 %v818
        %1100 = vmatprep.subr.mxu0 0.0
        %1101 = vmatpush1.msra.mxu0 %v817
        %1102 = vmatprep.subr.mxu0 0.0
        %1103 = vmatpush1.msra.mxu0 %v816
        %1104 = vmatprep.subr.mxu0 0.0
        %1105 = vmatpush1.msra.mxu0 %v815
        %1106 = vmatprep.subr.mxu0 0.0
        %1107 = vmatpush1.msra.mxu0 %v814
        %1108 = vmatprep.subr.mxu0 0.0
        %1109 = vmatpush1.msra.mxu0 %v813
        %1110 = vmatprep.subr.mxu0 0.0
        %1111 = vmatpush1.msra.mxu0 %v812
        %1112 = vmatprep.subr.mxu0 0.0
        %1113 = vmatpush1.msra.mxu0 %v811
        %1114 = vmatprep.subr.mxu0 0.0
        %1115 = vmatpush1.msra.mxu0 %v810
        %1116 = vmatprep.subr.mxu0 0.0
        %1117 = vmatpush1.msra.mxu0 %v809
        %1118 = vmatprep.subr.mxu0 0.0
        %1119 = vmatpush2.msra.mxu0 0.0
        %1120 = vmatprep.subr.mxu0 0.0
        %1121 = vmatpush2.msra.mxu0 0.0
        %1122 = vmatprep.subr.mxu0 0.0
        %1123 = vmatpush2.msra.mxu0 0.0
        %1124 = vmatprep.subr.mxu0 0.0
        %1125 = vmatpush2.msra.mxu0 0.0
        %1126 = vmatprep.subr.mxu0 0.0
        %1127 = vmatpush2.msra.mxu0 0.0
        %1128 = vmatprep.subr.mxu0 0.0
        %1129 = vmatpush2.msra.mxu0 0.0
        %1130 = vmatprep.subr.mxu0 0.0
        %1131 = vmatpush2.msra.mxu0 0.0
        %1132 = vmatprep.subr.mxu0 0.0
        %1133 = vmatpush2.msra.mxu0 0.0
        %1134 = vmatprep.subr.mxu0 0.0
        %1135 = vmatpush2.msra.mxu0 0.0
        %1136 = vmatprep.subr.mxu0 0.0
        %1137 = vmatpush2.msra.mxu0 0.0
        %1138 = vmatprep.subr.mxu0 0.0
        %1139 = vmatpush2.msra.mxu0 0.0
        %1140 = vmatprep.subr.mxu0 0.0
        %1141 = vmatpush2.msra.mxu0 0.0
        %1142 = vmatprep.subr.mxu0 0.0
        %1143 = vmatpush2.msra.mxu0 0.0
        %1144 = vmatprep.subr.mxu0 0.0
        %1145 = vmatpush2.msra.mxu0 0.0
        %1146 = vmatprep.subr.mxu0 0.0
        %1147 = vmatpush2.msra.mxu0 0.0
        %1148 = vmatprep.subr.mxu0 0.0
        %1149 = vmatpush2.msra.mxu0 0.0
        %1150 = vmatprep.mubr.f32.mxu0 0.0
        %1151 = vmatmul.mubr.f32.gmra.mxu0 %v806
        %v1152 = vpop.f32.mrf.mxu0
        %v1153 = vadd.f32 %v1083, %v1152
        %v1154 = vpop.f32.mrf.mxu0
        %1155 = vdwg.mxu0
        %v1156 = vld [vmem:[%s4 + $0x9] sm:$0x1]
        %v1157 = vlaneseq
        %v1158 = vshrl.u32 %v1157, 7
        %v1159 = vsub.s32 0, %v1158
        %v1160 = vrot.slane %v1156, %v1159
        %v1161 = vadd.f32 %v1153, %v1160
        %v1162 = vadd.f32 %v1161, %v317
        %v1163 = vld [vmem:[%s4 + $0xa] sm:$0x1]
        %v1164 = vld [vmem:[%s4 + $0xb] sm:$0x1]
        %1165 = vadd.xlane.f32.xlu0 %v1162
        %v1166 = vpop.xlane.xlu0 %1165
        %v1167 = vmul.f32 %v1166, 0.03125
        %v1168 = vmul.f32 %v1162, %v1162
        %1169 = vadd.xlane.f32.xlu0 %v1168
        %v1170 = vpop.xlane.xlu0 %1169
        %v1171 = vmul.f32 %v1170, 0.03125
        %v1172 = vmul.f32 %v1167, %v1167
        %v1173 = vsub.f32 %v1171, %v1172
        %v1174 = vmax.f32 %v1173, 0.0
        %v1175 = vadd.f32 %v1174, 1e-12
        %v1176 = vrsqrt.pop %v1175
        %v1177 = vsub.f32 %v1162, %v1167
        %v1178 = vmul.f32 %v1177, %v1176
        %v1179 = vlaneseq
        %v1180 = vshrl.u32 %v1179, 7
        %v1181 = vsub.s32 0, %v1180
        %v1182 = vrot.slane %v1163, %v1181
        %v1183 = vmul.f32 %v1178, %v1182
        %v1184 = vlaneseq
        %v1185 = vshrl.u32 %v1184, 7
        %v1186 = vsub.s32 0, %v1185
        %v1187 = vrot.slane %v1164, %v1186
        %v1188 = vadd.f32 %v1183, %v1187
        %s1189 = scalar_lea.vmem [#allocation4], 256
        %v1190 = vld [vmem:[%s1189] sm:$0xff]
        %v1191 = vld [vmem:[%s1189 + $0x8] sm:$0xff]
        %v1192 = vld [vmem:[%s1189 + $0x10] sm:$0xff]
        %v1193 = vld [vmem:[%s1189 + $0x18] sm:$0xff]
        %v1194 = vld [vmem:[%s1189 + $0x20] sm:$0xff]
        %v1195 = vld [vmem:[%s1189 + $0x28] sm:$0xff]
        %v1196 = vld [vmem:[%s1189 + $0x30] sm:$0xff]
        %v1197 = vld [vmem:[%s1189 + $0x38] sm:$0xff]
        %v1198 = vld [vmem:[%s1189 + $0x40] sm:$0xff]
        %v1199 = vld [vmem:[%s1189 + $0x48] sm:$0xff]
        %v1200 = vld [vmem:[%s1189 + $0x50] sm:$0xff]
        %v1201 = vld [vmem:[%s1189 + $0x58] sm:$0xff]
        %v1202 = vld [vmem:[%s1189 + $0x60] sm:$0xff]
        %v1203 = vld [vmem:[%s1189 + $0x68] sm:$0xff]
        %v1204 = vld [vmem:[%s1189 + $0x70] sm:$0xff]
        %v1205 = vld [vmem:[%s1189 + $0x78] sm:$0xff]
        %v1206 = vld [vmem:[%s4 + $0xc] sm:$0x1]
        %v1207 = vlaneseq
        %v1208 = vshrl.u32 %v1207, 7
        %v1209 = vsub.s32 0, %v1208
        %v1210 = vrot.slane %v1206, %v1209
        %1211 = vmatprep.subr.mxu0 0.0
        %1212 = vmatpush1.msra.mxu0 %v1205
        %1213 = vmatprep.subr.mxu0 0.0
        %1214 = vmatpush1.msra.mxu0 %v1204
        %1215 = vmatprep.subr.mxu0 0.0
        %1216 = vmatpush1.msra.mxu0 %v1203
        %1217 = vmatprep.subr.mxu0 0.0
        %1218 = vmatpush1.msra.mxu0 %v1202
        %1219 = vmatprep.subr.mxu0 0.0
        %1220 = vmatpush1.msra.mxu0 %v1201
        %1221 = vmatprep.subr.mxu0 0.0
        %1222 = vmatpush1.msra.mxu0 %v1200
        %1223 = vmatprep.subr.mxu0 0.0
        %1224 = vmatpush1.msra.mxu0 %v1199
        %1225 = vmatprep.subr.mxu0 0.0
        %1226 = vmatpush1.msra.mxu0 %v1198
        %1227 = vmatprep.subr.mxu0 0.0
        %1228 = vmatpush1.msra.mxu0 %v1197
        %1229 = vmatprep.subr.mxu0 0.0
        %1230 = vmatpush1.msra.mxu0 %v1196
        %1231 = vmatprep.subr.mxu0 0.0
        %1232 = vmatpush1.msra.mxu0 %v1195
        %1233 = vmatprep.subr.mxu0 0.0
        %1234 = vmatpush1.msra.mxu0 %v1194
        %1235 = vmatprep.subr.mxu0 0.0
        %1236 = vmatpush1.msra.mxu0 %v1193
        %1237 = vmatprep.subr.mxu0 0.0
        %1238 = vmatpush1.msra.mxu0 %v1192
        %1239 = vmatprep.subr.mxu0 0.0
        %1240 = vmatpush1.msra.mxu0 %v1191
        %1241 = vmatprep.subr.mxu0 0.0
        %1242 = vmatpush1.msra.mxu0 %v1190
        %1243 = vmatprep.subr.mxu0 0.0
        %1244 = vmatpush2.msra.mxu0 0.0
        %1245 = vmatprep.subr.mxu0 0.0
        %1246 = vmatpush2.msra.mxu0 0.0
        %1247 = vmatprep.subr.mxu0 0.0
        %1248 = vmatpush2.msra.mxu0 0.0
        %1249 = vmatprep.subr.mxu0 0.0
        %1250 = vmatpush2.msra.mxu0 0.0
        %1251 = vmatprep.subr.mxu0 0.0
        %1252 = vmatpush2.msra.mxu0 0.0
        %1253 = vmatprep.subr.mxu0 0.0
        %1254 = vmatpush2.msra.mxu0 0.0
        %1255 = vmatprep.subr.mxu0 0.0
        %1256 = vmatpush2.msra.mxu0 0.0
        %1257 = vmatprep.subr.mxu0 0.0
        %1258 = vmatpush2.msra.mxu0 0.0
        %1259 = vmatprep.subr.mxu0 0.0
        %1260 = vmatpush2.msra.mxu0 0.0
        %1261 = vmatprep.subr.mxu0 0.0
        %1262 = vmatpush2.msra.mxu0 0.0
        %1263 = vmatprep.subr.mxu0 0.0
        %1264 = vmatpush2.msra.mxu0 0.0
        %1265 = vmatprep.subr.mxu0 0.0
        %1266 = vmatpush2.msra.mxu0 0.0
        %1267 = vmatprep.subr.mxu0 0.0
        %1268 = vmatpush2.msra.mxu0 0.0
        %1269 = vmatprep.subr.mxu0 0.0
        %1270 = vmatpush2.msra.mxu0 0.0
        %1271 = vmatprep.subr.mxu0 0.0
        %1272 = vmatpush2.msra.mxu0 0.0
        %1273 = vmatprep.subr.mxu0 0.0
        %1274 = vmatpush2.msra.mxu0 0.0
        %1275 = vmatprep.mubr.f32.mxu0 0.0
        %1276 = vmatmul.mubr.f32.gmra.mxu0 %v1188
        %v1277 = vpop.f32.mrf.mxu0
        %v1278 = vadd.f32 %v1210, %v1277
        %v1279 = vpop.f32.mrf.mxu0
        %1280 = vdwg.mxu0
        %v1281 = vmul.f32 %v1278, 0.5
        %v1282 = vmul.f32 %v1278, 0.044715
        %v1283 = vmul.f32 %v1282, %v1278
        %v1284 = vmul.f32 %v1283, %v1278
        %v1285 = vadd.f32 %v1278, %v1284
        %v1286 = vmul.f32 %v1285, 0.7978846
        %v1287 = vtanh.pop %v1286
        %v1288 = vadd.f32 %v1287, 1.0
        %v1289 = vmul.f32 %v1281, %v1288
        %s1290 = scalar_lea.vmem [#allocation4], 384
        %v1291 = vld [vmem:[%s1290] sm:$0xff]
        %v1292 = vld [vmem:[%s1290 + $0x8] sm:$0xff]
        %v1293 = vld [vmem:[%s1290 + $0x10] sm:$0xff]
        %v1294 = vld [vmem:[%s1290 + $0x18] sm:$0xff]
        %v1295 = vld [vmem:[%s1290 + $0x20] sm:$0xff]
        %v1296 = vld [vmem:[%s1290 + $0x28] sm:$0xff]
        %v1297 = vld [vmem:[%s1290 + $0x30] sm:$0xff]
        %v1298 = vld [vmem:[%s1290 + $0x38] sm:$0xff]
        %v1299 = vld [vmem:[%s1290 + $0x40] sm:$0xff]
        %v1300 = vld [vmem:[%s1290 + $0x48] sm:$0xff]
        %v1301 = vld [vmem:[%s1290 + $0x50] sm:$0xff]
        %v1302 = vld [vmem:[%s1290 + $0x58] sm:$0xff]
        %v1303 = vld [vmem:[%s1290 + $0x60] sm:$0xff]
        %v1304 = vld [vmem:[%s1290 + $0x68] sm:$0xff]
        %v1305 = vld [vmem:[%s1290 + $0x70] sm:$0xff]
        %v1306 = vld [vmem:[%s1290 + $0x78] sm:$0xff]
        %v1307 = vld [vmem:[%s4 + $0xd] sm:$0x1]
        %v1308 = vlaneseq
        %v1309 = vshrl.u32 %v1308, 7
        %v1310 = vsub.s32 0, %v1309
        %v1311 = vrot.slane %v1307, %v1310
        %1312 = vmatprep.subr.mxu0 0.0
        %1313 = vmatpush1.msra.mxu0 %v1306
        %1314 = vmatprep.subr.mxu0 0.0
        %1315 = vmatpush1.msra.mxu0 %v1305
        %1316 = vmatprep.subr.mxu0 0.0
        %1317 = vmatpush1.msra.mxu0 %v1304
        %1318 = vmatprep.subr.mxu0 0.0
        %1319 = vmatpush1.msra.mxu0 %v1303
        %1320 = vmatprep.subr.mxu0 0.0
        %1321 = vmatpush1.msra.mxu0 %v1302
        %1322 = vmatprep.subr.mxu0 0.0
        %1323 = vmatpush1.msra.mxu0 %v1301
        %1324 = vmatprep.subr.mxu0 0.0
        %1325 = vmatpush1.msra.mxu0 %v1300
        %1326 = vmatprep.subr.mxu0 0.0
        %1327 = vmatpush1.msra.mxu0 %v1299
        %1328 = vmatprep.subr.mxu0 0.0
        %1329 = vmatpush1.msra.mxu0 %v1298
        %1330 = vmatprep.subr.mxu0 0.0
        %1331 = vmatpush1.msra.mxu0 %v1297
        %1332 = vmatprep.subr.mxu0 0.0
        %1333 = vmatpush1.msra.mxu0 %v1296
        %1334 = vmatprep.subr.mxu0 0.0
        %1335 = vmatpush1.msra.mxu0 %v1295
        %1336 = vmatprep.subr.mxu0 0.0
        %1337 = vmatpush1.msra.mxu0 %v1294
        %1338 = vmatprep.subr.mxu0 0.0
        %1339 = vmatpush1.msra.mxu0 %v1293
        %1340 = vmatprep.subr.mxu0 0.0
        %1341 = vmatpush1.msra.mxu0 %v1292
        %1342 = vmatprep.subr.mxu0 0.0
        %1343 = vmatpush1.msra.mxu0 %v1291
        %1344 = vmatprep.subr.mxu0 0.0
        %1345 = vmatpush2.msra.mxu0 0.0
        %1346 = vmatprep.subr.mxu0 0.0
        %1347 = vmatpush2.msra.mxu0 0.0
        %1348 = vmatprep.subr.mxu0 0.0
        %1349 = vmatpush2.msra.mxu0 0.0
        %1350 = vmatprep.subr.mxu0 0.0
        %1351 = vmatpush2.msra.mxu0 0.0
        %1352 = vmatprep.subr.mxu0 0.0
        %1353 = vmatpush2.msra.mxu0 0.0
        %1354 = vmatprep.subr.mxu0 0.0
        %1355 = vmatpush2.msra.mxu0 0.0
        %1356 = vmatprep.subr.mxu0 0.0
        %1357 = vmatpush2.msra.mxu0 0.0
        %1358 = vmatprep.subr.mxu0 0.0
        %1359 = vmatpush2.msra.mxu0 0.0
        %1360 = vmatprep.subr.mxu0 0.0
        %1361 = vmatpush2.msra.mxu0 0.0
        %1362 = vmatprep.subr.mxu0 0.0
        %1363 = vmatpush2.msra.mxu0 0.0
        %1364 = vmatprep.subr.mxu0 0.0
        %1365 = vmatpush2.msra.mxu0 0.0
        %1366 = vmatprep.subr.mxu0 0.0
        %1367 = vmatpush2.msra.mxu0 0.0
        %1368 = vmatprep.subr.mxu0 0.0
        %1369 = vmatpush2.msra.mxu0 0.0
        %1370 = vmatprep.subr.mxu0 0.0
        %1371 = vmatpush2.msra.mxu0 0.0
        %1372 = vmatprep.subr.mxu0 0.0
        %1373 = vmatpush2.msra.mxu0 0.0
        %1374 = vmatprep.subr.mxu0 0.0
        %1375 = vmatpush2.msra.mxu0 0.0
        %1376 = vmatprep.mubr.f32.mxu0 0.0
        %1377 = vmatmul.mubr.f32.gmra.mxu0 %v1289
        %v1378 = vpop.f32.mrf.mxu0
        %v1379 = vadd.f32 %v1311, %v1378
        %v1380 = vpop.f32.mrf.mxu0
        %1381 = vdwg.mxu0
        %v1382 = vadd.f32 %v1379, %v1188
        %v1383 = vld [vmem:[%s4 + $0xe] sm:$0x1]
        %v1384 = vld [vmem:[%s4 + $0xf] sm:$0x1]
        %1385 = vadd.xlane.f32.xlu0 %v1382
        %v1386 = vpop.xlane.xlu0 %1385
        %v1387 = vmul.f32 %v1386, 0.03125
        %v1388 = vmul.f32 %v1382, %v1382
        %1389 = vadd.xlane.f32.xlu0 %v1388
        %v1390 = vpop.xlane.xlu0 %1389
        %v1391 = vmul.f32 %v1390, 0.03125
        %v1392 = vmul.f32 %v1387, %v1387
        %v1393 = vsub.f32 %v1391, %v1392
        %v1394 = vmax.f32 %v1393, 0.0
        %v1395 = vadd.f32 %v1394, 1e-12
        %v1396 = vrsqrt.pop %v1395
        %v1397 = vsub.f32 %v1382, %v1387
        %v1398 = vmul.f32 %v1397, %v1396
        %v1399 = vlaneseq
        %v1400 = vshrl.u32 %v1399, 7
        %v1401 = vsub.s32 0, %v1400
        %v1402 = vrot.slane %v1383, %v1401
        %v1403 = vmul.f32 %v1398, %v1402
        %v1404 = vlaneseq
        %v1405 = vshrl.u32 %v1404, 7
        %v1406 = vsub.s32 0, %v1405
        %v1407 = vrot.slane %v1384, %v1406
        %v1408 = vadd.f32 %v1403, %v1407
        %s1409 = scalar_lea.vmem [#allocation2], 768
        %v1410 = vld [vmem:[%s1409] sm:$0xff]
        %v1411 = vld [vmem:[%s1409 + $0x8] sm:$0xff]
        %v1412 = vld [vmem:[%s1409 + $0x10] sm:$0xff]
        %v1413 = vld [vmem:[%s1409 + $0x18] sm:$0xff]
        %v1414 = vld [vmem:[%s1409 + $0x20] sm:$0xff]
        %v1415 = vld [vmem:[%s1409 + $0x28] sm:$0xff]
        %v1416 = vld [vmem:[%s1409 + $0x30] sm:$0xff]
        %v1417 = vld [vmem:[%s1409 + $0x38] sm:$0xff]
        %v1418 = vld [vmem:[%s1409 + $0x40] sm:$0xff]
        %v1419 = vld [vmem:[%s1409 + $0x48] sm:$0xff]
        %v1420 = vld [vmem:[%s1409 + $0x50] sm:$0xff]
        %v1421 = vld [vmem:[%s1409 + $0x58] sm:$0xff]
        %v1422 = vld [vmem:[%s1409 + $0x60] sm:$0xff]
        %v1423 = vld [vmem:[%s1409 + $0x68] sm:$0xff]
        %v1424 = vld [vmem:[%s1409 + $0x70] sm:$0xff]
        %v1425 = vld [vmem:[%s1409 + $0x78] sm:$0xff]
        %v1426 = vld [vmem:[%s1409 + $0x80] sm:$0xff]
        %v1427 = vld [vmem:[%s1409 + $0x88] sm:$0xff]
        %v1428 = vld [vmem:[%s1409 + $0x90] sm:$0xff]
        %v1429 = vld [vmem:[%s1409 + $0x98] sm:$0xff]
        %v1430 = vld [vmem:[%s1409 + $0xa0] sm:$0xff]
        %v1431 = vld [vmem:[%s1409 + $0xa8] sm:$0xff]
        %v1432 = vld [vmem:[%s1409 + $0xb0] sm:$0xff]
        %v1433 = vld [vmem:[%s1409 + $0xb8] sm:$0xff]
        %v1434 = vld [vmem:[%s1409 + $0xc0] sm:$0xff]
        %v1435 = vld [vmem:[%s1409 + $0xc8] sm:$0xff]
        %v1436 = vld [vmem:[%s1409 + $0xd0] sm:$0xff]
        %v1437 = vld [vmem:[%s1409 + $0xd8] sm:$0xff]
        %v1438 = vld [vmem:[%s1409 + $0xe0] sm:$0xff]
        %v1439 = vld [vmem:[%s1409 + $0xe8] sm:$0xff]
        %v1440 = vld [vmem:[%s1409 + $0xf0] sm:$0xff]
        %v1441 = vld [vmem:[%s1409 + $0xf8] sm:$0xff]
        %v1442 = vld [vmem:[%s1409 + $0x100] sm:$0xff]
        %v1443 = vld [vmem:[%s1409 + $0x108] sm:$0xff]
        %v1444 = vld [vmem:[%s1409 + $0x110] sm:$0xff]
        %v1445 = vld [vmem:[%s1409 + $0x118] sm:$0xff]
        %v1446 = vld [vmem:[%s1409 + $0x120] sm:$0xff]
        %v1447 = vld [vmem:[%s1409 + $0x128] sm:$0xff]
        %v1448 = vld [vmem:[%s1409 + $0x130] sm:$0xff]
        %v1449 = vld [vmem:[%s1409 + $0x138] sm:$0xff]
        %v1450 = vld [vmem:[%s1409 + $0x140] sm:$0xff]
        %v1451 = vld [vmem:[%s1409 + $0x148] sm:$0xff]
        %v1452 = vld [vmem:[%s1409 + $0x150] sm:$0xff]
        %v1453 = vld [vmem:[%s1409 + $0x158] sm:$0xff]
        %v1454 = vld [vmem:[%s1409 + $0x160] sm:$0xff]
        %v1455 = vld [vmem:[%s1409 + $0x168] sm:$0xff]
        %v1456 = vld [vmem:[%s1409 + $0x170] sm:$0xff]
        %v1457 = vld [vmem:[%s1409 + $0x178] sm:$0xff]
        %v1458 = vld [vmem:[%s1409 + $0x180] sm:$0xff]
        %v1459 = vld [vmem:[%s1409 + $0x188] sm:$0xff]
        %v1460 = vld [vmem:[%s1409 + $0x190] sm:$0xff]
        %v1461 = vld [vmem:[%s1409 + $0x198] sm:$0xff]
        %v1462 = vld [vmem:[%s1409 + $0x1a0] sm:$0xff]
        %v1463 = vld [vmem:[%s1409 + $0x1a8] sm:$0xff]
        %v1464 = vld [vmem:[%s1409 + $0x1b0] sm:$0xff]
        %v1465 = vld [vmem:[%s1409 + $0x1b8] sm:$0xff]
        %v1466 = vld [vmem:[%s1409 + $0x1c0] sm:$0xff]
        %v1467 = vld [vmem:[%s1409 + $0x1c8] sm:$0xff]
        %v1468 = vld [vmem:[%s1409 + $0x1d0] sm:$0xff]
        %v1469 = vld [vmem:[%s1409 + $0x1d8] sm:$0xff]
        %v1470 = vld [vmem:[%s1409 + $0x1e0] sm:$0xff]
        %v1471 = vld [vmem:[%s1409 + $0x1e8] sm:$0xff]
        %v1472 = vld [vmem:[%s1409 + $0x1f0] sm:$0xff]
        %v1473 = vld [vmem:[%s1409 + $0x1f8] sm:$0xff]
        %v1474 = vld [vmem:[%s1409 + $0x200] sm:$0xff]
        %v1475 = vld [vmem:[%s1409 + $0x208] sm:$0xff]
        %v1476 = vld [vmem:[%s1409 + $0x210] sm:$0xff]
        %v1477 = vld [vmem:[%s1409 + $0x218] sm:$0xff]
        %v1478 = vld [vmem:[%s1409 + $0x220] sm:$0xff]
        %v1479 = vld [vmem:[%s1409 + $0x228] sm:$0xff]
        %v1480 = vld [vmem:[%s1409 + $0x230] sm:$0xff]
        %v1481 = vld [vmem:[%s1409 + $0x238] sm:$0xff]
        %v1482 = vld [vmem:[%s1409 + $0x240] sm:$0xff]
        %v1483 = vld [vmem:[%s1409 + $0x248] sm:$0xff]
        %v1484 = vld [vmem:[%s1409 + $0x250] sm:$0xff]
        %v1485 = vld [vmem:[%s1409 + $0x258] sm:$0xff]
        %v1486 = vld [vmem:[%s1409 + $0x260] sm:$0xff]
        %v1487 = vld [vmem:[%s1409 + $0x268] sm:$0xff]
        %v1488 = vld [vmem:[%s1409 + $0x270] sm:$0xff]
        %v1489 = vld [vmem:[%s1409 + $0x278] sm:$0xff]
        %v1490 = vld [vmem:[%s1409 + $0x280] sm:$0xff]
        %v1491 = vld [vmem:[%s1409 + $0x288] sm:$0xff]
        %v1492 = vld [vmem:[%s1409 + $0x290] sm:$0xff]
        %v1493 = vld [vmem:[%s1409 + $0x298] sm:$0xff]
        %v1494 = vld [vmem:[%s1409 + $0x2a0] sm:$0xff]
        %v1495 = vld [vmem:[%s1409 + $0x2a8] sm:$0xff]
        %v1496 = vld [vmem:[%s1409 + $0x2b0] sm:$0xff]
        %v1497 = vld [vmem:[%s1409 + $0x2b8] sm:$0xff]
        %v1498 = vld [vmem:[%s1409 + $0x2c0] sm:$0xff]
        %v1499 = vld [vmem:[%s1409 + $0x2c8] sm:$0xff]
        %v1500 = vld [vmem:[%s1409 + $0x2d0] sm:$0xff]
        %v1501 = vld [vmem:[%s1409 + $0x2d8] sm:$0xff]
        %v1502 = vld [vmem:[%s1409 + $0x2e0] sm:$0xff]
        %v1503 = vld [vmem:[%s1409 + $0x2e8] sm:$0xff]
        %v1504 = vld [vmem:[%s1409 + $0x2f0] sm:$0xff]
        %v1505 = vld [vmem:[%s1409 + $0x2f8] sm:$0xff]
        %1506 = vmatprep.subr.mxu0 %v1501
        %1507 = vmatpush1.msra.mxu0 %v1500
        %1508 = vmatprep.subr.mxu0 %v1495
        %1509 = vmatpush1.msra.mxu0 %v1494
        %1510 = vmatprep.subr.mxu0 %v1489
        %1511 = vmatpush1.msra.mxu0 %v1488
        %1512 = vmatprep.subr.mxu0 %v1483
        %1513 = vmatpush1.msra.mxu0 %v1482
        %1514 = vmatprep.subr.mxu0 %v1477
        %1515 = vmatpush1.msra.mxu0 %v1476
        %1516 = vmatprep.subr.mxu0 %v1471
        %1517 = vmatpush1.msra.mxu0 %v1470
        %1518 = vmatprep.subr.mxu0 %v1465
        %1519 = vmatpush1.msra.mxu0 %v1464
        %1520 = vmatprep.subr.mxu0 %v1459
        %1521 = vmatpush1.msra.mxu0 %v1458
        %1522 = vmatprep.subr.mxu0 %v1453
        %1523 = vmatpush1.msra.mxu0 %v1452
        %1524 = vmatprep.subr.mxu0 %v1447
        %1525 = vmatpush1.msra.mxu0 %v1446
        %1526 = vmatprep.subr.mxu0 %v1441
        %1527 = vmatpush1.msra.mxu0 %v1440
        %1528 = vmatprep.subr.mxu0 %v1435
        %1529 = vmatpush1.msra.mxu0 %v1434
        %1530 = vmatprep.subr.mxu0 %v1429
        %1531 = vmatpush1.msra.mxu0 %v1428
        %1532 = vmatprep.subr.mxu0 %v1423
        %1533 = vmatpush1.msra.mxu0 %v1422
        %1534 = vmatprep.subr.mxu0 %v1417
        %1535 = vmatpush1.msra.mxu0 %v1416
        %1536 = vmatprep.subr.mxu0 %v1411
        %1537 = vmatpush1.msra.mxu0 %v1410
        %1538 = vmatprep.subr.mxu0 0.0
        %1539 = vmatpush2.msra.mxu0 0.0
        %1540 = vmatprep.subr.mxu0 0.0
        %1541 = vmatpush2.msra.mxu0 0.0
        %1542 = vmatprep.subr.mxu0 0.0
        %1543 = vmatpush2.msra.mxu0 0.0
        %1544 = vmatprep.subr.mxu0 0.0
        %1545 = vmatpush2.msra.mxu0 0.0
        %1546 = vmatprep.subr.mxu0 0.0
        %1547 = vmatpush2.msra.mxu0 0.0
        %1548 = vmatprep.subr.mxu0 0.0
        %1549 = vmatpush2.msra.mxu0 0.0
        %1550 = vmatprep.subr.mxu0 0.0
        %1551 = vmatpush2.msra.mxu0 0.0
        %1552 = vmatprep.subr.mxu0 0.0
        %1553 = vmatpush2.msra.mxu0 0.0
        %1554 = vmatprep.subr.mxu0 0.0
        %1555 = vmatpush2.msra.mxu0 0.0
        %1556 = vmatprep.subr.mxu0 0.0
        %1557 = vmatpush2.msra.mxu0 0.0
        %1558 = vmatprep.subr.mxu0 0.0
        %1559 = vmatpush2.msra.mxu0 0.0
        %1560 = vmatprep.subr.mxu0 0.0
        %1561 = vmatpush2.msra.mxu0 0.0
        %1562 = vmatprep.subr.mxu0 0.0
        %1563 = vmatpush2.msra.mxu0 0.0
        %1564 = vmatprep.subr.mxu0 0.0
        %1565 = vmatpush2.msra.mxu0 0.0
        %1566 = vmatprep.subr.mxu0 0.0
        %1567 = vmatpush2.msra.mxu0 0.0
        %1568 = vmatprep.subr.mxu0 0.0
        %1569 = vmatpush2.msra.mxu0 0.0
        %1570 = vmatprep.mubr.f32.mxu0 0.0
        %1571 = vmatmul.mubr.f32.gmra.mxu0 %v1408
        %v1572 = vpop.f32.mrf.mxu0
        %v1573 = vadd.f32 0.0, %v1572
        %v1574 = vpop.f32.mrf.mxu0
        %v1575 = vadd.f32 0.0, %v1574
        %1576 = vdwg.mxu0
        %1577 = vmatprep.subr.mxu0 %v1503
        %1578 = vmatpush1.msra.mxu0 %v1502
        %1579 = vmatprep.subr.mxu0 %v1497
        %1580 = vmatpush1.msra.mxu0 %v1496
        %1581 = vmatprep.subr.mxu0 %v1491
        %1582 = vmatpush1.msra.mxu0 %v1490
        %1583 = vmatprep.subr.mxu0 %v1485
        %1584 = vmatpush1.msra.mxu0 %v1484
        %1585 = vmatprep.subr.mxu0 %v1479
        %1586 = vmatpush1.msra.mxu0 %v1478
        %1587 = vmatprep.subr.mxu0 %v1473
        %1588 = vmatpush1.msra.mxu0 %v1472
        %1589 = vmatprep.subr.mxu0 %v1467
        %1590 = vmatpush1.msra.mxu0 %v1466
        %1591 = vmatprep.subr.mxu0 %v1461
        %1592 = vmatpush1.msra.mxu0 %v1460
        %1593 = vmatprep.subr.mxu0 %v1455
        %1594 = vmatpush1.msra.mxu0 %v1454
        %1595 = vmatprep.subr.mxu0 %v1449
        %1596 = vmatpush1.msra.mxu0 %v1448
        %1597 = vmatprep.subr.mxu0 %v1443
        %1598 = vmatpush1.msra.mxu0 %v1442
        %1599 = vmatprep.subr.mxu0 %v1437
        %1600 = vmatpush1.msra.mxu0 %v1436
        %1601 = vmatprep.subr.mxu0 %v1431
        %1602 = vmatpush1.msra.mxu0 %v1430
        %1603 = vmatprep.subr.mxu0 %v1425
        %1604 = vmatpush1.msra.mxu0 %v1424
        %1605 = vmatprep.subr.mxu0 %v1419
        %1606 = vmatpush1.msra.mxu0 %v1418
        %1607 = vmatprep.subr.mxu0 %v1413
        %1608 = vmatpush1.msra.mxu0 %v1412
        %1609 = vmatprep.subr.mxu0 0.0
        %1610 = vmatpush2.msra.mxu0 0.0
        %1611 = vmatprep.subr.mxu0 0.0
        %1612 = vmatpush2.msra.mxu0 0.0
        %1613 = vmatprep.subr.mxu0 0.0
        %1614 = vmatpush2.msra.mxu0 0.0
        %1615 = vmatprep.subr.mxu0 0.0
        %1616 = vmatpush2.msra.mxu0 0.0
        %1617 = vmatprep.subr.mxu0 0.0
        %1618 = vmatpush2.msra.mxu0 0.0
        %1619 = vmatprep.subr.mxu0 0.0
        %1620 = vmatpush2.msra.mxu0 0.0
        %1621 = vmatprep.subr.mxu0 0.0
        %1622 = vmatpush2.msra.mxu0 0.0
        %1623 = vmatprep.subr.mxu0 0.0
        %1624 = vmatpush2.msra.mxu0 0.0
        %1625 = vmatprep.subr.mxu0 0.0
        %1626 = vmatpush2.msra.mxu0 0.0
        %1627 = vmatprep.subr.mxu0 0.0
        %1628 = vmatpush2.msra.mxu0 0.0
        %1629 = vmatprep.subr.mxu0 0.0
        %1630 = vmatpush2.msra.mxu0 0.0
        %1631 = vmatprep.subr.mxu0 0.0
        %1632 = vmatpush2.msra.mxu0 0.0
        %1633 = vmatprep.subr.mxu0 0.0
        %1634 = vmatpush2.msra.mxu0 0.0
        %1635 = vmatprep.subr.mxu0 0.0
        %1636 = vmatpush2.msra.mxu0 0.0
        %1637 = vmatprep.subr.mxu0 0.0
        %1638 = vmatpush2.msra.mxu0 0.0
        %1639 = vmatprep.subr.mxu0 0.0
        %1640 = vmatpush2.msra.mxu0 0.0
        %1641 = vmatprep.mubr.f32.mxu0 0.0
        %1642 = vmatmul.mubr.f32.gmra.mxu0 %v1408
        %v1643 = vpop.f32.mrf.mxu0
        %v1644 = vadd.f32 0.0, %v1643
        %v1645 = vpop.f32.mrf.mxu0
        %v1646 = vadd.f32 0.0, %v1645
        %1647 = vdwg.mxu0
        %1648 = vmatprep.subr.mxu0 %v1505
        %1649 = vmatpush1.msra.mxu0 %v1504
        %1650 = vmatprep.subr.mxu0 %v1499
        %1651 = vmatpush1.msra.mxu0 %v1498
        %1652 = vmatprep.subr.mxu0 %v1493
        %1653 = vmatpush1.msra.mxu0 %v1492
        %1654 = vmatprep.subr.mxu0 %v1487
        %1655 = vmatpush1.msra.mxu0 %v1486
        %1656 = vmatprep.subr.mxu0 %v1481
        %1657 = vmatpush1.msra.mxu0 %v1480
        %1658 = vmatprep.subr.mxu0 %v1475
        %1659 = vmatpush1.msra.mxu0 %v1474
        %1660 = vmatprep.subr.mxu0 %v1469
        %1661 = vmatpush1.msra.mxu0 %v1468
        %1662 = vmatprep.subr.mxu0 %v1463
        %1663 = vmatpush1.msra.mxu0 %v1462
        %1664 = vmatprep.subr.mxu0 %v1457
        %1665 = vmatpush1.msra.mxu0 %v1456
        %1666 = vmatprep.subr.mxu0 %v1451
        %1667 = vmatpush1.msra.mxu0 %v1450
        %1668 = vmatprep.subr.mxu0 %v1445
        %1669 = vmatpush1.msra.mxu0 %v1444
        %1670 = vmatprep.subr.mxu0 %v1439
        %1671 = vmatpush1.msra.mxu0 %v1438
        %1672 = vmatprep.subr.mxu0 %v1433
        %1673 = vmatpush1.msra.mxu0 %v1432
        %1674 = vmatprep.subr.mxu0 %v1427
        %1675 = vmatpush1.msra.mxu0 %v1426
        %1676 = vmatprep.subr.mxu0 %v1421
        %1677 = vmatpush1.msra.mxu0 %v1420
        %1678 = vmatprep.subr.mxu0 %v1415
        %1679 = vmatpush1.msra.mxu0 %v1414
        %1680 = vmatprep.subr.mxu0 0.0
        %1681 = vmatpush2.msra.mxu0 0.0
        %1682 = vmatprep.subr.mxu0 0.0
        %1683 = vmatpush2.msra.mxu0 0.0
        %1684 = vmatprep.subr.mxu0 0.0
        %1685 = vmatpush2.msra.mxu0 0.0
        %1686 = vmatprep.subr.mxu0 0.0
        %1687 = vmatpush2.msra.mxu0 0.0
        %1688 = vmatprep.subr.mxu0 0.0
        %1689 = vmatpush2.msra.mxu0 0.0
        %1690 = vmatprep.subr.mxu0 0.0
        %1691 = vmatpush2.msra.mxu0 0.0
        %1692 = vmatprep.subr.mxu0 0.0
        %1693 = vmatpush2.msra.mxu0 0.0
        %1694 = vmatprep.subr.mxu0 0.0
        %1695 = vmatpush2.msra.mxu0 0.0
        %1696 = vmatprep.subr.mxu0 0.0
        %1697 = vmatpush2.msra.mxu0 0.0
        %1698 = vmatprep.subr.mxu0 0.0
        %1699 = vmatpush2.msra.mxu0 0.0
        %1700 = vmatprep.subr.mxu0 0.0
        %1701 = vmatpush2.msra.mxu0 0.0
        %1702 = vmatprep.subr.mxu0 0.0
        %1703 = vmatpush2.msra.mxu0 0.0
        %1704 = vmatprep.subr.mxu0 0.0
        %1705 = vmatpush2.msra.mxu0 0.0
        %1706 = vmatprep.subr.mxu0 0.0
        %1707 = vmatpush2.msra.mxu0 0.0
        %1708 = vmatprep.subr.mxu0 0.0
        %1709 = vmatpush2.msra.mxu0 0.0
        %1710 = vmatprep.subr.mxu0 0.0
        %1711 = vmatpush2.msra.mxu0 0.0
        %1712 = vmatprep.mubr.f32.mxu0 0.0
        %1713 = vmatmul.mubr.f32.gmra.mxu0 %v1408
        %v1714 = vpop.f32.mrf.mxu0
        %v1715 = vadd.f32 0.0, %v1714
        %v1716 = vpop.f32.mrf.mxu0
        %v1717 = vadd.f32 0.0, %v1716
        %1718 = vdwg.mxu0
        %v1719 = vld [vmem:[%s4 + $0x10] sm:$0x1]
        %v1720 = vlaneseq
        %v1721 = vshrl.u32 %v1720, 7
        %v1722 = vsub.s32 0, %v1721
        %v1723 = vrot.slane %v1719, %v1722
        %v1724 = vadd.f32 %v1573, %v1723
        %v1725 = vld [vmem:[%s4 + $0x12] sm:$0x1]
        %v1726 = vlaneseq
        %v1727 = vshrl.u32 %v1726, 7
        %v1728 = vsub.s32 0, %v1727
        %v1729 = vrot.slane %v1725, %v1728
        %v1730 = vadd.f32 %v1644, %v1729
        %v1731 = vld [vmem:[%s4 + $0x14] sm:$0x1]
        %v1732 = vlaneseq
        %v1733 = vshrl.u32 %v1732, 7
        %v1734 = vsub.s32 0, %v1733
        %v1735 = vrot.slane %v1731, %v1734
        %v1736 = vadd.f32 %v1715, %v1735
        %1737 = vmatprep.subr.mxu0 0.0
        %1738 = vmatpush1.xpose.msra.mxu0 0.0
        %1739 = vmatprep.subr.mxu0 0.0
        %1740 = vmatpush1.xpose.msra.mxu0 0.0
        %1741 = vmatprep.subr.mxu0 0.0
        %1742 = vmatpush1.xpose.msra.mxu0 0.0
        %1743 = vmatprep.subr.mxu0 0.0
        %1744 = vmatpush1.xpose.msra.mxu0 0.0
        %1745 = vmatprep.subr.mxu0 0.0
        %1746 = vmatpush1.xpose.msra.mxu0 0.0
        %1747 = vmatprep.subr.mxu0 0.0
        %1748 = vmatpush1.xpose.msra.mxu0 0.0
        %1749 = vmatprep.subr.mxu0 0.0
        %1750 = vmatpush1.xpose.msra.mxu0 0.0
        %1751 = vmatprep.subr.mxu0 0.0
        %1752 = vmatpush1.xpose.msra.mxu0 0.0
        %1753 = vmatprep.subr.mxu0 0.0
        %1754 = vmatpush1.xpose.msra.mxu0 0.0
        %1755 = vmatprep.subr.mxu0 0.0
        %1756 = vmatpush1.xpose.msra.mxu0 0.0
        %1757 = vmatprep.subr.mxu0 0.0
        %1758 = vmatpush1.xpose.msra.mxu0 0.0
        %1759 = vmatprep.subr.mxu0 0.0
        %1760 = vmatpush1.xpose.msra.mxu0 0.0
        %1761 = vmatprep.subr.mxu0 0.0
        %1762 = vmatpush1.xpose.msra.mxu0 0.0
        %1763 = vmatprep.subr.mxu0 0.0
        %1764 = vmatpush1.xpose.msra.mxu0 0.0
        %1765 = vmatprep.subr.mxu0 0.0
        %1766 = vmatpush1.xpose.msra.mxu0 0.0
        %1767 = vmatprep.subr.mxu0 0.0
        %1768 = vmatpush1.xpose.msra.mxu0 %v1730
        %1769 = vmatprep.subr.mxu0 0.0
        %1770 = vmatpush2.xpose.msra.mxu0 0.0
        %1771 = vmatprep.subr.mxu0 0.0
        %1772 = vmatpush2.xpose.msra.mxu0 0.0
        %1773 = vmatprep.subr.mxu0 0.0
        %1774 = vmatpush2.xpose.msra.mxu0 0.0
        %1775 = vmatprep.subr.mxu0 0.0
        %1776 = vmatpush2.xpose.msra.mxu0 0.0
        %1777 = vmatprep.subr.mxu0 0.0
        %1778 = vmatpush2.xpose.msra.mxu0 0.0
        %1779 = vmatprep.subr.mxu0 0.0
        %1780 = vmatpush2.xpose.msra.mxu0 0.0
        %1781 = vmatprep.subr.mxu0 0.0
        %1782 = vmatpush2.xpose.msra.mxu0 0.0
        %1783 = vmatprep.subr.mxu0 0.0
        %1784 = vmatpush2.xpose.msra.mxu0 0.0
        %1785 = vmatprep.subr.mxu0 0.0
        %1786 = vmatpush2.xpose.msra.mxu0 0.0
        %1787 = vmatprep.subr.mxu0 0.0
        %1788 = vmatpush2.xpose.msra.mxu0 0.0
        %1789 = vmatprep.subr.mxu0 0.0
        %1790 = vmatpush2.xpose.msra.mxu0 0.0
        %1791 = vmatprep.subr.mxu0 0.0
        %1792 = vmatpush2.xpose.msra.mxu0 0.0
        %1793 = vmatprep.subr.mxu0 0.0
        %1794 = vmatpush2.xpose.msra.mxu0 0.0
        %1795 = vmatprep.subr.mxu0 0.0
        %1796 = vmatpush2.xpose.msra.mxu0 0.0
        %1797 = vmatprep.subr.mxu0 0.0
        %1798 = vmatpush2.xpose.msra.mxu0 0.0
        %1799 = vmatprep.subr.mxu0 0.0
        %1800 = vmatpush2.xpose.msra.mxu0 0.0
        %1801 = vmatprep.mubr.f32.mxu0 0.0
        %1802 = vmatmul.mubr.f32.gmra.mxu0 %v1724
        %v1803 = vpop.f32.mrf.mxu0
        %v1804 = vadd.f32 0.0, %v1803
        %v1805 = vpop.f32.mrf.mxu0
        %1806 = vdwg.mxu0
        %v1807 = vmul.f32 %v1804, 0.25
        %v1808 = vadd.f32 %v1807, %v323
        %v1809 = vsel %vm724, %v1808, -inf
        %1810 = vmax.xlane.f32.xlu0 %v1809
        %v1811 = vpop.xlane.xlu0 %1810
        %v1812 = vsub.f32 %v1808, %v1811
        %v1813 = vmul.f32 %v1812, 1.442695
        %v1814 = vpow.pop %v1813
        %v1815 = vsel %vm724, %v1814, 0.0
        %1816 = vadd.xlane.f32.xlu0 %v1815
        %v1817 = vpop.xlane.xlu0 %1816
        %v1818 = vrcp.pop %v1817
        %v1819 = vmul.f32 %v1814, %v1818
        %v1821 = vsel %vm724, %v1819, 0
        %1823 = vmatprep.subr.mxu0 0.0
        %1824 = vmatpush1.msra.mxu0 0.0
        %1825 = vmatprep.subr.mxu0 0.0
        %1826 = vmatpush1.msra.mxu0 0.0
        %1827 = vmatprep.subr.mxu0 0.0
        %1828 = vmatpush1.msra.mxu0 0.0
        %1829 = vmatprep.subr.mxu0 0.0
        %1830 = vmatpush1.msra.mxu0 0.0
        %1831 = vmatprep.subr.mxu0 0.0
        %1832 = vmatpush1.msra.mxu0 0.0
        %1833 = vmatprep.subr.mxu0 0.0
        %1834 = vmatpush1.msra.mxu0 0.0
        %1835 = vmatprep.subr.mxu0 0.0
        %1836 = vmatpush1.msra.mxu0 0.0
        %1837 = vmatprep.subr.mxu0 0.0
        %1838 = vmatpush1.msra.mxu0 0.0
        %1839 = vmatprep.subr.mxu0 0.0
        %1840 = vmatpush1.msra.mxu0 0.0
        %1841 = vmatprep.subr.mxu0 0.0
        %1842 = vmatpush1.msra.mxu0 0.0
        %1843 = vmatprep.subr.mxu0 0.0
        %1844 = vmatpush1.msra.mxu0 0.0
        %1845 = vmatprep.subr.mxu0 0.0
        %1846 = vmatpush1.msra.mxu0 0.0
        %1847 = vmatprep.subr.mxu0 0.0
        %1848 = vmatpush1.msra.mxu0 0.0
        %1849 = vmatprep.subr.mxu0 0.0
        %1850 = vmatpush1.msra.mxu0 0.0
        %1851 = vmatprep.subr.mxu0 0.0
        %1852 = vmatpush1.msra.mxu0 0.0
        %1853 = vmatprep.subr.mxu0 0.0
        %1854 = vmatpush1.msra.mxu0 %v1736
        %1855 = vmatprep.subr.mxu0 0.0
        %1856 = vmatpush2.msra.mxu0 0.0
        %1857 = vmatprep.subr.mxu0 0.0
        %1858 = vmatpush2.msra.mxu0 0.0
        %1859 = vmatprep.subr.mxu0 0.0
        %1860 = vmatpush2.msra.mxu0 0.0
        %1861 = vmatprep.subr.mxu0 0.0
        %1862 = vmatpush2.msra.mxu0 0.0
        %1863 = vmatprep.subr.mxu0 0.0
        %1864 = vmatpush2.msra.mxu0 0.0
        %1865 = vmatprep.subr.mxu0 0.0
        %1866 = vmatpush2.msra.mxu0 0.0
        %1867 = vmatprep.subr.mxu0 0.0
        %1868 = vmatpush2.msra.mxu0 0.0
        %1869 = vmatprep.subr.mxu0 0.0
        %1870 = vmatpush2.msra.mxu0 0.0
        %1871 = vmatprep.subr.mxu0 0.0
        %1872 = vmatpush2.msra.mxu0 0.0
        %1873 = vmatprep.subr.mxu0 0.0
        %1874 = vmatpush2.msra.mxu0 0.0
        %1875 = vmatprep.subr.mxu0 0.0
        %1876 = vmatpush2.msra.mxu0 0.0
        %1877 = vmatprep.subr.mxu0 0.0
        %1878 = vmatpush2.msra.mxu0 0.0
        %1879 = vmatprep.subr.mxu0 0.0
        %1880 = vmatpush2.msra.mxu0 0.0
        %1881 = vmatprep.subr.mxu0 0.0
        %1882 = vmatpush2.msra.mxu0 0.0
        %1883 = vmatprep.subr.mxu0 0.0
        %1884 = vmatpush2.msra.mxu0 0.0
        %1885 = vmatprep.subr.mxu0 0.0
        %1886 = vmatpush2.msra.mxu0 0.0
        %1887 = vmatprep.mubr.f32.mxu0 0.0
        %1888 = vmatmul.mubr.f32.gmra.mxu0 %v1821
        %v1889 = vpop.f32.mrf.mxu0
        %v1890 = vadd.f32 0.0, %v1889
        %v1891 = vpop.f32.mrf.mxu0
        %1892 = vdwg.mxu0
        %s1893 = scalar_lea.vmem [#allocation4], 512
        %v1894 = vld [vmem:[%s1893] sm:$0xff]
        %v1895 = vld [vmem:[%s1893 + $0x8] sm:$0xff]
        %v1896 = vld [vmem:[%s1893 + $0x10] sm:$0xff]
        %v1897 = vld [vmem:[%s1893 + $0x18] sm:$0xff]
        %v1898 = vld [vmem:[%s1893 + $0x20] sm:$0xff]
        %v1899 = vld [vmem:[%s1893 + $0x28] sm:$0xff]
        %v1900 = vld [vmem:[%s1893 + $0x30] sm:$0xff]
        %v1901 = vld [vmem:[%s1893 + $0x38] sm:$0xff]
        %v1902 = vld [vmem:[%s1893 + $0x40] sm:$0xff]
        %v1903 = vld [vmem:[%s1893 + $0x48] sm:$0xff]
        %v1904 = vld [vmem:[%s1893 + $0x50] sm:$0xff]
        %v1905 = vld [vmem:[%s1893 + $0x58] sm:$0xff]
        %v1906 = vld [vmem:[%s1893 + $0x60] sm:$0xff]
        %v1907 = vld [vmem:[%s1893 + $0x68] sm:$0xff]
        %v1908 = vld [vmem:[%s1893 + $0x70] sm:$0xff]
        %v1909 = vld [vmem:[%s1893 + $0x78] sm:$0xff]
        %v1910 = vld [vmem:[%s4 + $0x11] sm:$0x1]
        %v1911 = vlaneseq
        %v1912 = vshrl.u32 %v1911, 7
        %v1913 = vsub.s32 0, %v1912
        %v1914 = vrot.slane %v1910, %v1913
        %v1915 = vadd.f32 %v1575, %v1914
        %v1916 = vld [vmem:[%s4 + $0x13] sm:$0x1]
        %v1917 = vlaneseq
        %v1918 = vshrl.u32 %v1917, 7
        %v1919 = vsub.s32 0, %v1918
        %v1920 = vrot.slane %v1916, %v1919
        %v1921 = vadd.f32 %v1646, %v1920
        %v1922 = vld [vmem:[%s4 + $0x15] sm:$0x1]
        %v1923 = vlaneseq
        %v1924 = vshrl.u32 %v1923, 7
        %v1925 = vsub.s32 0, %v1924
        %v1926 = vrot.slane %v1922, %v1925
        %v1927 = vadd.f32 %v1717, %v1926
        %1928 = vmatprep.subr.mxu0 0.0
        %1929 = vmatpush1.xpose.msra.mxu0 0.0
        %1930 = vmatprep.subr.mxu0 0.0
        %1931 = vmatpush1.xpose.msra.mxu0 0.0
        %1932 = vmatprep.subr.mxu0 0.0
        %1933 = vmatpush1.xpose.msra.mxu0 0.0
        %1934 = vmatprep.subr.mxu0 0.0
        %1935 = vmatpush1.xpose.msra.mxu0 0.0
        %1936 = vmatprep.subr.mxu0 0.0
        %1937 = vmatpush1.xpose.msra.mxu0 0.0
        %1938 = vmatprep.subr.mxu0 0.0
        %1939 = vmatpush1.xpose.msra.mxu0 0.0
        %1940 = vmatprep.subr.mxu0 0.0
        %1941 = vmatpush1.xpose.msra.mxu0 0.0
        %1942 = vmatprep.subr.mxu0 0.0
        %1943 = vmatpush1.xpose.msra.mxu0 0.0
        %1944 = vmatprep.subr.mxu0 0.0
        %1945 = vmatpush1.xpose.msra.mxu0 0.0
        %1946 = vmatprep.subr.mxu0 0.0
        %1947 = vmatpush1.xpose.msra.mxu0 0.0
        %1948 = vmatprep.subr.mxu0 0.0
        %1949 = vmatpush1.xpose.msra.mxu0 0.0
        %1950 = vmatprep.subr.mxu0 0.0
        %1951 = vmatpush1.xpose.msra.mxu0 0.0
        %1952 = vmatprep.subr.mxu0 0.0
        %1953 = vmatpush1.xpose.msra.mxu0 0.0
        %1954 = vmatprep.subr.mxu0 0.0
        %1955 = vmatpush1.xpose.msra.mxu0 0.0
        %1956 = vmatprep.subr.mxu0 0.0
        %1957 = vmatpush1.xpose.msra.mxu0 0.0
        %1958 = vmatprep.subr.mxu0 0.0
        %1959 = vmatpush1.xpose.msra.mxu0 %v1921
        %1960 = vmatprep.subr.mxu0 0.0
        %1961 = vmatpush2.xpose.msra.mxu0 0.0
        %1962 = vmatprep.subr.mxu0 0.0
        %1963 = vmatpush2.xpose.msra.mxu0 0.0
        %1964 = vmatprep.subr.mxu0 0.0
        %1965 = vmatpush2.xpose.msra.mxu0 0.0
        %1966 = vmatprep.subr.mxu0 0.0
        %1967 = vmatpush2.xpose.msra.mxu0 0.0
        %1968 = vmatprep.subr.mxu0 0.0
        %1969 = vmatpush2.xpose.msra.mxu0 0.0
        %1970 = vmatprep.subr.mxu0 0.0
        %1971 = vmatpush2.xpose.msra.mxu0 0.0
        %1972 = vmatprep.subr.mxu0 0.0
        %1973 = vmatpush2.xpose.msra.mxu0 0.0
        %1974 = vmatprep.subr.mxu0 0.0
        %1975 = vmatpush2.xpose.msra.mxu0 0.0
        %1976 = vmatprep.subr.mxu0 0.0
        %1977 = vmatpush2.xpose.msra.mxu0 0.0
        %1978 = vmatprep.subr.mxu0 0.0
        %1979 = vmatpush2.xpose.msra.mxu0 0.0
        %1980 = vmatprep.subr.mxu0 0.0
        %1981 = vmatpush2.xpose.msra.mxu0 0.0
        %1982 = vmatprep.subr.mxu0 0.0
        %1983 = vmatpush2.xpose.msra.mxu0 0.0
        %1984 = vmatprep.subr.mxu0 0.0
        %1985 = vmatpush2.xpose.msra.mxu0 0.0
        %1986 = vmatprep.subr.mxu0 0.0
        %1987 = vmatpush2.xpose.msra.mxu0 0.0
        %1988 = vmatprep.subr.mxu0 0.0
        %1989 = vmatpush2.xpose.msra.mxu0 0.0
        %1990 = vmatprep.subr.mxu0 0.0
        %1991 = vmatpush2.xpose.msra.mxu0 0.0
        %1992 = vmatprep.mubr.f32.mxu0 0.0
        %1993 = vmatmul.mubr.f32.gmra.mxu0 %v1915
        %v1994 = vpop.f32.mrf.mxu0
        %v1995 = vadd.f32 0.0, %v1994
        %v1996 = vpop.f32.mrf.mxu0
        %1997 = vdwg.mxu0
        %v1998 = vmul.f32 %v1995, 0.25
        %v1999 = vadd.f32 %v1998, %v323
        %v2000 = vsel %vm724, %v1999, -inf
        %2001 = vmax.xlane.f32.xlu0 %v2000
        %v2002 = vpop.xlane.xlu0 %2001
        %v2003 = vsub.f32 %v1999, %v2002
        %v2004 = vmul.f32 %v2003, 1.442695
        %v2005 = vpow.pop %v2004
        %v2006 = vsel %vm724, %v2005, 0.0
        %2007 = vadd.xlane.f32.xlu0 %v2006
        %v2008 = vpop.xlane.xlu0 %2007
        %v2009 = vrcp.pop %v2008
        %v2010 = vmul.f32 %v2005, %v2009
        %v2012 = vsel %vm724, %v2010, 0
        %2014 = vmatprep.subr.mxu0 0.0
        %2015 = vmatpush1.msra.mxu0 0.0
        %2016 = vmatprep.subr.mxu0 0.0
        %2017 = vmatpush1.msra.mxu0 0.0
        %2018 = vmatprep.subr.mxu0 0.0
        %2019 = vmatpush1.msra.mxu0 0.0
        %2020 = vmatprep.subr.mxu0 0.0
        %2021 = vmatpush1.msra.mxu0 0.0
        %2022 = vmatprep.subr.mxu0 0.0
        %2023 = vmatpush1.msra.mxu0 0.0
        %2024 = vmatprep.subr.mxu0 0.0
        %2025 = vmatpush1.msra.mxu0 0.0
        %2026 = vmatprep.subr.mxu0 0.0
        %2027 = vmatpush1.msra.mxu0 0.0
        %2028 = vmatprep.subr.mxu0 0.0
        %2029 = vmatpush1.msra.mxu0 0.0
        %2030 = vmatprep.subr.mxu0 0.0
        %2031 = vmatpush1.msra.mxu0 0.0
        %2032 = vmatprep.subr.mxu0 0.0
        %2033 = vmatpush1.msra.mxu0 0.0
        %2034 = vmatprep.subr.mxu0 0.0
        %2035 = vmatpush1.msra.mxu0 0.0
        %2036 = vmatprep.subr.mxu0 0.0
        %2037 = vmatpush1.msra.mxu0 0.0
        %2038 = vmatprep.subr.mxu0 0.0
        %2039 = vmatpush1.msra.mxu0 0.0
        %2040 = vmatprep.subr.mxu0 0.0
        %2041 = vmatpush1.msra.mxu0 0.0
        %2042 = vmatprep.subr.mxu0 0.0
        %2043 = vmatpush1.msra.mxu0 0.0
        %2044 = vmatprep.subr.mxu0 0.0
        %2045 = vmatpush1.msra.mxu0 %v1927
        %2046 = vmatprep.subr.mxu0 0.0
        %2047 = vmatpush2.msra.mxu0 0.0
        %2048 = vmatprep.subr.mxu0 0.0
        %2049 = vmatpush2.msra.mxu0 0.0
        %2050 = vmatprep.subr.mxu0 0.0
        %2051 = vmatpush2.msra.mxu0 0.0
        %2052 = vmatprep.subr.mxu0 0.0
        %2053 = vmatpush2.msra.mxu0 0.0
        %2054 = vmatprep.subr.mxu0 0.0
        %2055 = vmatpush2.msra.mxu0 0.0
        %2056 = vmatprep.subr.mxu0 0.0
        %2057 = vmatpush2.msra.mxu0 0.0
        %2058 = vmatprep.subr.mxu0 0.0
        %2059 = vmatpush2.msra.mxu0 0.0
        %2060 = vmatprep.subr.mxu0 0.0
        %2061 = vmatpush2.msra.mxu0 0.0
        %2062 = vmatprep.subr.mxu0 0.0
        %2063 = vmatpush2.msra.mxu0 0.0
        %2064 = vmatprep.subr.mxu0 0.0
        %2065 = vmatpush2.msra.mxu0 0.0
        %2066 = vmatprep.subr.mxu0 0.0
        %2067 = vmatpush2.msra.mxu0 0.0
        %2068 = vmatprep.subr.mxu0 0.0
        %2069 = vmatpush2.msra.mxu0 0.0
        %2070 = vmatprep.subr.mxu0 0.0
        %2071 = vmatpush2.msra.mxu0 0.0
        %2072 = vmatprep.subr.mxu0 0.0
        %2073 = vmatpush2.msra.mxu0 0.0
        %2074 = vmatprep.subr.mxu0 0.0
        %2075 = vmatpush2.msra.mxu0 0.0
        %2076 = vmatprep.subr.mxu0 0.0
        %2077 = vmatpush2.msra.mxu0 0.0
        %2078 = vmatprep.mubr.f32.mxu0 0.0
        %2079 = vmatmul.mubr.f32.gmra.mxu0 %v2012
        %v2080 = vpop.f32.mrf.mxu0
        %v2081 = vadd.f32 0.0, %v2080
        %v2082 = vpop.f32.mrf.mxu0
        %2083 = vdwg.mxu0
        %s2084 = scalar_lea.vmem [#allocation4], 640
        %v2085 = vld [vmem:[%s2084] sm:$0xff]
        %v2086 = vld [vmem:[%s2084 + $0x8] sm:$0xff]
        %v2087 = vld [vmem:[%s2084 + $0x10] sm:$0xff]
        %v2088 = vld [vmem:[%s2084 + $0x18] sm:$0xff]
        %v2089 = vld [vmem:[%s2084 + $0x20] sm:$0xff]
        %v2090 = vld [vmem:[%s2084 + $0x28] sm:$0xff]
        %v2091 = vld [vmem:[%s2084 + $0x30] sm:$0xff]
        %v2092 = vld [vmem:[%s2084 + $0x38] sm:$0xff]
        %v2093 = vld [vmem:[%s2084 + $0x40] sm:$0xff]
        %v2094 = vld [vmem:[%s2084 + $0x48] sm:$0xff]
        %v2095 = vld [vmem:[%s2084 + $0x50] sm:$0xff]
        %v2096 = vld [vmem:[%s2084 + $0x58] sm:$0xff]
        %v2097 = vld [vmem:[%s2084 + $0x60] sm:$0xff]
        %v2098 = vld [vmem:[%s2084 + $0x68] sm:$0xff]
        %v2099 = vld [vmem:[%s2084 + $0x70] sm:$0xff]
        %v2100 = vld [vmem:[%s2084 + $0x78] sm:$0xff]
        %2101 = vmatprep.subr.mxu0 0.0
        %2102 = vmatpush1.msra.mxu0 %v2100
        %2103 = vmatprep.subr.mxu0 0.0
        %2104 = vmatpush1.msra.mxu0 %v2099
        %2105 = vmatprep.subr.mxu0 0.0
        %2106 = vmatpush1.msra.mxu0 %v2098
        %2107 = vmatprep.subr.mxu0 0.0
        %2108 = vmatpush1.msra.mxu0 %v2097
        %2109 = vmatprep.subr.mxu0 0.0
        %2110 = vmatpush1.msra.mxu0 %v2096
        %2111 = vmatprep.subr.mxu0 0.0
        %2112 = vmatpush1.msra.mxu0 %v2095
        %2113 = vmatprep.subr.mxu0 0.0
        %2114 = vmatpush1.msra.mxu0 %v2094
        %2115 = vmatprep.subr.mxu0 0.0
        %2116 = vmatpush1.msra.mxu0 %v2093
        %2117 = vmatprep.subr.mxu0 0.0
        %2118 = vmatpush1.msra.mxu0 %v2092
        %2119 = vmatprep.subr.mxu0 0.0
        %2120 = vmatpush1.msra.mxu0 %v2091
        %2121 = vmatprep.subr.mxu0 0.0
        %2122 = vmatpush1.msra.mxu0 %v2090
        %2123 = vmatprep.subr.mxu0 0.0
        %2124 = vmatpush1.msra.mxu0 %v2089
        %2125 = vmatprep.subr.mxu0 0.0
        %2126 = vmatpush1.msra.mxu0 %v2088
        %2127 = vmatprep.subr.mxu0 0.0
        %2128 = vmatpush1.msra.mxu0 %v2087
        %2129 = vmatprep.subr.mxu0 0.0
        %2130 = vmatpush1.msra.mxu0 %v2086
        %2131 = vmatprep.subr.mxu0 0.0
        %2132 = vmatpush1.msra.mxu0 %v2085
        %2133 = vmatprep.subr.mxu0 0.0
        %2134 = vmatpush2.msra.mxu0 0.0
        %2135 = vmatprep.subr.mxu0 0.0
        %2136 = vmatpush2.msra.mxu0 0.0
        %2137 = vmatprep.subr.mxu0 0.0
        %2138 = vmatpush2.msra.mxu0 0.0
        %2139 = vmatprep.subr.mxu0 0.0
        %2140 = vmatpush2.msra.mxu0 0.0
        %2141 = vmatprep.subr.mxu0 0.0
        %2142 = vmatpush2.msra.mxu0 0.0
        %2143 = vmatprep.subr.mxu0 0.0
        %2144 = vmatpush2.msra.mxu0 0.0
        %2145 = vmatprep.subr.mxu0 0.0
        %2146 = vmatpush2.msra.mxu0 0.0
        %2147 = vmatprep.subr.mxu0 0.0
        %2148 = vmatpush2.msra.mxu0 0.0
        %2149 = vmatprep.subr.mxu0 0.0
        %2150 = vmatpush2.msra.mxu0 0.0
        %2151 = vmatprep.subr.mxu0 0.0
        %2152 = vmatpush2.msra.mxu0 0.0
        %2153 = vmatprep.subr.mxu0 0.0
        %2154 = vmatpush2.msra.mxu0 0.0
        %2155 = vmatprep.subr.mxu0 0.0
        %2156 = vmatpush2.msra.mxu0 0.0
        %2157 = vmatprep.subr.mxu0 0.0
        %2158 = vmatpush2.msra.mxu0 0.0
        %2159 = vmatprep.subr.mxu0 0.0
        %2160 = vmatpush2.msra.mxu0 0.0
        %2161 = vmatprep.subr.mxu0 0.0
        %2162 = vmatpush2.msra.mxu0 0.0
        %2163 = vmatprep.subr.mxu0 0.0
        %2164 = vmatpush2.msra.mxu0 0.0
        %2165 = vmatprep.mubr.f32.mxu0 0.0
        %2166 = vmatmul.mubr.f32.gmra.mxu0 %v2081
        %v2167 = vpop.f32.mrf.mxu0
        %v2168 = vadd.f32 0.0, %v2167
        %v2169 = vpop.f32.mrf.mxu0
        %2170 = vdwg.mxu0
        %2171 = vmatprep.subr.mxu0 0.0
        %2172 = vmatpush1.msra.mxu0 %v1909
        %2173 = vmatprep.subr.mxu0 0.0
        %2174 = vmatpush1.msra.mxu0 %v1908
        %2175 = vmatprep.subr.mxu0 0.0
        %2176 = vmatpush1.msra.mxu0 %v1907
        %2177 = vmatprep.subr.mxu0 0.0
        %2178 = vmatpush1.msra.mxu0 %v1906
        %2179 = vmatprep.subr.mxu0 0.0
        %2180 = vmatpush1.msra.mxu0 %v1905
        %2181 = vmatprep.subr.mxu0 0.0
        %2182 = vmatpush1.msra.mxu0 %v1904
        %2183 = vmatprep.subr.mxu0 0.0
        %2184 = vmatpush1.msra.mxu0 %v1903
        %2185 = vmatprep.subr.mxu0 0.0
        %2186 = vmatpush1.msra.mxu0 %v1902
        %2187 = vmatprep.subr.mxu0 0.0
        %2188 = vmatpush1.msra.mxu0 %v1901
        %2189 = vmatprep.subr.mxu0 0.0
        %2190 = vmatpush1.msra.mxu0 %v1900
        %2191 = vmatprep.subr.mxu0 0.0
        %2192 = vmatpush1.msra.mxu0 %v1899
        %2193 = vmatprep.subr.mxu0 0.0
        %2194 = vmatpush1.msra.mxu0 %v1898
        %2195 = vmatprep.subr.mxu0 0.0
        %2196 = vmatpush1.msra.mxu0 %v1897
        %2197 = vmatprep.subr.mxu0 0.0
        %2198 = vmatpush1.msra.mxu0 %v1896
        %2199 = vmatprep.subr.mxu0 0.0
        %2200 = vmatpush1.msra.mxu0 %v1895
        %2201 = vmatprep.subr.mxu0 0.0
        %2202 = vmatpush1.msra.mxu0 %v1894
        %2203 = vmatprep.subr.mxu0 0.0
        %2204 = vmatpush2.msra.mxu0 0.0
        %2205 = vmatprep.subr.mxu0 0.0
        %2206 = vmatpush2.msra.mxu0 0.0
        %2207 = vmatprep.subr.mxu0 0.0
        %2208 = vmatpush2.msra.mxu0 0.0
        %2209 = vmatprep.subr.mxu0 0.0
        %2210 = vmatpush2.msra.mxu0 0.0
        %2211 = vmatprep.subr.mxu0 0.0
        %2212 = vmatpush2.msra.mxu0 0.0
        %2213 = vmatprep.subr.mxu0 0.0
        %2214 = vmatpush2.msra.mxu0 0.0
        %2215 = vmatprep.subr.mxu0 0.0
        %2216 = vmatpush2.msra.mxu0 0.0
        %2217 = vmatprep.subr.mxu0 0.0
        %2218 = vmatpush2.msra.mxu0 0.0
        %2219 = vmatprep.subr.mxu0 0.0
        %2220 = vmatpush2.msra.mxu0 0.0
        %2221 = vmatprep.subr.mxu0 0.0
        %2222 = vmatpush2.msra.mxu0 0.0
        %2223 = vmatprep.subr.mxu0 0.0
        %2224 = vmatpush2.msra.mxu0 0.0
        %2225 = vmatprep.subr.mxu0 0.0
        %2226 = vmatpush2.msra.mxu0 0.0
        %2227 = vmatprep.subr.mxu0 0.0
        %2228 = vmatpush2.msra.mxu0 0.0
        %2229 = vmatprep.subr.mxu0 0.0
        %2230 = vmatpush2.msra.mxu0 0.0
        %2231 = vmatprep.subr.mxu0 0.0
        %2232 = vmatpush2.msra.mxu0 0.0
        %2233 = vmatprep.subr.mxu0 0.0
        %2234 = vmatpush2.msra.mxu0 0.0
        %2235 = vmatprep.mubr.f32.mxu0 0.0
        %2236 = vmatmul.mubr.f32.gmra.mxu0 %v1890
        %v2237 = vpop.f32.mrf.mxu0
        %v2238 = vadd.f32 %v2168, %v2237
        %v2239 = vpop.f32.mrf.mxu0
        %2240 = vdwg.mxu0
        %v2241 = vld [vmem:[%s4 + $0x16] sm:$0x1]
        %v2242 = vlaneseq
        %v2243 = vshrl.u32 %v2242, 7
        %v2244 = vsub.s32 0, %v2243
        %v2245 = vrot.slane %v2241, %v2244
        %v2246 = vadd.f32 %v2238, %v2245
        %v2247 = vadd.f32 %v2246, %v1408
        %v2248 = vld [vmem:[%s4 + $0x17] sm:$0x1]
        %v2249 = vld [vmem:[%s4 + $0x18] sm:$0x1]
        %2250 = vadd.xlane.f32.xlu0 %v2247
        %v2251 = vpop.xlane.xlu0 %2250
        %v2252 = vmul.f32 %v2251, 0.03125
        %v2253 = vmul.f32 %v2247, %v2247
        %2254 = vadd.xlane.f32.xlu0 %v2253
        %v2255 = vpop.xlane.xlu0 %2254
        %v2256 = vmul.f32 %v2255, 0.03125
        %v2257 = vmul.f32 %v2252, %v2252
        %v2258 = vsub.f32 %v2256, %v2257
        %v2259 = vmax.f32 %v2258, 0.0
        %v2260 = vadd.f32 %v2259, 1e-12
        %v2261 = vrsqrt.pop %v2260
        %v2262 = vsub.f32 %v2247, %v2252
        %v2263 = vmul.f32 %v2262, %v2261
        %v2264 = vlaneseq
        %v2265 = vshrl.u32 %v2264, 7
        %v2266 = vsub.s32 0, %v2265
        %v2267 = vrot.slane %v2248, %v2266
        %v2268 = vmul.f32 %v2263, %v2267
        %v2269 = vlaneseq
        %v2270 = vshrl.u32 %v2269, 7
        %v2271 = vsub.s32 0, %v2270
        %v2272 = vrot.slane %v2249, %v2271
        %v2273 = vadd.f32 %v2268, %v2272
        %s2274 = scalar_lea.vmem [#allocation4], 768
        %v2275 = vld [vmem:[%s2274] sm:$0xff]
        %v2276 = vld [vmem:[%s2274 + $0x8] sm:$0xff]
        %v2277 = vld [vmem:[%s2274 + $0x10] sm:$0xff]
        %v2278 = vld [vmem:[%s2274 + $0x18] sm:$0xff]
        %v2279 = vld [vmem:[%s2274 + $0x20] sm:$0xff]
        %v2280 = vld [vmem:[%s2274 + $0x28] sm:$0xff]
        %v2281 = vld [vmem:[%s2274 + $0x30] sm:$0xff]
        %v2282 = vld [vmem:[%s2274 + $0x38] sm:$0xff]
        %v2283 = vld [vmem:[%s2274 + $0x40] sm:$0xff]
        %v2284 = vld [vmem:[%s2274 + $0x48] sm:$0xff]
        %v2285 = vld [vmem:[%s2274 + $0x50] sm:$0xff]
        %v2286 = vld [vmem:[%s2274 + $0x58] sm:$0xff]
        %v2287 = vld [vmem:[%s2274 + $0x60] sm:$0xff]
        %v2288 = vld [vmem:[%s2274 + $0x68] sm:$0xff]
        %v2289 = vld [vmem:[%s2274 + $0x70] sm:$0xff]
        %v2290 = vld [vmem:[%s2274 + $0x78] sm:$0xff]
        %v2291 = vld [vmem:[%s4 + $0x19] sm:$0x1]
        %v2292 = vlaneseq
        %v2293 = vshrl.u32 %v2292, 7
        %v2294 = vsub.s32 0, %v2293
        %v2295 = vrot.slane %v2291, %v2294
        %2296 = vmatprep.subr.mxu0 0.0
        %2297 = vmatpush1.msra.mxu0 %v2290
        %2298 = vmatprep.subr.mxu0 0.0
        %2299 = vmatpush1.msra.mxu0 %v2289
        %2300 = vmatprep.subr.mxu0 0.0
        %2301 = vmatpush1.msra.mxu0 %v2288
        %2302 = vmatprep.subr.mxu0 0.0
        %2303 = vmatpush1.msra.mxu0 %v2287
        %2304 = vmatprep.subr.mxu0 0.0
        %2305 = vmatpush1.msra.mxu0 %v2286
        %2306 = vmatprep.subr.mxu0 0.0
        %2307 = vmatpush1.msra.mxu0 %v2285
        %2308 = vmatprep.subr.mxu0 0.0
        %2309 = vmatpush1.msra.mxu0 %v2284
        %2310 = vmatprep.subr.mxu0 0.0
        %2311 = vmatpush1.msra.mxu0 %v2283
        %2312 = vmatprep.subr.mxu0 0.0
        %2313 = vmatpush1.msra.mxu0 %v2282
        %2314 = vmatprep.subr.mxu0 0.0
        %2315 = vmatpush1.msra.mxu0 %v2281
        %2316 = vmatprep.subr.mxu0 0.0
        %2317 = vmatpush1.msra.mxu0 %v2280
        %2318 = vmatprep.subr.mxu0 0.0
        %2319 = vmatpush1.msra.mxu0 %v2279
        %2320 = vmatprep.subr.mxu0 0.0
        %2321 = vmatpush1.msra.mxu0 %v2278
        %2322 = vmatprep.subr.mxu0 0.0
        %2323 = vmatpush1.msra.mxu0 %v2277
        %2324 = vmatprep.subr.mxu0 0.0
        %2325 = vmatpush1.msra.mxu0 %v2276
        %2326 = vmatprep.subr.mxu0 0.0
        %2327 = vmatpush1.msra.mxu0 %v2275
        %2328 = vmatprep.subr.mxu0 0.0
        %2329 = vmatpush2.msra.mxu0 0.0
        %2330 = vmatprep.subr.mxu0 0.0
        %2331 = vmatpush2.msra.mxu0 0.0
        %2332 = vmatprep.subr.mxu0 0.0
        %2333 = vmatpush2.msra.mxu0 0.0
        %2334 = vmatprep.subr.mxu0 0.0
        %2335 = vmatpush2.msra.mxu0 0.0
        %2336 = vmatprep.subr.mxu0 0.0
        %2337 = vmatpush2.msra.mxu0 0.0
        %2338 = vmatprep.subr.mxu0 0.0
        %2339 = vmatpush2.msra.mxu0 0.0
        %2340 = vmatprep.subr.mxu0 0.0
        %2341 = vmatpush2.msra.mxu0 0.0
        %2342 = vmatprep.subr.mxu0 0.0
        %2343 = vmatpush2.msra.mxu0 0.0
        %2344 = vmatprep.subr.mxu0 0.0
        %2345 = vmatpush2.msra.mxu0 0.0
        %2346 = vmatprep.subr.mxu0 0.0
        %2347 = vmatpush2.msra.mxu0 0.0
        %2348 = vmatprep.subr.mxu0 0.0
        %2349 = vmatpush2.msra.mxu0 0.0
        %2350 = vmatprep.subr.mxu0 0.0
        %2351 = vmatpush2.msra.mxu0 0.0
        %2352 = vmatprep.subr.mxu0 0.0
        %2353 = vmatpush2.msra.mxu0 0.0
        %2354 = vmatprep.subr.mxu0 0.0
        %2355 = vmatpush2.msra.mxu0 0.0
        %2356 = vmatprep.subr.mxu0 0.0
        %2357 = vmatpush2.msra.mxu0 0.0
        %2358 = vmatprep.subr.mxu0 0.0
        %2359 = vmatpush2.msra.mxu0 0.0
        %2360 = vmatprep.mubr.f32.mxu0 0.0
        %2361 = vmatmul.mubr.f32.gmra.mxu0 %v2273
        %v2362 = vpop.f32.mrf.mxu0
        %v2363 = vadd.f32 %v2295, %v2362
        %v2364 = vpop.f32.mrf.mxu0
        %2365 = vdwg.mxu0
        %v2366 = vmul.f32 %v2363, 0.5
        %v2367 = vmul.f32 %v2363, 0.044715
        %v2368 = vmul.f32 %v2367, %v2363
        %v2369 = vmul.f32 %v2368, %v2363
        %v2370 = vadd.f32 %v2363, %v2369
        %v2371 = vmul.f32 %v2370, 0.7978846
        %v2372 = vtanh.pop %v2371
        %v2373 = vadd.f32 %v2372, 1.0
        %v2374 = vmul.f32 %v2366, %v2373
        %s2375 = scalar_lea.vmem [#allocation4], 896
        %v2376 = vld [vmem:[%s2375] sm:$0xff]
        %v2377 = vld [vmem:[%s2375 + $0x8] sm:$0xff]
        %v2378 = vld [vmem:[%s2375 + $0x10] sm:$0xff]
        %v2379 = vld [vmem:[%s2375 + $0x18] sm:$0xff]
        %v2380 = vld [vmem:[%s2375 + $0x20] sm:$0xff]
        %v2381 = vld [vmem:[%s2375 + $0x28] sm:$0xff]
        %v2382 = vld [vmem:[%s2375 + $0x30] sm:$0xff]
        %v2383 = vld [vmem:[%s2375 + $0x38] sm:$0xff]
        %v2384 = vld [vmem:[%s2375 + $0x40] sm:$0xff]
        %v2385 = vld [vmem:[%s2375 + $0x48] sm:$0xff]
        %v2386 = vld [vmem:[%s2375 + $0x50] sm:$0xff]
        %v2387 = vld [vmem:[%s2375 + $0x58] sm:$0xff]
        %v2388 = vld [vmem:[%s2375 + $0x60] sm:$0xff]
        %v2389 = vld [vmem:[%s2375 + $0x68] sm:$0xff]
        %v2390 = vld [vmem:[%s2375 + $0x70] sm:$0xff]
        %v2391 = vld [vmem:[%s2375 + $0x78] sm:$0xff]
        %v2392 = vld [vmem:[%s4 + $0x1a] sm:$0x1]
        %v2393 = vlaneseq
        %v2394 = vshrl.u32 %v2393, 7
        %v2395 = vsub.s32 0, %v2394
        %v2396 = vrot.slane %v2392, %v2395
        %2397 = vmatprep.subr.mxu0 0.0
        %2398 = vmatpush1.msra.mxu0 %v2391
        %2399 = vmatprep.subr.mxu0 0.0
        %2400 = vmatpush1.msra.mxu0 %v2390
        %2401 = vmatprep.subr.mxu0 0.0
        %2402 = vmatpush1.msra.mxu0 %v2389
        %2403 = vmatprep.subr.mxu0 0.0
        %2404 = vmatpush1.msra.mxu0 %v2388
        %2405 = vmatprep.subr.mxu0 0.0
        %2406 = vmatpush1.msra.mxu0 %v2387
        %2407 = vmatprep.subr.mxu0 0.0
        %2408 = vmatpush1.msra.mxu0 %v2386
        %2409 = vmatprep.subr.mxu0 0.0
        %2410 = vmatpush1.msra.mxu0 %v2385
        %2411 = vmatprep.subr.mxu0 0.0
        %2412 = vmatpush1.msra.mxu0 %v2384
        %2413 = vmatprep.subr.mxu0 0.0
        %2414 = vmatpush1.msra.mxu0 %v2383
        %2415 = vmatprep.subr.mxu0 0.0
        %2416 = vmatpush1.msra.mxu0 %v2382
        %2417 = vmatprep.subr.mxu0 0.0
        %2418 = vmatpush1.msra.mxu0 %v2381
        %2419 = vmatprep.subr.mxu0 0.0
        %2420 = vmatpush1.msra.mxu0 %v2380
        %2421 = vmatprep.subr.mxu0 0.0
        %2422 = vmatpush1.msra.mxu0 %v2379
        %2423 = vmatprep.subr.mxu0 0.0
        %2424 = vmatpush1.msra.mxu0 %v2378
        %2425 = vmatprep.subr.mxu0 0.0
        %2426 = vmatpush1.msra.mxu0 %v2377
        %2427 = vmatprep.subr.mxu0 0.0
        %2428 = vmatpush1.msra.mxu0 %v2376
        %2429 = vmatprep.subr.mxu0 0.0
        %2430 = vmatpush2.msra.mxu0 0.0
        %2431 = vmatprep.subr.mxu0 0.0
        %2432 = vmatpush2.msra.mxu0 0.0
        %2433 = vmatprep.subr.mxu0 0.0
        %2434 = vmatpush2.msra.mxu0 0.0
        %2435 = vmatprep.subr.mxu0 0.0
        %2436 = vmatpush2.msra.mxu0 0.0
        %2437 = vmatprep.subr.mxu0 0.0
        %2438 = vmatpush2.msra.mxu0 0.0
        %2439 = vmatprep.subr.mxu0 0.0
        %2440 = vmatpush2.msra.mxu0 0.0
        %2441 = vmatprep.subr.mxu0 0.0
        %2442 = vmatpush2.msra.mxu0 0.0
        %2443 = vmatprep.subr.mxu0 0.0
        %2444 = vmatpush2.msra.mxu0 0.0
        %2445 = vmatprep.subr.mxu0 0.0
        %2446 = vmatpush2.msra.mxu0 0.0
        %2447 = vmatprep.subr.mxu0 0.0
        %2448 = vmatpush2.msra.mxu0 0.0
        %2449 = vmatprep.subr.mxu0 0.0
        %2450 = vmatpush2.msra.mxu0 0.0
        %2451 = vmatprep.subr.mxu0 0.0
        %2452 = vmatpush2.msra.mxu0 0.0
        %2453 = vmatprep.subr.mxu0 0.0
        %2454 = vmatpush2.msra.mxu0 0.0
        %2455 = vmatprep.subr.mxu0 0.0
        %2456 = vmatpush2.msra.mxu0 0.0
        %2457 = vmatprep.subr.mxu0 0.0
        %2458 = vmatpush2.msra.mxu0 0.0
        %2459 = vmatprep.subr.mxu0 0.0
        %2460 = vmatpush2.msra.mxu0 0.0
        %2461 = vmatprep.mubr.f32.mxu0 0.0
        %2462 = vmatmul.mubr.f32.gmra.mxu0 %v2374
        %v2463 = vpop.f32.mrf.mxu0
        %v2464 = vadd.f32 %v2396, %v2463
        %v2465 = vpop.f32.mrf.mxu0
        %2466 = vdwg.mxu0
        %v2467 = vadd.f32 %v2464, %v2273
        %v2468 = vld [vmem:[%s4 + $0x1b] sm:$0x1]
        %v2469 = vld [vmem:[%s4 + $0x1c] sm:$0x1]
        %2470 = vadd.xlane.f32.xlu0 %v2467
        %v2471 = vpop.xlane.xlu0 %2470
        %v2472 = vmul.f32 %v2471, 0.03125
        %v2473 = vmul.f32 %v2467, %v2467
        %2474 = vadd.xlane.f32.xlu0 %v2473
        %v2475 = vpop.xlane.xlu0 %2474
        %v2476 = vmul.f32 %v2475, 0.03125
        %v2477 = vmul.f32 %v2472, %v2472
        %v2478 = vsub.f32 %v2476, %v2477
        %v2479 = vmax.f32 %v2478, 0.0
        %v2480 = vadd.f32 %v2479, 1e-12
        %v2481 = vrsqrt.pop %v2480
        %v2482 = vsub.f32 %v2467, %v2472
        %v2483 = vmul.f32 %v2482, %v2481
        %v2484 = vlaneseq
        %v2485 = vshrl.u32 %v2484, 7
        %v2486 = vsub.s32 0, %v2485
        %v2487 = vrot.slane %v2468, %v2486
        %v2488 = vmul.f32 %v2483, %v2487
        %v2489 = vlaneseq
        %v2490 = vshrl.u32 %v2489, 7
        %v2491 = vsub.s32 0, %v2490
        %v2492 = vrot.slane %v2469, %v2491
        %v2493 = vadd.f32 %v2488, %v2492
        %v2494 = vld [vmem:[%s5] sm:$0xff]
        %v2495 = vld [vmem:[%s5 + $0x8] sm:$0xff]
        %v2496 = vld [vmem:[%s5 + $0x10] sm:$0xff]
        %v2497 = vld [vmem:[%s5 + $0x18] sm:$0xff]
        %v2498 = vld [vmem:[%s5 + $0x20] sm:$0xff]
        %v2499 = vld [vmem:[%s5 + $0x28] sm:$0xff]
        %v2500 = vld [vmem:[%s5 + $0x30] sm:$0xff]
        %v2501 = vld [vmem:[%s5 + $0x38] sm:$0xff]
        %v2502 = vld [vmem:[%s5 + $0x40] sm:$0xff]
        %v2503 = vld [vmem:[%s5 + $0x48] sm:$0xff]
        %v2504 = vld [vmem:[%s5 + $0x50] sm:$0xff]
        %v2505 = vld [vmem:[%s5 + $0x58] sm:$0xff]
        %v2506 = vld [vmem:[%s5 + $0x60] sm:$0xff]
        %v2507 = vld [vmem:[%s5 + $0x68] sm:$0xff]
        %v2508 = vld [vmem:[%s5 + $0x70] sm:$0xff]
        %v2509 = vld [vmem:[%s5 + $0x78] sm:$0xff]
        %v2510 = vld [vmem:[%s4 + $0x2] sm:$0x1]
        %v2511 = vlaneseq
        %v2512 = vshrl.u32 %v2511, 7
        %v2513 = vsub.s32 0, %v2512
        %v2514 = vrot.slane %v2510, %v2513
        %2515 = vmatprep.subr.mxu0 0.0
        %2516 = vmatpush1.msra.mxu0 %v2509
        %2517 = vmatprep.subr.mxu0 0.0
        %2518 = vmatpush1.msra.mxu0 %v2508
        %2519 = vmatprep.subr.mxu0 0.0
        %2520 = vmatpush1.msra.mxu0 %v2507
        %2521 = vmatprep.subr.mxu0 0.0
        %2522 = vmatpush1.msra.mxu0 %v2506
        %2523 = vmatprep.subr.mxu0 0.0
        %2524 = vmatpush1.msra.mxu0 %v2505
        %2525 = vmatprep.subr.mxu0 0.0
        %2526 = vmatpush1.msra.mxu0 %v2504
        %2527 = vmatprep.subr.mxu0 0.0
        %2528 = vmatpush1.msra.mxu0 %v2503
        %2529 = vmatprep.subr.mxu0 0.0
        %2530 = vmatpush1.msra.mxu0 %v2502
        %2531 = vmatprep.subr.mxu0 0.0
        %2532 = vmatpush1.msra.mxu0 %v2501
        %2533 = vmatprep.subr.mxu0 0.0
        %2534 = vmatpush1.msra.mxu0 %v2500
        %2535 = vmatprep.subr.mxu0 0.0
        %2536 = vmatpush1.msra.mxu0 %v2499
        %2537 = vmatprep.subr.mxu0 0.0
        %2538 = vmatpush1.msra.mxu0 %v2498
        %2539 = vmatprep.subr.mxu0 0.0
        %2540 = vmatpush1.msra.mxu0 %v2497
        %2541 = vmatprep.subr.mxu0 0.0
        %2542 = vmatpush1.msra.mxu0 %v2496
        %2543 = vmatprep.subr.mxu0 0.0
        %2544 = vmatpush1.msra.mxu0 %v2495
        %2545 = vmatprep.subr.mxu0 0.0
        %2546 = vmatpush1.msra.mxu0 %v2494
        %2547 = vmatprep.subr.mxu0 0.0
        %2548 = vmatpush2.msra.mxu0 0.0
        %2549 = vmatprep.subr.mxu0 0.0
        %2550 = vmatpush2.msra.mxu0 0.0
        %2551 = vmatprep.subr.mxu0 0.0
        %2552 = vmatpush2.msra.mxu0 0.0
        %2553 = vmatprep.subr.mxu0 0.0
        %2554 = vmatpush2.msra.mxu0 0.0
        %2555 = vmatprep.subr.mxu0 0.0
        %2556 = vmatpush2.msra.mxu0 0.0
        %2557 = vmatprep.subr.mxu0 0.0
        %2558 = vmatpush2.msra.mxu0 0.0
        %2559 = vmatprep.subr.mxu0 0.0
        %2560 = vmatpush2.msra.mxu0 0.0
        %2561 = vmatprep.subr.mxu0 0.0
        %2562 = vmatpush2.msra.mxu0 0.0
        %2563 = vmatprep.subr.mxu0 0.0
        %2564 = vmatpush2.msra.mxu0 0.0
        %2565 = vmatprep.subr.mxu0 0.0
        %2566 = vmatpush2.msra.mxu0 0.0
        %2567 = vmatprep.subr.mxu0 0.0
        %2568 = vmatpush2.msra.mxu0 0.0
        %2569 = vmatprep.subr.mxu0 0.0
        %2570 = vmatpush2.msra.mxu0 0.0
        %2571 = vmatprep.subr.mxu0 0.0
        %2572 = vmatpush2.msra.mxu0 0.0
        %2573 = vmatprep.subr.mxu0 0.0
        %2574 = vmatpush2.msra.mxu0 0.0
        %2575 = vmatprep.subr.mxu0 0.0
        %2576 = vmatpush2.msra.mxu0 0.0
        %2577 = vmatprep.subr.mxu0 0.0
        %2578 = vmatpush2.msra.mxu0 0.0
        %2579 = vmatprep.mubr.f32.mxu0 0.0
        %2580 = vmatmul.mubr.f32.gmra.mxu0 %v2493
        %v2581 = vpop.f32.mrf.mxu0
        %v2582 = vadd.f32 %v2514, %v2581
        %v2583 = vpop.f32.mrf.mxu0
        %2584 = vdwg.mxu0
        %2585 = vst [vmem:[%s290] sm:$0xff] %v2582
        %p2586 = scmp.lt.s32.totalorder %s19, 1
        %s2587 = scalar_select %p2586, %s19, 1
        %s2588 = smul.addr %s2587, 8
        %s2589 = scalar_lea.vmem %s6, %s2588
        // Predicated region
        $region53: #{ner_forward.1} parent=43 // pred_check
          %p2590 = pneg %p173
        $region54: #{ner_forward.1} parent=43 // pred_check_branch
          %2592 = sbr.rel (%p2590) target = $region56
        $region55: #{ner_forward.1} parent=43 // pred_region
          _
        $region56: #{ner_forward.1} parent=43 // pred_fallthru
          _
      $region44: #{ner_forward.1} parent=5 // pred_fallthru
        _
      %p2593 = scmp.le.s32.totalorder 2, %s14
      // Predicated region
      $region57: #{ner_forward.1} parent=5 // pred_check
        %p2594 = pneg %p2593
      $region58: #{ner_forward.1} parent=5 // pred_check_branch
        %2596 = sbr.rel (%p2594) target = $region60
      $region59: #{ner_forward.1} parent=5 // pred_region
        %s2597 = ssub.s32 %s14, 2
        // Predicated region
        $region61: #{ner_forward.1} parent=59 // pred_check
          %p2598 = pneg %p179
        $region62: #{ner_forward.1} parent=59 // pred_check_branch
          %2600 = sbr.rel (%p2598) target = $region64
        $region63: #{ner_forward.1} parent=59 // pred_region
          %p2601 = scmp.lt.s32.totalorder %s20, 1
          %s2602 = scalar_select %p2601, %s20, 1
          %s2603 = smul.addr %s2602, 8
          %s2604 = scalar_lea.vmem %s6, %s2603
        $region64: #{ner_forward.1} parent=59 // pred_fallthru
          _
      $region60: #{ner_forward.1} parent=5 // pred_fallthru
        _
    $region6: #{ner_forward.1} parent=1 // loop_footer
      %s18 = sadd.s32 1, %s14
    $region7: #{ner_forward.1} parent=1 // loop_footer_branch
      %13 = sbr.rel target = $region3
    $region8: #{ner_forward.1} parent=1 // loop_exit
      _
    %2605 = vsyncpa [#allocation3], 1
    %s2606 = scalar_lea.sflag [#allocation3], 1
    %2607 = vsyncpa %s2606, 1
    %2608 = vsyncpa [#allocation5], 1

</llo_original>
